<compile_context>
chip_gen: v7x
topology: tpu7x:2x2x1
jax: 0.10.0
libtpu: 0.0.40
codegen_flags: <defaults>
</compile_context>

<pallas_src>
import functools

import jax
import jax.numpy as jnp
from jax.experimental import pallas as pl
from jax.experimental.pallas import tpu as pltpu

EPS = 1e-7  # epsilon used in the attention normalization


# ------------------------------ layout helpers -------------------------------
def _round_up(n, m):
    return ((n + m - 1) // m) * m


def _layout(dims):
    dp, de, dx, F, S, U = dims
    H = 6 * F + 2 * S + U                 # meaningful lanes of one (h or u) slab
    HPAD = _round_up(H, 128)              # padded slab width (lane-dense stores)
    DX = 2 * (dp + de + dx)               # packed input width
    DXPAD = _round_up(DX, 128)
    N = H + 4 + 4 * S                     # drive cols: H main + 4 att + 4 gated slow
    return H, HPAD, DX, DXPAD, N


def state_width(dims):
    _, HPAD, _, _, _ = _layout(dims)
    return 2 * HPAD


def pack_x(xl_pose, xl_enc, xl_prox, xr_pose, xr_enc, xr_prox):
    return jnp.concatenate(
        [xl_pose, xl_enc, xl_prox, xr_pose, xr_enc, xr_prox], axis=-1)


def pack_state(state, dims):
    """18-element module state tuple -> packed (B, 2*HPAD) [h_slab | u_slab]."""
    _, _, _, F, S, U = dims
    H, HPAD, _, _, _ = _layout(dims)
    (lph, leh, lxh, lsh, lpu, leu, lxu, lsu,
     rph, reh, rxh, rsh, rpu, reu, rxu, rsu, hu, uu) = state
    B = lph.shape[0]
    pad = [jnp.zeros((B, HPAD - H), jnp.float32)] if HPAD > H else []
    h_slab = jnp.concatenate(
        [lph, leh, lxh, lsh, rph, reh, rxh, rsh, hu] + pad, axis=-1)
    u_slab = jnp.concatenate(
        [lpu, leu, lxu, lsu, rpu, reu, rxu, rsu, uu] + pad, axis=-1)
    return jnp.concatenate([h_slab, u_slab], axis=-1)


def unpack_state(packed, dims):
    """Packed (B, 2*HPAD) -> 18-element module state tuple."""
    _, _, _, F, S, U = dims
    _, HPAD, _, _, _ = _layout(dims)

    def split(slab):
        sizes = [F, F, F, S, F, F, F, S, U]
        out, off = [], 0
        for sz in sizes:
            out.append(slab[..., off:off + sz])
            off += sz
        return out

    h = split(packed[..., :HPAD])
    u = split(packed[..., HPAD:2 * HPAD])
    return (h[0], h[1], h[2], h[3], u[0], u[1], u[2], u[3],
            h[4], h[5], h[6], h[7], u[4], u[5], u[6], u[7],
            h[8], u[8])


# ------------------------- host-side weight fusion ---------------------------
def prepare_params(params):
    """Fuse the 31 tiny weight matrices into two matmul slabs W_in / W_rec.

    Drive-column layout (N = H + 4 + 4S):
      [ l_fast(3F) | l_slow_base(S) | r_fast(3F) | r_slow_base(S) | union(U) |
        att(4: l_a1,l_a3,r_a1,r_a3) | l_slow_enc(S) | l_slow_prox(S) |
        r_slow_enc(S) | r_slow_prox(S) ]
    The first H columns already sit in the u-slab layout; enc/prox f2s columns
    are kept separate so per-row attention weights can be applied post-matmul.
    """
    dp = params["left"]["pose_i2f"].shape[0]
    de = params["left"]["enc_i2f"].shape[0]
    dx = params["left"]["prox_i2f"].shape[0]
    F = params["left"]["pose_f2f"].shape[0]
    S = params["left"]["s2s"].shape[0]
    U = params["u2u"].shape[0]
    dims = (dp, de, dx, F, S, U)
    H, HPAD, DX, DXPAD, N = _layout(dims)

    w_in = jnp.zeros((DXPAD, N), jnp.float32)
    w_rec = jnp.zeros((HPAD, N), jnp.float32)
    hu = 6 * F + 2 * S                    # h_union row offset in h slab
    c_union = 6 * F + 2 * S               # union drive column offset
    c_att = H                             # attention logit columns

    for si, side in enumerate(("left", "right")):
        W = params[side]
        xb = si * (dp + de + dx)          # x row base
        hb = si * (3 * F + S)             # h row base (== fast/slow col base)
        cb = hb
        c_enc_gate = H + 4 + 2 * S * si
        c_prox_gate = H + 4 + S + 2 * S * si
        # x -> fast drives (i2f)
        w_in = w_in.at[xb:xb + dp, cb:cb + F].set(W["pose_i2f"])
        w_in = w_in.at[xb + dp:xb + dp + de, cb + F:cb + 2 * F].set(W["enc_i2f"])
        w_in = w_in.at[xb + dp + de:xb + dp + de + dx,
                       cb + 2 * F:cb + 3 * F].set(W["prox_i2f"])
        # h_fast -> fast drives (f2f)
        w_rec = w_rec.at[hb:hb + F, cb:cb + F].set(W["pose_f2f"])
        w_rec = w_rec.at[hb + F:hb + 2 * F, cb + F:cb + 2 * F].set(W["enc_f2f"])
        w_rec = w_rec.at[hb + 2 * F:hb + 3 * F,
                         cb + 2 * F:cb + 3 * F].set(W["prox_f2f"])
        # h_fast -> slow drive (pose direct; enc/prox go to the gated columns)
        w_rec = w_rec.at[hb:hb + F, cb + 3 * F:cb + 3 * F + S].set(W["pose_f2s"])
        w_rec = w_rec.at[hb + F:hb + 2 * F,
                         c_enc_gate:c_enc_gate + S].set(W["enc_f2s"])
        w_rec = w_rec.at[hb + 2 * F:hb + 3 * F,
                         c_prox_gate:c_prox_gate + S].set(W["prox_f2s"])
        # h_slow -> fast (s2f), slow (s2s), union (s2u), attention logits
        hs = hb + 3 * F
        w_rec = w_rec.at[hs:hs + S, cb:cb + F].set(W["pose_s2f"])
        w_rec = w_rec.at[hs:hs + S, cb + F:cb + 2 * F].set(W["enc_s2f"])
        w_rec = w_rec.at[hs:hs + S, cb + 2 * F:cb + 3 * F].set(W["prox_s2f"])
        w_rec = w_rec.at[hs:hs + S, cb + 3 * F:cb + 3 * F + S].set(W["s2s"])
        w_rec = w_rec.at[hs:hs + S, c_union:c_union + U].set(W["s2u"])
        w_rec = w_rec.at[hs:hs + S,
                         c_att + 2 * si:c_att + 2 * si + 2].set(params["kernel_att"])
        # h_union -> slow drive (u2s)
        w_rec = w_rec.at[hu:hu + U, cb + 3 * F:cb + 3 * F + S].set(W["u2s"])

    # h_union -> union drive (u2u)
    w_rec = w_rec.at[hu:hu + U, c_union:c_union + U].set(params["u2u"])

    b_att4 = jnp.concatenate([params["bias_att"], params["bias_att"]],
                             axis=1).astype(jnp.float32)
    fused = {"w_in": w_in, "w_rec": w_rec, "b_att4": b_att4}
    return fused, dims


# ------------------------------- kernel body ---------------------------------
def _rollout_kernel(dims, chunk,
                    x_ref, init_ref, w_in_ref, w_rec_ref, b_att_ref,
                    decay_ref, gain_ref, out_ref, state_scr):
    _, _, _, F, S, U = dims
    H = 6 * F + 2 * S + U
    HPAD = state_scr.shape[1] // 2
    B = state_scr.shape[0]
    cg_le, cg_lp = H + 4, H + 4 + S               # gated enc/prox columns (left)
    cg_re, cg_rp = H + 4 + 2 * S, H + 4 + 3 * S   # gated enc/prox columns (right)

    @pl.when(pl.program_id(0) == 0)
    def _():
        state_scr[...] = init_ref[...]

    # Weights / constants loaded & broadcast once per chunk (hoisted).
    w_in = w_in_ref[...]
    w_rec = w_rec_ref[...]
    b_att = jnp.broadcast_to(b_att_ref[...], (B, 4))
    decay = jnp.broadcast_to(decay_ref[...], (B, HPAD))
    gain = jnp.broadcast_to(gain_ref[...], (B, HPAD))
    pad = jnp.zeros((B, HPAD - H), jnp.float32) if HPAD > H else None

    state = state_scr[...]                         # (B, 2*HPAD) = [h | u]
    for t in range(chunk):                         # statically unrolled
        h_pad = state[:, :HPAD]
        u_pad = state[:, HPAD:]

        # All linear drives in two MXU matmuls (zero-padded rows are free).
        drv = (jnp.dot(x_ref[t], w_in, preferred_element_type=jnp.float32)
               + jnp.dot(h_pad, w_rec, preferred_element_type=jnp.float32))

        # Attention gates (per-row scalars -> applied post-matmul).
        att = jax.nn.sigmoid(drv[:, H:H + 4] + b_att)
        a1l, a3l = att[:, 0:1], att[:, 1:2]
        a1r, a3r = att[:, 2:3], att[:, 3:4]
        inv_l = 1.0 / (a1l + a3l + EPS)            # EPS only in denominator
        inv_r = 1.0 / (a1r + a3r + EPS)

        l_slow = (drv[:, 3 * F:3 * F + S]
                  + (a1l * inv_l) * drv[:, cg_le:cg_le + S]
                  + (a3l * inv_l) * drv[:, cg_lp:cg_lp + S])
        r_slow = (drv[:, 6 * F + S:6 * F + 2 * S]
                  + (a1r * inv_r) * drv[:, cg_re:cg_re + S]
                  + (a3r * inv_r) * drv[:, cg_rp:cg_rp + S])

        pieces = [drv[:, 0:3 * F], l_slow,
                  drv[:, 3 * F + S:6 * F + S], r_slow,
                  drv[:, 6 * F + 2 * S:H]]
        if pad is not None:
            pieces.append(pad)
        drive = jnp.concatenate(pieces, axis=1)    # (B, HPAD), u-slab layout

        # Leaky integration (union drive scaled by 1/slow_tau via gain vector,
        # matching the reference module). Pad lanes stay exactly zero.
        new_u = decay * u_pad + gain * drive
        state = jnp.concatenate([jnp.tanh(new_u), new_u], axis=1)
        out_ref[t] = state                         # lane-dense (B, 2*HPAD) store

    state_scr[...] = state
    # TODO(synk): pb vector path (use_pb=True) not wired in; module default
    # use_pb=False / pb=None is what is reproduced here.


# --------------------------------- wrappers ----------------------------------
def mtrnn_rollout(fused, dims, x_seq, init_state, *,
                  fast_tau, slow_tau, union_tau, chunk=None):
    """Runs T MTRNN steps; CHUNK steps per grid iteration, unrolled in-kernel.

    x_seq:      (T, B, D_x)        packed inputs (see pack_x)
    init_state: (B, 2*HPAD)        packed initial state (see pack_state)
    returns:    (T, B, 2*HPAD)     packed state trajectory
    """
    _, _, _, F, S, U = dims
    H, HPAD, DX, DXPAD, _ = _layout(dims)
    T, B, dx_in = x_seq.shape
    assert dx_in == DX and init_state.shape == (B, 2 * HPAD)

    if chunk is None:
        chunk = min(T, 16)
    n_chunks = -(-T // chunk)
    T_pad = n_chunks * chunk

    x_pad = jnp.pad(x_seq.astype(jnp.float32),
                    ((0, T_pad - T), (0, 0), (0, DXPAD - DX)))

    inv_f, inv_s, inv_u = 1.0 / fast_tau, 1.0 / slow_tau, 1.0 / union_tau

    def lane_vec(vf, vs, vu):
        v = jnp.concatenate([
            jnp.full((3 * F,), vf, jnp.float32), jnp.full((S,), vs, jnp.float32),
            jnp.full((3 * F,), vf, jnp.float32), jnp.full((S,), vs, jnp.float32),
            jnp.full((U,), vu, jnp.float32),
            jnp.zeros((HPAD - H,), jnp.float32)])
        return v.reshape(1, HPAD)

    decay = lane_vec(1.0 - inv_f, 1.0 - inv_s, 1.0 - inv_u)
    # NOTE: union drive scaled by 1/slow_tau (not 1/union_tau) — matches module.
    gain = lane_vec(inv_f, inv_s, inv_s)

    kern = functools.partial(_rollout_kernel, dims, chunk)
    traj = pl.pallas_call(
        kern,
        out_shape=jax.ShapeDtypeStruct((T_pad, B, 2 * HPAD), jnp.float32),
        grid_spec=pltpu.PrefetchScalarGridSpec(
            num_scalar_prefetch=0,
            grid=(n_chunks,),
            in_specs=[
                pl.BlockSpec((chunk, B, DXPAD), lambda c: (c, 0, 0)),   # inputs
                pl.BlockSpec((B, 2 * HPAD), lambda c: (0, 0)),          # init
                pl.BlockSpec(fused["w_in"].shape, lambda c: (0, 0)),    # resident
                pl.BlockSpec(fused["w_rec"].shape, lambda c: (0, 0)),   # resident
                pl.BlockSpec((1, 4), lambda c: (0, 0)),                 # att bias
                pl.BlockSpec((1, HPAD), lambda c: (0, 0)),              # decay
                pl.BlockSpec((1, HPAD), lambda c: (0, 0)),              # gain
            ],
            out_specs=pl.BlockSpec((chunk, B, 2 * HPAD), lambda c: (c, 0, 0)),
            scratch_shapes=[pltpu.VMEM((B, 2 * HPAD), jnp.float32)]),
        compiler_params=pltpu.CompilerParams(
            dimension_semantics=("arbitrary",)),
    )(x_pad, init_state.astype(jnp.float32), fused["w_in"], fused["w_rec"],
      fused["b_att4"], decay, gain)
    return traj[:T]


def mtrnn_cell(fused, dims, xl_pose, xl_enc, xl_prox, xr_pose, xr_enc, xr_prox,
               state=None, *, fast_tau, slow_tau, union_tau):
    """One MTRNNCell step (module-parity interface, 18-element state tuple)."""
    B = xl_pose.shape[0]
    if state is None:
        init = jnp.zeros((B, state_width(dims)), jnp.float32)
    else:
        init = pack_state(state, dims)
    x = pack_x(xl_pose, xl_enc, xl_prox, xr_pose, xr_enc, xr_prox)[None]
    traj = mtrnn_rollout(fused, dims, x, init, fast_tau=fast_tau,
                         slow_tau=slow_tau, union_tau=union_tau)
    return unpack_state(traj[0], dims)


# -------------------- pure-JAX reference (for validation) --------------------
def mtrnn_reference(params, xl_pose, xl_enc, xl_prox, xr_pose, xr_enc, xr_prox,
                    state, *, fast_tau, slow_tau, union_tau):
    (p_l_pose_h, p_l_enc_h, p_l_prox_h, p_l_slow_h,
     p_l_pose_u, p_l_enc_u, p_l_prox_u, p_l_slow_u,
     p_r_pose_h, p_r_enc_h, p_r_prox_h, p_r_slow_h,
     p_r_pose_u, p_r_enc_u, p_r_prox_u, p_r_slow_u,
     p_h_union, p_u_union) = state
    inv_f, inv_s, inv_u = 1.0 / fast_tau, 1.0 / slow_tau, 1.0 / union_tau
    k_att, b_att, u2u = params["kernel_att"], params["bias_att"], params["u2u"]

    def side(W, xp, xe, xx, ph_pose, ph_enc, ph_prox, ph_slow,
             pu_pose, pu_enc, pu_prox, pu_slow):
        npu = (1 - inv_f) * pu_pose + inv_f * (xp @ W["pose_i2f"]
              + ph_pose @ W["pose_f2f"] + ph_slow @ W["pose_s2f"])
        neu = (1 - inv_f) * pu_enc + inv_f * (xe @ W["enc_i2f"]
              + ph_enc @ W["enc_f2f"] + ph_slow @ W["enc_s2f"])
        nxu = (1 - inv_f) * pu_prox + inv_f * (xx @ W["prox_i2f"]
              + ph_prox @ W["prox_f2f"] + ph_slow @ W["prox_s2f"])
        att = jax.nn.sigmoid(ph_slow @ k_att + b_att)
        a1, a3 = att[:, 0:1], att[:, 1:2]
        att1, att3 = a1 / (a1 + a3 + EPS), a3 / (a1 + a3 + EPS)
        in_slow = (ph_pose @ W["pose_f2s"] + (ph_enc * att1) @ W["enc_f2s"]
                   + (ph_prox * att3) @ W["prox_f2s"] + ph_slow @ W["s2s"]
                   + p_h_union @ W["u2s"])
        nsu = (1 - inv_s) * pu_slow + inv_s * in_slow
        return npu, neu, nxu, nsu

    lpu, leu, lxu, lsu = side(params["left"], xl_pose, xl_enc, xl_prox,
                              p_l_pose_h, p_l_enc_h, p_l_prox_h, p_l_slow_h,
                              p_l_pose_u, p_l_enc_u, p_l_prox_u, p_l_slow_u)
    rpu, reu, rxu, rsu = side(params["right"], xr_pose, xr_enc, xr_prox,
                              p_r_pose_h, p_r_enc_h, p_r_prox_h, p_r_slow_h,
                              p_r_pose_u, p_r_enc_u, p_r_prox_u, p_r_slow_u)
    uu = (1 - inv_u) * p_u_union + inv_s * (
        p_l_slow_h @ params["left"]["s2u"] + p_r_slow_h @ params["right"]["s2u"]
        + p_h_union @ u2u)
    t = jnp.tanh
    return (t(lpu), t(leu), t(lxu), t(lsu), lpu, leu, lxu, lsu,
            t(rpu), t(reu), t(rxu), t(rsu), rpu, reu, rxu, rsu,
            t(uu), uu)


# -------------------- deterministic parameter init --------------------
def init_params(key, d_pose, d_enc, d_prox, F, S, U):
    keys = iter(jax.random.split(key, 64))

    def lin(fan_in, fan_out):
        bound = 1.0 / (fan_in ** 0.5)
        return jax.random.uniform(next(keys), (fan_in, fan_out),
                                  jnp.float32, -bound, bound)

    def make_side():
        return {
            "pose_i2f": lin(d_pose, F), "enc_i2f": lin(d_enc, F),
            "prox_i2f": lin(d_prox, F),
            "pose_f2f": lin(F, F), "pose_f2s": lin(F, S),
            "enc_f2f": lin(F, F), "enc_f2s": lin(F, S),
            "prox_f2f": lin(F, F), "prox_f2s": lin(F, S),
            "s2s": lin(S, S),
            "pose_s2f": lin(S, F), "enc_s2f": lin(S, F), "prox_s2f": lin(S, F),
            "s2u": lin(S, U), "u2s": lin(U, S),
        }

    return {
        "kernel_att": jax.random.normal(next(keys), (S, 2), jnp.float32) * 0.1,
        "bias_att": jax.random.normal(next(keys), (1, 2), jnp.float32) * 0.1,
        "left": make_side(),
        "right": make_side(),
        "u2u": lin(U, U),
    }


if __name__ == "__main__":
    B, T = 4, 8
    D_POSE, D_ENC, D_PROX = 7, 10, 5
    F, S, U = 32, 16, 12
    taus = dict(fast_tau=2.0, slow_tau=12.0, union_tau=25.0)

    root = jax.random.PRNGKey(0)
    pkey, xkey = jax.random.split(root)
    params = init_params(pkey, D_POSE, D_ENC, D_PROX, F, S, U)
    fused, dims = prepare_params(params)

    xk = jax.random.split(xkey, 6)
    in_dims = (D_POSE, D_ENC, D_PROX, D_POSE, D_ENC, D_PROX)
    xs = [jax.random.normal(k, (T, B, d), jnp.float32)
          for k, d in zip(xk, in_dims)]
    x_seq = pack_x(*xs)                                   # (T, B, 44) packed

    # ---- multi-step rollout: whole T inside one grid step (grid=(1,)) ----
    init = jnp.zeros((B, state_width(dims)), jnp.float32)
    traj = mtrnn_rollout(fused, dims, x_seq, init, **taus)
    traj = jax.block_until_ready(traj)

    # pure-JAX reference rollout
    def zero_state():
        z = lambda d: jnp.zeros((B, d), jnp.float32)
        return (z(F), z(F), z(F), z(S), z(F), z(F), z(F), z(S),
                z(F), z(F), z(F), z(S), z(F), z(F), z(F), z(S),
                z(U), z(U))

    st = zero_state()
    ref_rows = []
    for t in range(T):
        st = mtrnn_reference(params, xs[0][t], xs[1][t], xs[2][t],
                             xs[3][t], xs[4][t], xs[5][t], st, **taus)
        ref_rows.append(pack_state(st, dims))
    ref_traj = jnp.stack(ref_rows)

    assert traj.shape == ref_traj.shape and traj.dtype == ref_traj.dtype
    assert jnp.allclose(traj, ref_traj, atol=1e-4, rtol=1e-4), \
        float(jnp.max(jnp.abs(traj - ref_traj)))

    # ---- single-step interface (module parity: state=None, then feedback) ----
    step_args = (xs[0][0], xs[1][0], xs[2][0], xs[3][0], xs[4][0], xs[5][0])
    s1 = mtrnn_cell(fused, dims, *step_args, state=None, **taus)
    s1 = jax.block_until_ready(s1)
    s2 = mtrnn_cell(fused, dims, *step_args, state=s1, **taus)
    s2 = jax.block_until_ready(s2)
    r1 = mtrnn_reference(params, *step_args, zero_state(), **taus)
    r2 = mtrnn_reference(params, *step_args, r1, **taus)
    for got, want in list(zip(s1, r1)) + list(zip(s2, r2)):
        assert got.shape == want.shape and got.dtype == want.dtype
        assert jnp.allclose(got, want, atol=1e-4, rtol=1e-4), \
            float(jnp.max(jnp.abs(got - want)))

    print("KERNEL_OK")
</pallas_src>

<mosaic_0001>
module attributes {stable_mosaic.version = 11 : i64} {
  func.func @_rollout_kernel(%arg0: i32, %arg1: memref<8x4x128xf32, #tpu.memory_space<vmem>>, %arg2: memref<4x512xf32, #tpu.memory_space<vmem>>, %arg3: memref<128x304xf32, #tpu.memory_space<vmem>>, %arg4: memref<256x304xf32, #tpu.memory_space<vmem>>, %arg5: memref<1x4xf32, #tpu.memory_space<vmem>>, %arg6: memref<1x256xf32, #tpu.memory_space<vmem>>, %arg7: memref<1x256xf32, #tpu.memory_space<vmem>>, %arg8: memref<8x4x512xf32, #tpu.memory_space<vmem>>, %arg9: memref<4x512xf32, #tpu.memory_space<vmem>>) attributes {dimension_semantics = [#tpu.dimension_semantics<arbitrary>], iteration_bounds = array<i64: 1>, scalar_prefetch = 0 : i64, scratch_operands = 1 : i64, tpu.core_type = #tpu.core_type<tc>, window_params = [{transform_indices = @transform_0, window_bounds = array<i64: 8, 4, 128>}, {pipeline_mode = #tpu.pipeline_mode<synchronous>, transform_indices = @transform_1, window_bounds = array<i64: 4, 512>}, {pipeline_mode = #tpu.pipeline_mode<synchronous>, transform_indices = @transform_2, window_bounds = array<i64: 128, 304>}, {pipeline_mode = #tpu.pipeline_mode<synchronous>, transform_indices = @transform_3, window_bounds = array<i64: 256, 304>}, {pipeline_mode = #tpu.pipeline_mode<synchronous>, transform_indices = @transform_4, window_bounds = array<i64: 1, 4>}, {pipeline_mode = #tpu.pipeline_mode<synchronous>, transform_indices = @transform_5, window_bounds = array<i64: 1, 256>}, {pipeline_mode = #tpu.pipeline_mode<synchronous>, transform_indices = @transform_6, window_bounds = array<i64: 1, 256>}, {transform_indices = @transform_7, window_bounds = array<i64: 8, 4, 512>}]} {
    %c0_i32 = arith.constant 0 : i32
    %0 = arith.cmpi eq, %arg0, %c0_i32 : i32
    %1 = arith.extui %0 : i1 to i32
    %c0_i32_0 = arith.constant 0 : i32
    %2 = arith.cmpi ne, %1, %c0_i32_0 : i32
    scf.if %2 {
      %c0_111 = arith.constant 0 : index
      %c0_112 = arith.constant 0 : index
      %513 = vector.load %arg2[%c0_111, %c0_112] : memref<4x512xf32, #tpu.memory_space<vmem>>, vector<4x512xf32>
      %c0_113 = arith.constant 0 : index
      %c0_114 = arith.constant 0 : index
      %514 = vector.load %arg9[%c0_113, %c0_114] : memref<4x512xf32, #tpu.memory_space<vmem>>, vector<4x512xf32>
      tpu.vector_store %arg9[%c0_113, %c0_114], %513 {strides = array<i32>} : memref<4x512xf32, #tpu.memory_space<vmem>>, vector<4x512xf32>,
    } else {
    }
    %c0 = arith.constant 0 : index
    %c0_1 = arith.constant 0 : index
    %3 = vector.load %arg3[%c0, %c0_1] : memref<128x304xf32, #tpu.memory_space<vmem>>, vector<128x304xf32>
    %c0_2 = arith.constant 0 : index
    %c0_3 = arith.constant 0 : index
    %4 = vector.load %arg4[%c0_2, %c0_3] : memref<256x304xf32, #tpu.memory_space<vmem>>, vector<256x304xf32>
    %c0_4 = arith.constant 0 : index
    %c0_5 = arith.constant 0 : index
    %5 = vector.load %arg5[%c0_4, %c0_5] : memref<1x4xf32, #tpu.memory_space<vmem>>, vector<1x4xf32>
    %6 = vector.shape_cast %5 : vector<1x4xf32> to vector<1x4xf32>
    %7 = vector.broadcast %6 : vector<1x4xf32> to vector<4x4xf32>
    %c0_6 = arith.constant 0 : index
    %c0_7 = arith.constant 0 : index
    %8 = vector.load %arg6[%c0_6, %c0_7] : memref<1x256xf32, #tpu.memory_space<vmem>>, vector<1x256xf32>
    %9 = vector.shape_cast %8 : vector<1x256xf32> to vector<1x256xf32>
    %10 = vector.broadcast %9 : vector<1x256xf32> to vector<4x256xf32>
    %c0_8 = arith.constant 0 : index
    %c0_9 = arith.constant 0 : index
    %11 = vector.load %arg7[%c0_8, %c0_9] : memref<1x256xf32, #tpu.memory_space<vmem>>, vector<1x256xf32>
    %12 = vector.shape_cast %11 : vector<1x256xf32> to vector<1x256xf32>
    %13 = vector.broadcast %12 : vector<1x256xf32> to vector<4x256xf32>
    %cst = arith.constant 0.000000e+00 : f32
    %14 = vector.broadcast %cst : f32 to vector<4x20xf32>
    %c0_10 = arith.constant 0 : index
    %c0_11 = arith.constant 0 : index
    %15 = vector.load %arg9[%c0_10, %c0_11] : memref<4x512xf32, #tpu.memory_space<vmem>>, vector<4x512xf32>
    %16 = vector.extract_strided_slice %15 {offsets = [0, 0], sizes = [4, 256], strides = [1, 1]} : vector<4x512xf32> to vector<4x256xf32>
    %17 = vector.extract_strided_slice %15 {offsets = [0, 256], sizes = [4, 256], strides = [1, 1]} : vector<4x512xf32> to vector<4x256xf32>
    %c0_12 = arith.constant 0 : index
    %c0_13 = arith.constant 0 : index
    %c0_14 = arith.constant 0 : index
    %18 = vector.load %arg1[%c0_12, %c0_13, %c0_14] : memref<8x4x128xf32, #tpu.memory_space<vmem>>, vector<1x4x128xf32>
    %19 = vector.shape_cast %18 : vector<1x4x128xf32> to vector<4x128xf32>
    %cst_15 = arith.constant dense<0.000000e+00> : vector<4x304xf32>
    %20 = tpu.matmul %19, %3, %cst_15 {dimension_numbers = #tpu.dot_dimension_numbers<[1], [0], [0], [1], [0, 0, 1, 1], [], []>} : vector<4x128xf32>, vector<128x304xf32>, vector<4x304xf32> -> vector<4x304xf32>
    %cst_16 = arith.constant dense<0.000000e+00> : vector<4x304xf32>
    %21 = tpu.matmul %16, %4, %cst_16 {dimension_numbers = #tpu.dot_dimension_numbers<[1], [0], [0], [1], [0, 0, 1, 1], [], []>} : vector<4x256xf32>, vector<256x304xf32>, vector<4x304xf32> -> vector<4x304xf32>
    %22 = arith.addf %20, %21 : vector<4x304xf32>
    %23 = vector.extract_strided_slice %22 {offsets = [0, 236], sizes = [4, 4], strides = [1, 1]} : vector<4x304xf32> to vector<4x4xf32>
    %24 = arith.addf %23, %7 : vector<4x4xf32>
    %25 = arith.negf %24 : vector<4x4xf32>
    %26 = math.exp %25 : vector<4x4xf32>
    %cst_17 = arith.constant 1.000000e+00 : f32
    %27 = vector.broadcast %cst_17 : f32 to vector<4x4xf32>
    %28 = arith.addf %27, %26 : vector<4x4xf32>
    %29 = arith.divf %27, %28 : vector<4x4xf32>
    %30 = vector.extract_strided_slice %29 {offsets = [0, 0], sizes = [4, 1], strides = [1, 1]} : vector<4x4xf32> to vector<4x1xf32>
    %31 = vector.extract_strided_slice %29 {offsets = [0, 1], sizes = [4, 1], strides = [1, 1]} : vector<4x4xf32> to vector<4x1xf32>
    %32 = vector.extract_strided_slice %29 {offsets = [0, 2], sizes = [4, 1], strides = [1, 1]} : vector<4x4xf32> to vector<4x1xf32>
    %33 = vector.extract_strided_slice %29 {offsets = [0, 3], sizes = [4, 1], strides = [1, 1]} : vector<4x4xf32> to vector<4x1xf32>
    %34 = arith.addf %30, %31 : vector<4x1xf32>
    %cst_18 = arith.constant 1.000000e-07 : f32
    %35 = vector.broadcast %cst_18 : f32 to vector<4x1xf32>
    %36 = arith.addf %34, %35 : vector<4x1xf32>
    %cst_19 = arith.constant 1.000000e+00 : f32
    %37 = vector.broadcast %cst_19 : f32 to vector<4x1xf32>
    %38 = arith.divf %37, %36 : vector<4x1xf32>
    %39 = arith.addf %32, %33 : vector<4x1xf32>
    %cst_20 = arith.constant 1.000000e-07 : f32
    %40 = vector.broadcast %cst_20 : f32 to vector<4x1xf32>
    %41 = arith.addf %39, %40 : vector<4x1xf32>
    %cst_21 = arith.constant 1.000000e+00 : f32
    %42 = vector.broadcast %cst_21 : f32 to vector<4x1xf32>
    %43 = arith.divf %42, %41 : vector<4x1xf32>
    %44 = vector.extract_strided_slice %22 {offsets = [0, 96], sizes = [4, 16], strides = [1, 1]} : vector<4x304xf32> to vector<4x16xf32>
    %45 = arith.mulf %30, %38 : vector<4x1xf32>
    %46 = vector.extract_strided_slice %22 {offsets = [0, 240], sizes = [4, 16], strides = [1, 1]} : vector<4x304xf32> to vector<4x16xf32>
    %47 = vector.broadcast %45 : vector<4x1xf32> to vector<4x16xf32>
    %48 = arith.mulf %47, %46 : vector<4x16xf32>
    %49 = arith.addf %44, %48 : vector<4x16xf32>
    %50 = arith.mulf %31, %38 : vector<4x1xf32>
    %51 = vector.extract_strided_slice %22 {offsets = [0, 256], sizes = [4, 16], strides = [1, 1]} : vector<4x304xf32> to vector<4x16xf32>
    %52 = vector.broadcast %50 : vector<4x1xf32> to vector<4x16xf32>
    %53 = arith.mulf %52, %51 : vector<4x16xf32>
    %54 = arith.addf %49, %53 : vector<4x16xf32>
    %55 = vector.extract_strided_slice %22 {offsets = [0, 208], sizes = [4, 16], strides = [1, 1]} : vector<4x304xf32> to vector<4x16xf32>
    %56 = arith.mulf %32, %43 : vector<4x1xf32>
    %57 = vector.extract_strided_slice %22 {offsets = [0, 272], sizes = [4, 16], strides = [1, 1]} : vector<4x304xf32> to vector<4x16xf32>
    %58 = vector.broadcast %56 : vector<4x1xf32> to vector<4x16xf32>
    %59 = arith.mulf %58, %57 : vector<4x16xf32>
    %60 = arith.addf %55, %59 : vector<4x16xf32>
    %61 = arith.mulf %33, %43 : vector<4x1xf32>
    %62 = vector.extract_strided_slice %22 {offsets = [0, 288], sizes = [4, 16], strides = [1, 1]} : vector<4x304xf32> to vector<4x16xf32>
    %63 = vector.broadcast %61 : vector<4x1xf32> to vector<4x16xf32>
    %64 = arith.mulf %63, %62 : vector<4x16xf32>
    %65 = arith.addf %60, %64 : vector<4x16xf32>
    %66 = vector.extract_strided_slice %22 {offsets = [0, 0], sizes = [4, 96], strides = [1, 1]} : vector<4x304xf32> to vector<4x96xf32>
    %67 = vector.extract_strided_slice %22 {offsets = [0, 112], sizes = [4, 96], strides = [1, 1]} : vector<4x304xf32> to vector<4x96xf32>
    %68 = vector.extract_strided_slice %22 {offsets = [0, 224], sizes = [4, 12], strides = [1, 1]} : vector<4x304xf32> to vector<4x12xf32>
    %69 = tpu.concatenate %66, %54, %67, %65, %68, %14 in 1 : vector<4x96xf32>, vector<4x16xf32>, vector<4x96xf32>, vector<4x16xf32>, vector<4x12xf32>, vector<4x20xf32> -> vector<4x256xf32>
    %70 = arith.mulf %10, %17 : vector<4x256xf32>
    %71 = arith.mulf %13, %69 : vector<4x256xf32>
    %72 = arith.addf %70, %71 : vector<4x256xf32>
    %73 = math.tanh %72 : vector<4x256xf32>
    %74 = tpu.concatenate %73, %72 in 1 : vector<4x256xf32>, vector<4x256xf32> -> vector<4x512xf32>
    %c0_22 = arith.constant 0 : index
    %c0_23 = arith.constant 0 : index
    %c0_24 = arith.constant 0 : index
    %75 = vector.load %arg8[%c0_22, %c0_23, %c0_24] : memref<8x4x512xf32, #tpu.memory_space<vmem>>, vector<1x4x512xf32>
    %76 = vector.shape_cast %75 : vector<1x4x512xf32> to vector<4x512xf32>
    %77 = vector.shape_cast %74 : vector<4x512xf32> to vector<1x4x512xf32>
    tpu.vector_store %arg8[%c0_22, %c0_23, %c0_24], %77 {strides = array<i32>} : memref<8x4x512xf32, #tpu.memory_space<vmem>>, vector<1x4x512xf32>,
    %78 = vector.extract_strided_slice %74 {offsets = [0, 0], sizes = [4, 256], strides = [1, 1]} : vector<4x512xf32> to vector<4x256xf32>
    %79 = vector.extract_strided_slice %74 {offsets = [0, 256], sizes = [4, 256], strides = [1, 1]} : vector<4x512xf32> to vector<4x256xf32>
    %c1 = arith.constant 1 : index
    %c0_25 = arith.constant 0 : index
    %c0_26 = arith.constant 0 : index
    %80 = vector.load %arg1[%c1, %c0_25, %c0_26] : memref<8x4x128xf32, #tpu.memory_space<vmem>>, vector<1x4x128xf32>
    %81 = vector.shape_cast %80 : vector<1x4x128xf32> to vector<4x128xf32>
    %cst_27 = arith.constant dense<0.000000e+00> : vector<4x304xf32>
    %82 = tpu.matmul %81, %3, %cst_27 {dimension_numbers = #tpu.dot_dimension_numbers<[1], [0], [0], [1], [0, 0, 1, 1], [], []>} : vector<4x128xf32>, vector<128x304xf32>, vector<4x304xf32> -> vector<4x304xf32>
    %cst_28 = arith.constant dense<0.000000e+00> : vector<4x304xf32>
    %83 = tpu.matmul %78, %4, %cst_28 {dimension_numbers = #tpu.dot_dimension_numbers<[1], [0], [0], [1], [0, 0, 1, 1], [], []>} : vector<4x256xf32>, vector<256x304xf32>, vector<4x304xf32> -> vector<4x304xf32>
    %84 = arith.addf %82, %83 : vector<4x304xf32>
    %85 = vector.extract_strided_slice %84 {offsets = [0, 236], sizes = [4, 4], strides = [1, 1]} : vector<4x304xf32> to vector<4x4xf32>
    %86 = arith.addf %85, %7 : vector<4x4xf32>
    %87 = arith.negf %86 : vector<4x4xf32>
    %88 = math.exp %87 : vector<4x4xf32>
    %cst_29 = arith.constant 1.000000e+00 : f32
    %89 = vector.broadcast %cst_29 : f32 to vector<4x4xf32>
    %90 = arith.addf %89, %88 : vector<4x4xf32>
    %91 = arith.divf %89, %90 : vector<4x4xf32>
    %92 = vector.extract_strided_slice %91 {offsets = [0, 0], sizes = [4, 1], strides = [1, 1]} : vector<4x4xf32> to vector<4x1xf32>
    %93 = vector.extract_strided_slice %91 {offsets = [0, 1], sizes = [4, 1], strides = [1, 1]} : vector<4x4xf32> to vector<4x1xf32>
    %94 = vector.extract_strided_slice %91 {offsets = [0, 2], sizes = [4, 1], strides = [1, 1]} : vector<4x4xf32> to vector<4x1xf32>
    %95 = vector.extract_strided_slice %91 {offsets = [0, 3], sizes = [4, 1], strides = [1, 1]} : vector<4x4xf32> to vector<4x1xf32>
    %96 = arith.addf %92, %93 : vector<4x1xf32>
    %cst_30 = arith.constant 1.000000e-07 : f32
    %97 = vector.broadcast %cst_30 : f32 to vector<4x1xf32>
    %98 = arith.addf %96, %97 : vector<4x1xf32>
    %cst_31 = arith.constant 1.000000e+00 : f32
    %99 = vector.broadcast %cst_31 : f32 to vector<4x1xf32>
    %100 = arith.divf %99, %98 : vector<4x1xf32>
    %101 = arith.addf %94, %95 : vector<4x1xf32>
    %cst_32 = arith.constant 1.000000e-07 : f32
    %102 = vector.broadcast %cst_32 : f32 to vector<4x1xf32>
    %103 = arith.addf %101, %102 : vector<4x1xf32>
    %cst_33 = arith.constant 1.000000e+00 : f32
    %104 = vector.broadcast %cst_33 : f32 to vector<4x1xf32>
    %105 = arith.divf %104, %103 : vector<4x1xf32>
    %106 = vector.extract_strided_slice %84 {offsets = [0, 96], sizes = [4, 16], strides = [1, 1]} : vector<4x304xf32> to vector<4x16xf32>
    %107 = arith.mulf %92, %100 : vector<4x1xf32>
    %108 = vector.extract_strided_slice %84 {offsets = [0, 240], sizes = [4, 16], strides = [1, 1]} : vector<4x304xf32> to vector<4x16xf32>
    %109 = vector.broadcast %107 : vector<4x1xf32> to vector<4x16xf32>
    %110 = arith.mulf %109, %108 : vector<4x16xf32>
    %111 = arith.addf %106, %110 : vector<4x16xf32>
    %112 = arith.mulf %93, %100 : vector<4x1xf32>
    %113 = vector.extract_strided_slice %84 {offsets = [0, 256], sizes = [4, 16], strides = [1, 1]} : vector<4x304xf32> to vector<4x16xf32>
    %114 = vector.broadcast %112 : vector<4x1xf32> to vector<4x16xf32>
    %115 = arith.mulf %114, %113 : vector<4x16xf32>
    %116 = arith.addf %111, %115 : vector<4x16xf32>
    %117 = vector.extract_strided_slice %84 {offsets = [0, 208], sizes = [4, 16], strides = [1, 1]} : vector<4x304xf32> to vector<4x16xf32>
    %118 = arith.mulf %94, %105 : vector<4x1xf32>
    %119 = vector.extract_strided_slice %84 {offsets = [0, 272], sizes = [4, 16], strides = [1, 1]} : vector<4x304xf32> to vector<4x16xf32>
    %120 = vector.broadcast %118 : vector<4x1xf32> to vector<4x16xf32>
    %121 = arith.mulf %120, %119 : vector<4x16xf32>
    %122 = arith.addf %117, %121 : vector<4x16xf32>
    %123 = arith.mulf %95, %105 : vector<4x1xf32>
    %124 = vector.extract_strided_slice %84 {offsets = [0, 288], sizes = [4, 16], strides = [1, 1]} : vector<4x304xf32> to vector<4x16xf32>
    %125 = vector.broadcast %123 : vector<4x1xf32> to vector<4x16xf32>
    %126 = arith.mulf %125, %124 : vector<4x16xf32>
    %127 = arith.addf %122, %126 : vector<4x16xf32>
    %128 = vector.extract_strided_slice %84 {offsets = [0, 0], sizes = [4, 96], strides = [1, 1]} : vector<4x304xf32> to vector<4x96xf32>
    %129 = vector.extract_strided_slice %84 {offsets = [0, 112], sizes = [4, 96], strides = [1, 1]} : vector<4x304xf32> to vector<4x96xf32>
    %130 = vector.extract_strided_slice %84 {offsets = [0, 224], sizes = [4, 12], strides = [1, 1]} : vector<4x304xf32> to vector<4x12xf32>
    %131 = tpu.concatenate %128, %116, %129, %127, %130, %14 in 1 : vector<4x96xf32>, vector<4x16xf32>, vector<4x96xf32>, vector<4x16xf32>, vector<4x12xf32>, vector<4x20xf32> -> vector<4x256xf32>
    %132 = arith.mulf %10, %79 : vector<4x256xf32>
    %133 = arith.mulf %13, %131 : vector<4x256xf32>
    %134 = arith.addf %132, %133 : vector<4x256xf32>
    %135 = math.tanh %134 : vector<4x256xf32>
    %136 = tpu.concatenate %135, %134 in 1 : vector<4x256xf32>, vector<4x256xf32> -> vector<4x512xf32>
    %c1_34 = arith.constant 1 : index
    %c0_35 = arith.constant 0 : index
    %c0_36 = arith.constant 0 : index
    %137 = vector.load %arg8[%c1_34, %c0_35, %c0_36] : memref<8x4x512xf32, #tpu.memory_space<vmem>>, vector<1x4x512xf32>
    %138 = vector.shape_cast %137 : vector<1x4x512xf32> to vector<4x512xf32>
    %139 = vector.shape_cast %136 : vector<4x512xf32> to vector<1x4x512xf32>
    tpu.vector_store %arg8[%c1_34, %c0_35, %c0_36], %139 {strides = array<i32>} : memref<8x4x512xf32, #tpu.memory_space<vmem>>, vector<1x4x512xf32>,
    %140 = vector.extract_strided_slice %136 {offsets = [0, 0], sizes = [4, 256], strides = [1, 1]} : vector<4x512xf32> to vector<4x256xf32>
    %141 = vector.extract_strided_slice %136 {offsets = [0, 256], sizes = [4, 256], strides = [1, 1]} : vector<4x512xf32> to vector<4x256xf32>
    %c2 = arith.constant 2 : index
    %c0_37 = arith.constant 0 : index
    %c0_38 = arith.constant 0 : index
    %142 = vector.load %arg1[%c2, %c0_37, %c0_38] : memref<8x4x128xf32, #tpu.memory_space<vmem>>, vector<1x4x128xf32>
    %143 = vector.shape_cast %142 : vector<1x4x128xf32> to vector<4x128xf32>
    %cst_39 = arith.constant dense<0.000000e+00> : vector<4x304xf32>
    %144 = tpu.matmul %143, %3, %cst_39 {dimension_numbers = #tpu.dot_dimension_numbers<[1], [0], [0], [1], [0, 0, 1, 1], [], []>} : vector<4x128xf32>, vector<128x304xf32>, vector<4x304xf32> -> vector<4x304xf32>
    %cst_40 = arith.constant dense<0.000000e+00> : vector<4x304xf32>
    %145 = tpu.matmul %140, %4, %cst_40 {dimension_numbers = #tpu.dot_dimension_numbers<[1], [0], [0], [1], [0, 0, 1, 1], [], []>} : vector<4x256xf32>, vector<256x304xf32>, vector<4x304xf32> -> vector<4x304xf32>
    %146 = arith.addf %144, %145 : vector<4x304xf32>
    %147 = vector.extract_strided_slice %146 {offsets = [0, 236], sizes = [4, 4], strides = [1, 1]} : vector<4x304xf32> to vector<4x4xf32>
    %148 = arith.addf %147, %7 : vector<4x4xf32>
    %149 = arith.negf %148 : vector<4x4xf32>
    %150 = math.exp %149 : vector<4x4xf32>
    %cst_41 = arith.constant 1.000000e+00 : f32
    %151 = vector.broadcast %cst_41 : f32 to vector<4x4xf32>
    %152 = arith.addf %151, %150 : vector<4x4xf32>
    %153 = arith.divf %151, %152 : vector<4x4xf32>
    %154 = vector.extract_strided_slice %153 {offsets = [0, 0], sizes = [4, 1], strides = [1, 1]} : vector<4x4xf32> to vector<4x1xf32>
    %155 = vector.extract_strided_slice %153 {offsets = [0, 1], sizes = [4, 1], strides = [1, 1]} : vector<4x4xf32> to vector<4x1xf32>
    %156 = vector.extract_strided_slice %153 {offsets = [0, 2], sizes = [4, 1], strides = [1, 1]} : vector<4x4xf32> to vector<4x1xf32>
    %157 = vector.extract_strided_slice %153 {offsets = [0, 3], sizes = [4, 1], strides = [1, 1]} : vector<4x4xf32> to vector<4x1xf32>
    %158 = arith.addf %154, %155 : vector<4x1xf32>
    %cst_42 = arith.constant 1.000000e-07 : f32
    %159 = vector.broadcast %cst_42 : f32 to vector<4x1xf32>
    %160 = arith.addf %158, %159 : vector<4x1xf32>
    %cst_43 = arith.constant 1.000000e+00 : f32
    %161 = vector.broadcast %cst_43 : f32 to vector<4x1xf32>
    %162 = arith.divf %161, %160 : vector<4x1xf32>
    %163 = arith.addf %156, %157 : vector<4x1xf32>
    %cst_44 = arith.constant 1.000000e-07 : f32
    %164 = vector.broadcast %cst_44 : f32 to vector<4x1xf32>
    %165 = arith.addf %163, %164 : vector<4x1xf32>
    %cst_45 = arith.constant 1.000000e+00 : f32
    %166 = vector.broadcast %cst_45 : f32 to vector<4x1xf32>
    %167 = arith.divf %166, %165 : vector<4x1xf32>
    %168 = vector.extract_strided_slice %146 {offsets = [0, 96], sizes = [4, 16], strides = [1, 1]} : vector<4x304xf32> to vector<4x16xf32>
    %169 = arith.mulf %154, %162 : vector<4x1xf32>
    %170 = vector.extract_strided_slice %146 {offsets = [0, 240], sizes = [4, 16], strides = [1, 1]} : vector<4x304xf32> to vector<4x16xf32>
    %171 = vector.broadcast %169 : vector<4x1xf32> to vector<4x16xf32>
    %172 = arith.mulf %171, %170 : vector<4x16xf32>
    %173 = arith.addf %168, %172 : vector<4x16xf32>
    %174 = arith.mulf %155, %162 : vector<4x1xf32>
    %175 = vector.extract_strided_slice %146 {offsets = [0, 256], sizes = [4, 16], strides = [1, 1]} : vector<4x304xf32> to vector<4x16xf32>
    %176 = vector.broadcast %174 : vector<4x1xf32> to vector<4x16xf32>
    %177 = arith.mulf %176, %175 : vector<4x16xf32>
    %178 = arith.addf %173, %177 : vector<4x16xf32>
    %179 = vector.extract_strided_slice %146 {offsets = [0, 208], sizes = [4, 16], strides = [1, 1]} : vector<4x304xf32> to vector<4x16xf32>
    %180 = arith.mulf %156, %167 : vector<4x1xf32>
    %181 = vector.extract_strided_slice %146 {offsets = [0, 272], sizes = [4, 16], strides = [1, 1]} : vector<4x304xf32> to vector<4x16xf32>
    %182 = vector.broadcast %180 : vector<4x1xf32> to vector<4x16xf32>
    %183 = arith.mulf %182, %181 : vector<4x16xf32>
    %184 = arith.addf %179, %183 : vector<4x16xf32>
    %185 = arith.mulf %157, %167 : vector<4x1xf32>
    %186 = vector.extract_strided_slice %146 {offsets = [0, 288], sizes = [4, 16], strides = [1, 1]} : vector<4x304xf32> to vector<4x16xf32>
    %187 = vector.broadcast %185 : vector<4x1xf32> to vector<4x16xf32>
    %188 = arith.mulf %187, %186 : vector<4x16xf32>
    %189 = arith.addf %184, %188 : vector<4x16xf32>
    %190 = vector.extract_strided_slice %146 {offsets = [0, 0], sizes = [4, 96], strides = [1, 1]} : vector<4x304xf32> to vector<4x96xf32>
    %191 = vector.extract_strided_slice %146 {offsets = [0, 112], sizes = [4, 96], strides = [1, 1]} : vector<4x304xf32> to vector<4x96xf32>
    %192 = vector.extract_strided_slice %146 {offsets = [0, 224], sizes = [4, 12], strides = [1, 1]} : vector<4x304xf32> to vector<4x12xf32>
    %193 = tpu.concatenate %190, %178, %191, %189, %192, %14 in 1 : vector<4x96xf32>, vector<4x16xf32>, vector<4x96xf32>, vector<4x16xf32>, vector<4x12xf32>, vector<4x20xf32> -> vector<4x256xf32>
    %194 = arith.mulf %10, %141 : vector<4x256xf32>
    %195 = arith.mulf %13, %193 : vector<4x256xf32>
    %196 = arith.addf %194, %195 : vector<4x256xf32>
    %197 = math.tanh %196 : vector<4x256xf32>
    %198 = tpu.concatenate %197, %196 in 1 : vector<4x256xf32>, vector<4x256xf32> -> vector<4x512xf32>
    %c2_46 = arith.constant 2 : index
    %c0_47 = arith.constant 0 : index
    %c0_48 = arith.constant 0 : index
    %199 = vector.load %arg8[%c2_46, %c0_47, %c0_48] : memref<8x4x512xf32, #tpu.memory_space<vmem>>, vector<1x4x512xf32>
    %200 = vector.shape_cast %199 : vector<1x4x512xf32> to vector<4x512xf32>
    %201 = vector.shape_cast %198 : vector<4x512xf32> to vector<1x4x512xf32>
    tpu.vector_store %arg8[%c2_46, %c0_47, %c0_48], %201 {strides = array<i32>} : memref<8x4x512xf32, #tpu.memory_space<vmem>>, vector<1x4x512xf32>,
    %202 = vector.extract_strided_slice %198 {offsets = [0, 0], sizes = [4, 256], strides = [1, 1]} : vector<4x512xf32> to vector<4x256xf32>
    %203 = vector.extract_strided_slice %198 {offsets = [0, 256], sizes = [4, 256], strides = [1, 1]} : vector<4x512xf32> to vector<4x256xf32>
    %c3 = arith.constant 3 : index
    %c0_49 = arith.constant 0 : index
    %c0_50 = arith.constant 0 : index
    %204 = vector.load %arg1[%c3, %c0_49, %c0_50] : memref<8x4x128xf32, #tpu.memory_space<vmem>>, vector<1x4x128xf32>
    %205 = vector.shape_cast %204 : vector<1x4x128xf32> to vector<4x128xf32>
    %cst_51 = arith.constant dense<0.000000e+00> : vector<4x304xf32>
    %206 = tpu.matmul %205, %3, %cst_51 {dimension_numbers = #tpu.dot_dimension_numbers<[1], [0], [0], [1], [0, 0, 1, 1], [], []>} : vector<4x128xf32>, vector<128x304xf32>, vector<4x304xf32> -> vector<4x304xf32>
    %cst_52 = arith.constant dense<0.000000e+00> : vector<4x304xf32>
    %207 = tpu.matmul %202, %4, %cst_52 {dimension_numbers = #tpu.dot_dimension_numbers<[1], [0], [0], [1], [0, 0, 1, 1], [], []>} : vector<4x256xf32>, vector<256x304xf32>, vector<4x304xf32> -> vector<4x304xf32>
    %208 = arith.addf %206, %207 : vector<4x304xf32>
    %209 = vector.extract_strided_slice %208 {offsets = [0, 236], sizes = [4, 4], strides = [1, 1]} : vector<4x304xf32> to vector<4x4xf32>
    %210 = arith.addf %209, %7 : vector<4x4xf32>
    %211 = arith.negf %210 : vector<4x4xf32>
    %212 = math.exp %211 : vector<4x4xf32>
    %cst_53 = arith.constant 1.000000e+00 : f32
    %213 = vector.broadcast %cst_53 : f32 to vector<4x4xf32>
    %214 = arith.addf %213, %212 : vector<4x4xf32>
    %215 = arith.divf %213, %214 : vector<4x4xf32>
    %216 = vector.extract_strided_slice %215 {offsets = [0, 0], sizes = [4, 1], strides = [1, 1]} : vector<4x4xf32> to vector<4x1xf32>
    %217 = vector.extract_strided_slice %215 {offsets = [0, 1], sizes = [4, 1], strides = [1, 1]} : vector<4x4xf32> to vector<4x1xf32>
    %218 = vector.extract_strided_slice %215 {offsets = [0, 2], sizes = [4, 1], strides = [1, 1]} : vector<4x4xf32> to vector<4x1xf32>
    %219 = vector.extract_strided_slice %215 {offsets = [0, 3], sizes = [4, 1], strides = [1, 1]} : vector<4x4xf32> to vector<4x1xf32>
    %220 = arith.addf %216, %217 : vector<4x1xf32>
    %cst_54 = arith.constant 1.000000e-07 : f32
    %221 = vector.broadcast %cst_54 : f32 to vector<4x1xf32>
    %222 = arith.addf %220, %221 : vector<4x1xf32>
    %cst_55 = arith.constant 1.000000e+00 : f32
    %223 = vector.broadcast %cst_55 : f32 to vector<4x1xf32>
    %224 = arith.divf %223, %222 : vector<4x1xf32>
    %225 = arith.addf %218, %219 : vector<4x1xf32>
    %cst_56 = arith.constant 1.000000e-07 : f32
    %226 = vector.broadcast %cst_56 : f32 to vector<4x1xf32>
    %227 = arith.addf %225, %226 : vector<4x1xf32>
    %cst_57 = arith.constant 1.000000e+00 : f32
    %228 = vector.broadcast %cst_57 : f32 to vector<4x1xf32>
    %229 = arith.divf %228, %227 : vector<4x1xf32>
    %230 = vector.extract_strided_slice %208 {offsets = [0, 96], sizes = [4, 16], strides = [1, 1]} : vector<4x304xf32> to vector<4x16xf32>
    %231 = arith.mulf %216, %224 : vector<4x1xf32>
    %232 = vector.extract_strided_slice %208 {offsets = [0, 240], sizes = [4, 16], strides = [1, 1]} : vector<4x304xf32> to vector<4x16xf32>
    %233 = vector.broadcast %231 : vector<4x1xf32> to vector<4x16xf32>
    %234 = arith.mulf %233, %232 : vector<4x16xf32>
    %235 = arith.addf %230, %234 : vector<4x16xf32>
    %236 = arith.mulf %217, %224 : vector<4x1xf32>
    %237 = vector.extract_strided_slice %208 {offsets = [0, 256], sizes = [4, 16], strides = [1, 1]} : vector<4x304xf32> to vector<4x16xf32>
    %238 = vector.broadcast %236 : vector<4x1xf32> to vector<4x16xf32>
    %239 = arith.mulf %238, %237 : vector<4x16xf32>
    %240 = arith.addf %235, %239 : vector<4x16xf32>
    %241 = vector.extract_strided_slice %208 {offsets = [0, 208], sizes = [4, 16], strides = [1, 1]} : vector<4x304xf32> to vector<4x16xf32>
    %242 = arith.mulf %218, %229 : vector<4x1xf32>
    %243 = vector.extract_strided_slice %208 {offsets = [0, 272], sizes = [4, 16], strides = [1, 1]} : vector<4x304xf32> to vector<4x16xf32>
    %244 = vector.broadcast %242 : vector<4x1xf32> to vector<4x16xf32>
    %245 = arith.mulf %244, %243 : vector<4x16xf32>
    %246 = arith.addf %241, %245 : vector<4x16xf32>
    %247 = arith.mulf %219, %229 : vector<4x1xf32>
    %248 = vector.extract_strided_slice %208 {offsets = [0, 288], sizes = [4, 16], strides = [1, 1]} : vector<4x304xf32> to vector<4x16xf32>
    %249 = vector.broadcast %247 : vector<4x1xf32> to vector<4x16xf32>
    %250 = arith.mulf %249, %248 : vector<4x16xf32>
    %251 = arith.addf %246, %250 : vector<4x16xf32>
    %252 = vector.extract_strided_slice %208 {offsets = [0, 0], sizes = [4, 96], strides = [1, 1]} : vector<4x304xf32> to vector<4x96xf32>
    %253 = vector.extract_strided_slice %208 {offsets = [0, 112], sizes = [4, 96], strides = [1, 1]} : vector<4x304xf32> to vector<4x96xf32>
    %254 = vector.extract_strided_slice %208 {offsets = [0, 224], sizes = [4, 12], strides = [1, 1]} : vector<4x304xf32> to vector<4x12xf32>
    %255 = tpu.concatenate %252, %240, %253, %251, %254, %14 in 1 : vector<4x96xf32>, vector<4x16xf32>, vector<4x96xf32>, vector<4x16xf32>, vector<4x12xf32>, vector<4x20xf32> -> vector<4x256xf32>
    %256 = arith.mulf %10, %203 : vector<4x256xf32>
    %257 = arith.mulf %13, %255 : vector<4x256xf32>
    %258 = arith.addf %256, %257 : vector<4x256xf32>
    %259 = math.tanh %258 : vector<4x256xf32>
    %260 = tpu.concatenate %259, %258 in 1 : vector<4x256xf32>, vector<4x256xf32> -> vector<4x512xf32>
    %c3_58 = arith.constant 3 : index
    %c0_59 = arith.constant 0 : index
    %c0_60 = arith.constant 0 : index
    %261 = vector.load %arg8[%c3_58, %c0_59, %c0_60] : memref<8x4x512xf32, #tpu.memory_space<vmem>>, vector<1x4x512xf32>
    %262 = vector.shape_cast %261 : vector<1x4x512xf32> to vector<4x512xf32>
    %263 = vector.shape_cast %260 : vector<4x512xf32> to vector<1x4x512xf32>
    tpu.vector_store %arg8[%c3_58, %c0_59, %c0_60], %263 {strides = array<i32>} : memref<8x4x512xf32, #tpu.memory_space<vmem>>, vector<1x4x512xf32>,
    %264 = vector.extract_strided_slice %260 {offsets = [0, 0], sizes = [4, 256], strides = [1, 1]} : vector<4x512xf32> to vector<4x256xf32>
    %265 = vector.extract_strided_slice %260 {offsets = [0, 256], sizes = [4, 256], strides = [1, 1]} : vector<4x512xf32> to vector<4x256xf32>
    %c4 = arith.constant 4 : index
    %c0_61 = arith.constant 0 : index
    %c0_62 = arith.constant 0 : index
    %266 = vector.load %arg1[%c4, %c0_61, %c0_62] : memref<8x4x128xf32, #tpu.memory_space<vmem>>, vector<1x4x128xf32>
    %267 = vector.shape_cast %266 : vector<1x4x128xf32> to vector<4x128xf32>
    %cst_63 = arith.constant dense<0.000000e+00> : vector<4x304xf32>
    %268 = tpu.matmul %267, %3, %cst_63 {dimension_numbers = #tpu.dot_dimension_numbers<[1], [0], [0], [1], [0, 0, 1, 1], [], []>} : vector<4x128xf32>, vector<128x304xf32>, vector<4x304xf32> -> vector<4x304xf32>
    %cst_64 = arith.constant dense<0.000000e+00> : vector<4x304xf32>
    %269 = tpu.matmul %264, %4, %cst_64 {dimension_numbers = #tpu.dot_dimension_numbers<[1], [0], [0], [1], [0, 0, 1, 1], [], []>} : vector<4x256xf32>, vector<256x304xf32>, vector<4x304xf32> -> vector<4x304xf32>
    %270 = arith.addf %268, %269 : vector<4x304xf32>
    %271 = vector.extract_strided_slice %270 {offsets = [0, 236], sizes = [4, 4], strides = [1, 1]} : vector<4x304xf32> to vector<4x4xf32>
    %272 = arith.addf %271, %7 : vector<4x4xf32>
    %273 = arith.negf %272 : vector<4x4xf32>
    %274 = math.exp %273 : vector<4x4xf32>
    %cst_65 = arith.constant 1.000000e+00 : f32
    %275 = vector.broadcast %cst_65 : f32 to vector<4x4xf32>
    %276 = arith.addf %275, %274 : vector<4x4xf32>
    %277 = arith.divf %275, %276 : vector<4x4xf32>
    %278 = vector.extract_strided_slice %277 {offsets = [0, 0], sizes = [4, 1], strides = [1, 1]} : vector<4x4xf32> to vector<4x1xf32>
    %279 = vector.extract_strided_slice %277 {offsets = [0, 1], sizes = [4, 1], strides = [1, 1]} : vector<4x4xf32> to vector<4x1xf32>
    %280 = vector.extract_strided_slice %277 {offsets = [0, 2], sizes = [4, 1], strides = [1, 1]} : vector<4x4xf32> to vector<4x1xf32>
    %281 = vector.extract_strided_slice %277 {offsets = [0, 3], sizes = [4, 1], strides = [1, 1]} : vector<4x4xf32> to vector<4x1xf32>
    %282 = arith.addf %278, %279 : vector<4x1xf32>
    %cst_66 = arith.constant 1.000000e-07 : f32
    %283 = vector.broadcast %cst_66 : f32 to vector<4x1xf32>
    %284 = arith.addf %282, %283 : vector<4x1xf32>
    %cst_67 = arith.constant 1.000000e+00 : f32
    %285 = vector.broadcast %cst_67 : f32 to vector<4x1xf32>
    %286 = arith.divf %285, %284 : vector<4x1xf32>
    %287 = arith.addf %280, %281 : vector<4x1xf32>
    %cst_68 = arith.constant 1.000000e-07 : f32
    %288 = vector.broadcast %cst_68 : f32 to vector<4x1xf32>
    %289 = arith.addf %287, %288 : vector<4x1xf32>
    %cst_69 = arith.constant 1.000000e+00 : f32
    %290 = vector.broadcast %cst_69 : f32 to vector<4x1xf32>
    %291 = arith.divf %290, %289 : vector<4x1xf32>
    %292 = vector.extract_strided_slice %270 {offsets = [0, 96], sizes = [4, 16], strides = [1, 1]} : vector<4x304xf32> to vector<4x16xf32>
    %293 = arith.mulf %278, %286 : vector<4x1xf32>
    %294 = vector.extract_strided_slice %270 {offsets = [0, 240], sizes = [4, 16], strides = [1, 1]} : vector<4x304xf32> to vector<4x16xf32>
    %295 = vector.broadcast %293 : vector<4x1xf32> to vector<4x16xf32>
    %296 = arith.mulf %295, %294 : vector<4x16xf32>
    %297 = arith.addf %292, %296 : vector<4x16xf32>
    %298 = arith.mulf %279, %286 : vector<4x1xf32>
    %299 = vector.extract_strided_slice %270 {offsets = [0, 256], sizes = [4, 16], strides = [1, 1]} : vector<4x304xf32> to vector<4x16xf32>
    %300 = vector.broadcast %298 : vector<4x1xf32> to vector<4x16xf32>
    %301 = arith.mulf %300, %299 : vector<4x16xf32>
    %302 = arith.addf %297, %301 : vector<4x16xf32>
    %303 = vector.extract_strided_slice %270 {offsets = [0, 208], sizes = [4, 16], strides = [1, 1]} : vector<4x304xf32> to vector<4x16xf32>
    %304 = arith.mulf %280, %291 : vector<4x1xf32>
    %305 = vector.extract_strided_slice %270 {offsets = [0, 272], sizes = [4, 16], strides = [1, 1]} : vector<4x304xf32> to vector<4x16xf32>
    %306 = vector.broadcast %304 : vector<4x1xf32> to vector<4x16xf32>
    %307 = arith.mulf %306, %305 : vector<4x16xf32>
    %308 = arith.addf %303, %307 : vector<4x16xf32>
    %309 = arith.mulf %281, %291 : vector<4x1xf32>
    %310 = vector.extract_strided_slice %270 {offsets = [0, 288], sizes = [4, 16], strides = [1, 1]} : vector<4x304xf32> to vector<4x16xf32>
    %311 = vector.broadcast %309 : vector<4x1xf32> to vector<4x16xf32>
    %312 = arith.mulf %311, %310 : vector<4x16xf32>
    %313 = arith.addf %308, %312 : vector<4x16xf32>
    %314 = vector.extract_strided_slice %270 {offsets = [0, 0], sizes = [4, 96], strides = [1, 1]} : vector<4x304xf32> to vector<4x96xf32>
    %315 = vector.extract_strided_slice %270 {offsets = [0, 112], sizes = [4, 96], strides = [1, 1]} : vector<4x304xf32> to vector<4x96xf32>
    %316 = vector.extract_strided_slice %270 {offsets = [0, 224], sizes = [4, 12], strides = [1, 1]} : vector<4x304xf32> to vector<4x12xf32>
    %317 = tpu.concatenate %314, %302, %315, %313, %316, %14 in 1 : vector<4x96xf32>, vector<4x16xf32>, vector<4x96xf32>, vector<4x16xf32>, vector<4x12xf32>, vector<4x20xf32> -> vector<4x256xf32>
    %318 = arith.mulf %10, %265 : vector<4x256xf32>
    %319 = arith.mulf %13, %317 : vector<4x256xf32>
    %320 = arith.addf %318, %319 : vector<4x256xf32>
    %321 = math.tanh %320 : vector<4x256xf32>
    %322 = tpu.concatenate %321, %320 in 1 : vector<4x256xf32>, vector<4x256xf32> -> vector<4x512xf32>
    %c4_70 = arith.constant 4 : index
    %c0_71 = arith.constant 0 : index
    %c0_72 = arith.constant 0 : index
    %323 = vector.load %arg8[%c4_70, %c0_71, %c0_72] : memref<8x4x512xf32, #tpu.memory_space<vmem>>, vector<1x4x512xf32>
    %324 = vector.shape_cast %323 : vector<1x4x512xf32> to vector<4x512xf32>
    %325 = vector.shape_cast %322 : vector<4x512xf32> to vector<1x4x512xf32>
    tpu.vector_store %arg8[%c4_70, %c0_71, %c0_72], %325 {strides = array<i32>} : memref<8x4x512xf32, #tpu.memory_space<vmem>>, vector<1x4x512xf32>,
    %326 = vector.extract_strided_slice %322 {offsets = [0, 0], sizes = [4, 256], strides = [1, 1]} : vector<4x512xf32> to vector<4x256xf32>
    %327 = vector.extract_strided_slice %322 {offsets = [0, 256], sizes = [4, 256], strides = [1, 1]} : vector<4x512xf32> to vector<4x256xf32>
    %c5 = arith.constant 5 : index
    %c0_73 = arith.constant 0 : index
    %c0_74 = arith.constant 0 : index
    %328 = vector.load %arg1[%c5, %c0_73, %c0_74] : memref<8x4x128xf32, #tpu.memory_space<vmem>>, vector<1x4x128xf32>
    %329 = vector.shape_cast %328 : vector<1x4x128xf32> to vector<4x128xf32>
    %cst_75 = arith.constant dense<0.000000e+00> : vector<4x304xf32>
    %330 = tpu.matmul %329, %3, %cst_75 {dimension_numbers = #tpu.dot_dimension_numbers<[1], [0], [0], [1], [0, 0, 1, 1], [], []>} : vector<4x128xf32>, vector<128x304xf32>, vector<4x304xf32> -> vector<4x304xf32>
    %cst_76 = arith.constant dense<0.000000e+00> : vector<4x304xf32>
    %331 = tpu.matmul %326, %4, %cst_76 {dimension_numbers = #tpu.dot_dimension_numbers<[1], [0], [0], [1], [0, 0, 1, 1], [], []>} : vector<4x256xf32>, vector<256x304xf32>, vector<4x304xf32> -> vector<4x304xf32>
    %332 = arith.addf %330, %331 : vector<4x304xf32>
    %333 = vector.extract_strided_slice %332 {offsets = [0, 236], sizes = [4, 4], strides = [1, 1]} : vector<4x304xf32> to vector<4x4xf32>
    %334 = arith.addf %333, %7 : vector<4x4xf32>
    %335 = arith.negf %334 : vector<4x4xf32>
    %336 = math.exp %335 : vector<4x4xf32>
    %cst_77 = arith.constant 1.000000e+00 : f32
    %337 = vector.broadcast %cst_77 : f32 to vector<4x4xf32>
    %338 = arith.addf %337, %336 : vector<4x4xf32>
    %339 = arith.divf %337, %338 : vector<4x4xf32>
    %340 = vector.extract_strided_slice %339 {offsets = [0, 0], sizes = [4, 1], strides = [1, 1]} : vector<4x4xf32> to vector<4x1xf32>
    %341 = vector.extract_strided_slice %339 {offsets = [0, 1], sizes = [4, 1], strides = [1, 1]} : vector<4x4xf32> to vector<4x1xf32>
    %342 = vector.extract_strided_slice %339 {offsets = [0, 2], sizes = [4, 1], strides = [1, 1]} : vector<4x4xf32> to vector<4x1xf32>
    %343 = vector.extract_strided_slice %339 {offsets = [0, 3], sizes = [4, 1], strides = [1, 1]} : vector<4x4xf32> to vector<4x1xf32>
    %344 = arith.addf %340, %341 : vector<4x1xf32>
    %cst_78 = arith.constant 1.000000e-07 : f32
    %345 = vector.broadcast %cst_78 : f32 to vector<4x1xf32>
    %346 = arith.addf %344, %345 : vector<4x1xf32>
    %cst_79 = arith.constant 1.000000e+00 : f32
    %347 = vector.broadcast %cst_79 : f32 to vector<4x1xf32>
    %348 = arith.divf %347, %346 : vector<4x1xf32>
    %349 = arith.addf %342, %343 : vector<4x1xf32>
    %cst_80 = arith.constant 1.000000e-07 : f32
    %350 = vector.broadcast %cst_80 : f32 to vector<4x1xf32>
    %351 = arith.addf %349, %350 : vector<4x1xf32>
    %cst_81 = arith.constant 1.000000e+00 : f32
    %352 = vector.broadcast %cst_81 : f32 to vector<4x1xf32>
    %353 = arith.divf %352, %351 : vector<4x1xf32>
    %354 = vector.extract_strided_slice %332 {offsets = [0, 96], sizes = [4, 16], strides = [1, 1]} : vector<4x304xf32> to vector<4x16xf32>
    %355 = arith.mulf %340, %348 : vector<4x1xf32>
    %356 = vector.extract_strided_slice %332 {offsets = [0, 240], sizes = [4, 16], strides = [1, 1]} : vector<4x304xf32> to vector<4x16xf32>
    %357 = vector.broadcast %355 : vector<4x1xf32> to vector<4x16xf32>
    %358 = arith.mulf %357, %356 : vector<4x16xf32>
    %359 = arith.addf %354, %358 : vector<4x16xf32>
    %360 = arith.mulf %341, %348 : vector<4x1xf32>
    %361 = vector.extract_strided_slice %332 {offsets = [0, 256], sizes = [4, 16], strides = [1, 1]} : vector<4x304xf32> to vector<4x16xf32>
    %362 = vector.broadcast %360 : vector<4x1xf32> to vector<4x16xf32>
    %363 = arith.mulf %362, %361 : vector<4x16xf32>
    %364 = arith.addf %359, %363 : vector<4x16xf32>
    %365 = vector.extract_strided_slice %332 {offsets = [0, 208], sizes = [4, 16], strides = [1, 1]} : vector<4x304xf32> to vector<4x16xf32>
    %366 = arith.mulf %342, %353 : vector<4x1xf32>
    %367 = vector.extract_strided_slice %332 {offsets = [0, 272], sizes = [4, 16], strides = [1, 1]} : vector<4x304xf32> to vector<4x16xf32>
    %368 = vector.broadcast %366 : vector<4x1xf32> to vector<4x16xf32>
    %369 = arith.mulf %368, %367 : vector<4x16xf32>
    %370 = arith.addf %365, %369 : vector<4x16xf32>
    %371 = arith.mulf %343, %353 : vector<4x1xf32>
    %372 = vector.extract_strided_slice %332 {offsets = [0, 288], sizes = [4, 16], strides = [1, 1]} : vector<4x304xf32> to vector<4x16xf32>
    %373 = vector.broadcast %371 : vector<4x1xf32> to vector<4x16xf32>
    %374 = arith.mulf %373, %372 : vector<4x16xf32>
    %375 = arith.addf %370, %374 : vector<4x16xf32>
    %376 = vector.extract_strided_slice %332 {offsets = [0, 0], sizes = [4, 96], strides = [1, 1]} : vector<4x304xf32> to vector<4x96xf32>
    %377 = vector.extract_strided_slice %332 {offsets = [0, 112], sizes = [4, 96], strides = [1, 1]} : vector<4x304xf32> to vector<4x96xf32>
    %378 = vector.extract_strided_slice %332 {offsets = [0, 224], sizes = [4, 12], strides = [1, 1]} : vector<4x304xf32> to vector<4x12xf32>
    %379 = tpu.concatenate %376, %364, %377, %375, %378, %14 in 1 : vector<4x96xf32>, vector<4x16xf32>, vector<4x96xf32>, vector<4x16xf32>, vector<4x12xf32>, vector<4x20xf32> -> vector<4x256xf32>
    %380 = arith.mulf %10, %327 : vector<4x256xf32>
    %381 = arith.mulf %13, %379 : vector<4x256xf32>
    %382 = arith.addf %380, %381 : vector<4x256xf32>
    %383 = math.tanh %382 : vector<4x256xf32>
    %384 = tpu.concatenate %383, %382 in 1 : vector<4x256xf32>, vector<4x256xf32> -> vector<4x512xf32>
    %c5_82 = arith.constant 5 : index
    %c0_83 = arith.constant 0 : index
    %c0_84 = arith.constant 0 : index
    %385 = vector.load %arg8[%c5_82, %c0_83, %c0_84] : memref<8x4x512xf32, #tpu.memory_space<vmem>>, vector<1x4x512xf32>
    %386 = vector.shape_cast %385 : vector<1x4x512xf32> to vector<4x512xf32>
    %387 = vector.shape_cast %384 : vector<4x512xf32> to vector<1x4x512xf32>
    tpu.vector_store %arg8[%c5_82, %c0_83, %c0_84], %387 {strides = array<i32>} : memref<8x4x512xf32, #tpu.memory_space<vmem>>, vector<1x4x512xf32>,
    %388 = vector.extract_strided_slice %384 {offsets = [0, 0], sizes = [4, 256], strides = [1, 1]} : vector<4x512xf32> to vector<4x256xf32>
    %389 = vector.extract_strided_slice %384 {offsets = [0, 256], sizes = [4, 256], strides = [1, 1]} : vector<4x512xf32> to vector<4x256xf32>
    %c6 = arith.constant 6 : index
    %c0_85 = arith.constant 0 : index
    %c0_86 = arith.constant 0 : index
    %390 = vector.load %arg1[%c6, %c0_85, %c0_86] : memref<8x4x128xf32, #tpu.memory_space<vmem>>, vector<1x4x128xf32>
    %391 = vector.shape_cast %390 : vector<1x4x128xf32> to vector<4x128xf32>
    %cst_87 = arith.constant dense<0.000000e+00> : vector<4x304xf32>
    %392 = tpu.matmul %391, %3, %cst_87 {dimension_numbers = #tpu.dot_dimension_numbers<[1], [0], [0], [1], [0, 0, 1, 1], [], []>} : vector<4x128xf32>, vector<128x304xf32>, vector<4x304xf32> -> vector<4x304xf32>
    %cst_88 = arith.constant dense<0.000000e+00> : vector<4x304xf32>
    %393 = tpu.matmul %388, %4, %cst_88 {dimension_numbers = #tpu.dot_dimension_numbers<[1], [0], [0], [1], [0, 0, 1, 1], [], []>} : vector<4x256xf32>, vector<256x304xf32>, vector<4x304xf32> -> vector<4x304xf32>
    %394 = arith.addf %392, %393 : vector<4x304xf32>
    %395 = vector.extract_strided_slice %394 {offsets = [0, 236], sizes = [4, 4], strides = [1, 1]} : vector<4x304xf32> to vector<4x4xf32>
    %396 = arith.addf %395, %7 : vector<4x4xf32>
    %397 = arith.negf %396 : vector<4x4xf32>
    %398 = math.exp %397 : vector<4x4xf32>
    %cst_89 = arith.constant 1.000000e+00 : f32
    %399 = vector.broadcast %cst_89 : f32 to vector<4x4xf32>
    %400 = arith.addf %399, %398 : vector<4x4xf32>
    %401 = arith.divf %399, %400 : vector<4x4xf32>
    %402 = vector.extract_strided_slice %401 {offsets = [0, 0], sizes = [4, 1], strides = [1, 1]} : vector<4x4xf32> to vector<4x1xf32>
    %403 = vector.extract_strided_slice %401 {offsets = [0, 1], sizes = [4, 1], strides = [1, 1]} : vector<4x4xf32> to vector<4x1xf32>
    %404 = vector.extract_strided_slice %401 {offsets = [0, 2], sizes = [4, 1], strides = [1, 1]} : vector<4x4xf32> to vector<4x1xf32>
    %405 = vector.extract_strided_slice %401 {offsets = [0, 3], sizes = [4, 1], strides = [1, 1]} : vector<4x4xf32> to vector<4x1xf32>
    %406 = arith.addf %402, %403 : vector<4x1xf32>
    %cst_90 = arith.constant 1.000000e-07 : f32
    %407 = vector.broadcast %cst_90 : f32 to vector<4x1xf32>
    %408 = arith.addf %406, %407 : vector<4x1xf32>
    %cst_91 = arith.constant 1.000000e+00 : f32
    %409 = vector.broadcast %cst_91 : f32 to vector<4x1xf32>
    %410 = arith.divf %409, %408 : vector<4x1xf32>
    %411 = arith.addf %404, %405 : vector<4x1xf32>
    %cst_92 = arith.constant 1.000000e-07 : f32
    %412 = vector.broadcast %cst_92 : f32 to vector<4x1xf32>
    %413 = arith.addf %411, %412 : vector<4x1xf32>
    %cst_93 = arith.constant 1.000000e+00 : f32
    %414 = vector.broadcast %cst_93 : f32 to vector<4x1xf32>
    %415 = arith.divf %414, %413 : vector<4x1xf32>
    %416 = vector.extract_strided_slice %394 {offsets = [0, 96], sizes = [4, 16], strides = [1, 1]} : vector<4x304xf32> to vector<4x16xf32>
    %417 = arith.mulf %402, %410 : vector<4x1xf32>
    %418 = vector.extract_strided_slice %394 {offsets = [0, 240], sizes = [4, 16], strides = [1, 1]} : vector<4x304xf32> to vector<4x16xf32>
    %419 = vector.broadcast %417 : vector<4x1xf32> to vector<4x16xf32>
    %420 = arith.mulf %419, %418 : vector<4x16xf32>
    %421 = arith.addf %416, %420 : vector<4x16xf32>
    %422 = arith.mulf %403, %410 : vector<4x1xf32>
    %423 = vector.extract_strided_slice %394 {offsets = [0, 256], sizes = [4, 16], strides = [1, 1]} : vector<4x304xf32> to vector<4x16xf32>
    %424 = vector.broadcast %422 : vector<4x1xf32> to vector<4x16xf32>
    %425 = arith.mulf %424, %423 : vector<4x16xf32>
    %426 = arith.addf %421, %425 : vector<4x16xf32>
    %427 = vector.extract_strided_slice %394 {offsets = [0, 208], sizes = [4, 16], strides = [1, 1]} : vector<4x304xf32> to vector<4x16xf32>
    %428 = arith.mulf %404, %415 : vector<4x1xf32>
    %429 = vector.extract_strided_slice %394 {offsets = [0, 272], sizes = [4, 16], strides = [1, 1]} : vector<4x304xf32> to vector<4x16xf32>
    %430 = vector.broadcast %428 : vector<4x1xf32> to vector<4x16xf32>
    %431 = arith.mulf %430, %429 : vector<4x16xf32>
    %432 = arith.addf %427, %431 : vector<4x16xf32>
    %433 = arith.mulf %405, %415 : vector<4x1xf32>
    %434 = vector.extract_strided_slice %394 {offsets = [0, 288], sizes = [4, 16], strides = [1, 1]} : vector<4x304xf32> to vector<4x16xf32>
    %435 = vector.broadcast %433 : vector<4x1xf32> to vector<4x16xf32>
    %436 = arith.mulf %435, %434 : vector<4x16xf32>
    %437 = arith.addf %432, %436 : vector<4x16xf32>
    %438 = vector.extract_strided_slice %394 {offsets = [0, 0], sizes = [4, 96], strides = [1, 1]} : vector<4x304xf32> to vector<4x96xf32>
    %439 = vector.extract_strided_slice %394 {offsets = [0, 112], sizes = [4, 96], strides = [1, 1]} : vector<4x304xf32> to vector<4x96xf32>
    %440 = vector.extract_strided_slice %394 {offsets = [0, 224], sizes = [4, 12], strides = [1, 1]} : vector<4x304xf32> to vector<4x12xf32>
    %441 = tpu.concatenate %438, %426, %439, %437, %440, %14 in 1 : vector<4x96xf32>, vector<4x16xf32>, vector<4x96xf32>, vector<4x16xf32>, vector<4x12xf32>, vector<4x20xf32> -> vector<4x256xf32>
    %442 = arith.mulf %10, %389 : vector<4x256xf32>
    %443 = arith.mulf %13, %441 : vector<4x256xf32>
    %444 = arith.addf %442, %443 : vector<4x256xf32>
    %445 = math.tanh %444 : vector<4x256xf32>
    %446 = tpu.concatenate %445, %444 in 1 : vector<4x256xf32>, vector<4x256xf32> -> vector<4x512xf32>
    %c6_94 = arith.constant 6 : index
    %c0_95 = arith.constant 0 : index
    %c0_96 = arith.constant 0 : index
    %447 = vector.load %arg8[%c6_94, %c0_95, %c0_96] : memref<8x4x512xf32, #tpu.memory_space<vmem>>, vector<1x4x512xf32>
    %448 = vector.shape_cast %447 : vector<1x4x512xf32> to vector<4x512xf32>
    %449 = vector.shape_cast %446 : vector<4x512xf32> to vector<1x4x512xf32>
    tpu.vector_store %arg8[%c6_94, %c0_95, %c0_96], %449 {strides = array<i32>} : memref<8x4x512xf32, #tpu.memory_space<vmem>>, vector<1x4x512xf32>,
    %450 = vector.extract_strided_slice %446 {offsets = [0, 0], sizes = [4, 256], strides = [1, 1]} : vector<4x512xf32> to vector<4x256xf32>
    %451 = vector.extract_strided_slice %446 {offsets = [0, 256], sizes = [4, 256], strides = [1, 1]} : vector<4x512xf32> to vector<4x256xf32>
    %c7 = arith.constant 7 : index
    %c0_97 = arith.constant 0 : index
    %c0_98 = arith.constant 0 : index
    %452 = vector.load %arg1[%c7, %c0_97, %c0_98] : memref<8x4x128xf32, #tpu.memory_space<vmem>>, vector<1x4x128xf32>
    %453 = vector.shape_cast %452 : vector<1x4x128xf32> to vector<4x128xf32>
    %cst_99 = arith.constant dense<0.000000e+00> : vector<4x304xf32>
    %454 = tpu.matmul %453, %3, %cst_99 {dimension_numbers = #tpu.dot_dimension_numbers<[1], [0], [0], [1], [0, 0, 1, 1], [], []>} : vector<4x128xf32>, vector<128x304xf32>, vector<4x304xf32> -> vector<4x304xf32>
    %cst_100 = arith.constant dense<0.000000e+00> : vector<4x304xf32>
    %455 = tpu.matmul %450, %4, %cst_100 {dimension_numbers = #tpu.dot_dimension_numbers<[1], [0], [0], [1], [0, 0, 1, 1], [], []>} : vector<4x256xf32>, vector<256x304xf32>, vector<4x304xf32> -> vector<4x304xf32>
    %456 = arith.addf %454, %455 : vector<4x304xf32>
    %457 = vector.extract_strided_slice %456 {offsets = [0, 236], sizes = [4, 4], strides = [1, 1]} : vector<4x304xf32> to vector<4x4xf32>
    %458 = arith.addf %457, %7 : vector<4x4xf32>
    %459 = arith.negf %458 : vector<4x4xf32>
    %460 = math.exp %459 : vector<4x4xf32>
    %cst_101 = arith.constant 1.000000e+00 : f32
    %461 = vector.broadcast %cst_101 : f32 to vector<4x4xf32>
    %462 = arith.addf %461, %460 : vector<4x4xf32>
    %463 = arith.divf %461, %462 : vector<4x4xf32>
    %464 = vector.extract_strided_slice %463 {offsets = [0, 0], sizes = [4, 1], strides = [1, 1]} : vector<4x4xf32> to vector<4x1xf32>
    %465 = vector.extract_strided_slice %463 {offsets = [0, 1], sizes = [4, 1], strides = [1, 1]} : vector<4x4xf32> to vector<4x1xf32>
    %466 = vector.extract_strided_slice %463 {offsets = [0, 2], sizes = [4, 1], strides = [1, 1]} : vector<4x4xf32> to vector<4x1xf32>
    %467 = vector.extract_strided_slice %463 {offsets = [0, 3], sizes = [4, 1], strides = [1, 1]} : vector<4x4xf32> to vector<4x1xf32>
    %468 = arith.addf %464, %465 : vector<4x1xf32>
    %cst_102 = arith.constant 1.000000e-07 : f32
    %469 = vector.broadcast %cst_102 : f32 to vector<4x1xf32>
    %470 = arith.addf %468, %469 : vector<4x1xf32>
    %cst_103 = arith.constant 1.000000e+00 : f32
    %471 = vector.broadcast %cst_103 : f32 to vector<4x1xf32>
    %472 = arith.divf %471, %470 : vector<4x1xf32>
    %473 = arith.addf %466, %467 : vector<4x1xf32>
    %cst_104 = arith.constant 1.000000e-07 : f32
    %474 = vector.broadcast %cst_104 : f32 to vector<4x1xf32>
    %475 = arith.addf %473, %474 : vector<4x1xf32>
    %cst_105 = arith.constant 1.000000e+00 : f32
    %476 = vector.broadcast %cst_105 : f32 to vector<4x1xf32>
    %477 = arith.divf %476, %475 : vector<4x1xf32>
    %478 = vector.extract_strided_slice %456 {offsets = [0, 96], sizes = [4, 16], strides = [1, 1]} : vector<4x304xf32> to vector<4x16xf32>
    %479 = arith.mulf %464, %472 : vector<4x1xf32>
    %480 = vector.extract_strided_slice %456 {offsets = [0, 240], sizes = [4, 16], strides = [1, 1]} : vector<4x304xf32> to vector<4x16xf32>
    %481 = vector.broadcast %479 : vector<4x1xf32> to vector<4x16xf32>
    %482 = arith.mulf %481, %480 : vector<4x16xf32>
    %483 = arith.addf %478, %482 : vector<4x16xf32>
    %484 = arith.mulf %465, %472 : vector<4x1xf32>
    %485 = vector.extract_strided_slice %456 {offsets = [0, 256], sizes = [4, 16], strides = [1, 1]} : vector<4x304xf32> to vector<4x16xf32>
    %486 = vector.broadcast %484 : vector<4x1xf32> to vector<4x16xf32>
    %487 = arith.mulf %486, %485 : vector<4x16xf32>
    %488 = arith.addf %483, %487 : vector<4x16xf32>
    %489 = vector.extract_strided_slice %456 {offsets = [0, 208], sizes = [4, 16], strides = [1, 1]} : vector<4x304xf32> to vector<4x16xf32>
    %490 = arith.mulf %466, %477 : vector<4x1xf32>
    %491 = vector.extract_strided_slice %456 {offsets = [0, 272], sizes = [4, 16], strides = [1, 1]} : vector<4x304xf32> to vector<4x16xf32>
    %492 = vector.broadcast %490 : vector<4x1xf32> to vector<4x16xf32>
    %493 = arith.mulf %492, %491 : vector<4x16xf32>
    %494 = arith.addf %489, %493 : vector<4x16xf32>
    %495 = arith.mulf %467, %477 : vector<4x1xf32>
    %496 = vector.extract_strided_slice %456 {offsets = [0, 288], sizes = [4, 16], strides = [1, 1]} : vector<4x304xf32> to vector<4x16xf32>
    %497 = vector.broadcast %495 : vector<4x1xf32> to vector<4x16xf32>
    %498 = arith.mulf %497, %496 : vector<4x16xf32>
    %499 = arith.addf %494, %498 : vector<4x16xf32>
    %500 = vector.extract_strided_slice %456 {offsets = [0, 0], sizes = [4, 96], strides = [1, 1]} : vector<4x304xf32> to vector<4x96xf32>
    %501 = vector.extract_strided_slice %456 {offsets = [0, 112], sizes = [4, 96], strides = [1, 1]} : vector<4x304xf32> to vector<4x96xf32>
    %502 = vector.extract_strided_slice %456 {offsets = [0, 224], sizes = [4, 12], strides = [1, 1]} : vector<4x304xf32> to vector<4x12xf32>
    %503 = tpu.concatenate %500, %488, %501, %499, %502, %14 in 1 : vector<4x96xf32>, vector<4x16xf32>, vector<4x96xf32>, vector<4x16xf32>, vector<4x12xf32>, vector<4x20xf32> -> vector<4x256xf32>
    %504 = arith.mulf %10, %451 : vector<4x256xf32>
    %505 = arith.mulf %13, %503 : vector<4x256xf32>
    %506 = arith.addf %504, %505 : vector<4x256xf32>
    %507 = math.tanh %506 : vector<4x256xf32>
    %508 = tpu.concatenate %507, %506 in 1 : vector<4x256xf32>, vector<4x256xf32> -> vector<4x512xf32>
    %c7_106 = arith.constant 7 : index
    %c0_107 = arith.constant 0 : index
    %c0_108 = arith.constant 0 : index
    %509 = vector.load %arg8[%c7_106, %c0_107, %c0_108] : memref<8x4x512xf32, #tpu.memory_space<vmem>>, vector<1x4x512xf32>
    %510 = vector.shape_cast %509 : vector<1x4x512xf32> to vector<4x512xf32>
    %511 = vector.shape_cast %508 : vector<4x512xf32> to vector<1x4x512xf32>
    tpu.vector_store %arg8[%c7_106, %c0_107, %c0_108], %511 {strides = array<i32>} : memref<8x4x512xf32, #tpu.memory_space<vmem>>, vector<1x4x512xf32>,
    %c0_109 = arith.constant 0 : index
    %c0_110 = arith.constant 0 : index
    %512 = vector.load %arg9[%c0_109, %c0_110] : memref<4x512xf32, #tpu.memory_space<vmem>>, vector<4x512xf32>
    tpu.vector_store %arg9[%c0_109, %c0_110], %508 {strides = array<i32>} : memref<4x512xf32, #tpu.memory_space<vmem>>, vector<4x512xf32>,
    return
  }
  func.func @transform_0(%arg0: i32) -> (i32, i32, i32) {
    %c0_i32 = arith.constant 0 : i32
    %c0_i32_0 = arith.constant 0 : i32
    %c0_i32_1 = arith.constant 0 : i32
    return %arg0, %c0_i32, %c0_i32_0 : i32, i32, i32
  }
  func.func @transform_1(%arg0: i32) -> (i32, i32) {
    %c0_i32 = arith.constant 0 : i32
    %c0_i32_0 = arith.constant 0 : i32
    %c0_i32_1 = arith.constant 0 : i32
    return %c0_i32, %c0_i32_0 : i32, i32
  }
  func.func @transform_2(%arg0: i32) -> (i32, i32) {
    %c0_i32 = arith.constant 0 : i32
    %c0_i32_0 = arith.constant 0 : i32
    %c0_i32_1 = arith.constant 0 : i32
    return %c0_i32, %c0_i32_0 : i32, i32
  }
  func.func @transform_3(%arg0: i32) -> (i32, i32) {
    %c0_i32 = arith.constant 0 : i32
    %c0_i32_0 = arith.constant 0 : i32
    %c0_i32_1 = arith.constant 0 : i32
    return %c0_i32, %c0_i32_0 : i32, i32
  }
  func.func @transform_4(%arg0: i32) -> (i32, i32) {
    %c0_i32 = arith.constant 0 : i32
    %c0_i32_0 = arith.constant 0 : i32
    %c0_i32_1 = arith.constant 0 : i32
    return %c0_i32, %c0_i32_0 : i32, i32
  }
  func.func @transform_5(%arg0: i32) -> (i32, i32) {
    %c0_i32 = arith.constant 0 : i32
    %c0_i32_0 = arith.constant 0 : i32
    %c0_i32_1 = arith.constant 0 : i32
    return %c0_i32, %c0_i32_0 : i32, i32
  }
  func.func @transform_6(%arg0: i32) -> (i32, i32) {
    %c0_i32 = arith.constant 0 : i32
    %c0_i32_0 = arith.constant 0 : i32
    %c0_i32_1 = arith.constant 0 : i32
    return %c0_i32, %c0_i32_0 : i32, i32
  }
  func.func @transform_7(%arg0: i32) -> (i32, i32, i32) {
    %c0_i32 = arith.constant 0 : i32
    %c0_i32_0 = arith.constant 0 : i32
    %c0_i32_1 = arith.constant 0 : i32
    return %arg0, %c0_i32, %c0_i32_0 : i32, i32, i32
  }
}

</mosaic_0001>

<llo_original>
// kernel: tpu_custom_call.1
$region0: #{tpu_custom_call.1}
  #allocation0 [shape = 'u32[]', space=smem, size = 0x4, offset = 0x4, fixed_abs, tag = 'smem constant byte address 0x4 - core index']
  #allocation1 [shape = 'u32[144,128]{1,0:T(1,128)}', space=vmem, size = 0x12000, scoped, tag = 'internal scratch']
  #allocation2 [shape = 'f32[4,512]{1,0:T(4,128)}', space=vmem, size = 0x2000, scoped, tag = 'scratch operand']
  %s0 = inlined_call_operand.vmem [shape: f32[8,4,128], index: 0, kind: input, shape index: {}]
  %s1 = inlined_call_operand.vmem [shape: f32[4,512], index: 1, kind: input, shape index: {}]
  %s2 = inlined_call_operand.vmem [shape: f32[128,304], index: 2, kind: input, shape index: {}]
  %s3 = inlined_call_operand.vmem [shape: f32[256,304], index: 3, kind: input, shape index: {}]
  %s4 = inlined_call_operand.vmem [shape: f32[1,4], index: 4, kind: input, shape index: {}]
  %s5 = inlined_call_operand.vmem [shape: f32[1,256], index: 5, kind: input, shape index: {}]
  %s6 = inlined_call_operand.vmem [shape: f32[1,256], index: 6, kind: input, shape index: {}]
  %s7 = inlined_call_operand.hbm [shape: f32[8,4,512], index: 7, kind: output, shape index: {}]
  %s8 = sld [smem:[#allocation0]]
  $region42: #{tpu_custom_call.1} parent=0
    _
  %s10 = ssub.s32 1, %s8
  %s11 = scalar_select 0, %s10, %s8
  $region1: #{tpu_custom_call.1} parent=0
    #allocation3 [shape = 'u8[65536]{0}', space=vmem, size = 0x10000, scoped, tag = 'output window, operand 0, single buffered']
    #allocation4 [shape = 's32[1]{0}', space=sflag, size = 0x4, scoped, tag = 'scoped memory for tpu_custom_call.1']
    %12 = vsyncpa [#allocation4], 0
    // Predicated region
    $region2: #{tpu_custom_call.1} parent=1 // pred_check
      _
    $region3: #{tpu_custom_call.1} parent=1 // pred_check_branch
      %14 = sbr.rel (0) target = $region5
    $region4: #{tpu_custom_call.1} parent=1 // pred_region
      _
    $region5: #{tpu_custom_call.1} parent=1 // pred_fallthru
      _
    // Predicated region
    $region6: #{tpu_custom_call.1} parent=1 // pred_check
      _
    $region7: #{tpu_custom_call.1} parent=1 // pred_check_branch
      %16 = sbr.rel (0) target = $region9
    $region8: #{tpu_custom_call.1} parent=1 // pred_region
      _
    $region9: #{tpu_custom_call.1} parent=1 // pred_fallthru
      _
    // Predicated region
    $region10: #{tpu_custom_call.1} parent=1 // pred_check
      _
    $region11: #{tpu_custom_call.1} parent=1 // pred_check_branch
      %18 = sbr.rel (0) target = $region13
    $region12: #{tpu_custom_call.1} parent=1 // pred_region
      _
    $region13: #{tpu_custom_call.1} parent=1 // pred_fallthru
      _
    // Predicated region
    $region14: #{tpu_custom_call.1} parent=1 // pred_check
      _
    $region15: #{tpu_custom_call.1} parent=1 // pred_check_branch
      %20 = sbr.rel (0) target = $region17
    $region16: #{tpu_custom_call.1} parent=1 // pred_region
      _
    $region17: #{tpu_custom_call.1} parent=1 // pred_fallthru
      _
    // Predicated region
    $region18: #{tpu_custom_call.1} parent=1 // pred_check
      _
    $region19: #{tpu_custom_call.1} parent=1 // pred_check_branch
      %22 = sbr.rel (0) target = $region21
    $region20: #{tpu_custom_call.1} parent=1 // pred_region
      _
    $region21: #{tpu_custom_call.1} parent=1 // pred_fallthru
      _
    // Predicated region
    $region22: #{tpu_custom_call.1} parent=1 // pred_check
      _
    $region23: #{tpu_custom_call.1} parent=1 // pred_check_branch
      %24 = sbr.rel (0) target = $region25
    $region24: #{tpu_custom_call.1} parent=1 // pred_region
      _
    $region25: #{tpu_custom_call.1} parent=1 // pred_fallthru
      _
    // Predicated region
    $region26: #{tpu_custom_call.1} parent=1 // pred_check
      _
    $region27: #{tpu_custom_call.1} parent=1 // pred_check_branch
      %26 = sbr.rel (0) target = $region29
    $region28: #{tpu_custom_call.1} parent=1 // pred_region
      _
    $region29: #{tpu_custom_call.1} parent=1 // pred_fallthru
      _
    %p27 = scmp.eq.s32.totalorder 0, 0
    // Predicated region
    $region30: #{tpu_custom_call.1} parent=1 // pred_check
      %p28 = pneg %p27
    $region31: #{tpu_custom_call.1} parent=1 // pred_check_branch
      %30 = sbr.rel (%p28) target = $region33
    $region32: #{tpu_custom_call.1} parent=1 // pred_region
      %v31 = vld [vmem:[%s1] sm:$0xff]
      %v32 = vld [vmem:[%s1 + $0x8] sm:$0xff]
      %33 = vst [vmem:[#allocation2] sm:$0xff] %v31
      %34 = vst [vmem:[#allocation2 + $0x8] sm:$0xff] %v32
    $region33: #{tpu_custom_call.1} parent=1 // pred_fallthru
      _
    %v35 = vld [vmem:[%s2] sm:$0xff]
    %v36 = vld [vmem:[%s2 + $0x8] sm:$0xff]
    %v37 = vld [vmem:[%s2 + $0x10] sm:$0xff]
    %v38 = vld [vmem:[%s2 + $0x18] sm:$0xff]
    %v39 = vld [vmem:[%s2 + $0x20] sm:$0xff]
    %v40 = vld [vmem:[%s2 + $0x28] sm:$0xff]
    %v41 = vld [vmem:[%s2 + $0x30] sm:$0xff]
    %v42 = vld [vmem:[%s2 + $0x38] sm:$0xff]
    %v43 = vld [vmem:[%s2 + $0x40] sm:$0xff]
    %v44 = vld [vmem:[%s2 + $0x48] sm:$0xff]
    %v45 = vld [vmem:[%s2 + $0x50] sm:$0xff]
    %v46 = vld [vmem:[%s2 + $0x58] sm:$0xff]
    %v47 = vld [vmem:[%s2 + $0x60] sm:$0xff]
    %v48 = vld [vmem:[%s2 + $0x68] sm:$0xff]
    %v49 = vld [vmem:[%s2 + $0x70] sm:$0xff]
    %v50 = vld [vmem:[%s2 + $0x78] sm:$0xff]
    %v51 = vld [vmem:[%s2 + $0x80] sm:$0xff]
    %v52 = vld [vmem:[%s2 + $0x88] sm:$0xff]
    %v53 = vld [vmem:[%s2 + $0x90] sm:$0xff]
    %v54 = vld [vmem:[%s2 + $0x98] sm:$0xff]
    %v55 = vld [vmem:[%s2 + $0xa0] sm:$0xff]
    %v56 = vld [vmem:[%s2 + $0xa8] sm:$0xff]
    %v57 = vld [vmem:[%s2 + $0xb0] sm:$0xff]
    %v58 = vld [vmem:[%s2 + $0xb8] sm:$0xff]
    %v59 = vld [vmem:[%s2 + $0xc0] sm:$0xff]
    %v60 = vld [vmem:[%s2 + $0xc8] sm:$0xff]
    %v61 = vld [vmem:[%s2 + $0xd0] sm:$0xff]
    %v62 = vld [vmem:[%s2 + $0xd8] sm:$0xff]
    %v63 = vld [vmem:[%s2 + $0xe0] sm:$0xff]
    %v64 = vld [vmem:[%s2 + $0xe8] sm:$0xff]
    %v65 = vld [vmem:[%s2 + $0xf0] sm:$0xff]
    %v66 = vld [vmem:[%s2 + $0xf8] sm:$0xff]
    %v67 = vld [vmem:[%s2 + $0x100] sm:$0xff]
    %v68 = vld [vmem:[%s2 + $0x108] sm:$0xff]
    %v69 = vld [vmem:[%s2 + $0x110] sm:$0xff]
    %v70 = vld [vmem:[%s2 + $0x118] sm:$0xff]
    %v71 = vld [vmem:[%s2 + $0x120] sm:$0xff]
    %v72 = vld [vmem:[%s2 + $0x128] sm:$0xff]
    %v73 = vld [vmem:[%s2 + $0x130] sm:$0xff]
    %v74 = vld [vmem:[%s2 + $0x138] sm:$0xff]
    %v75 = vld [vmem:[%s2 + $0x140] sm:$0xff]
    %v76 = vld [vmem:[%s2 + $0x148] sm:$0xff]
    %v77 = vld [vmem:[%s2 + $0x150] sm:$0xff]
    %v78 = vld [vmem:[%s2 + $0x158] sm:$0xff]
    %v79 = vld [vmem:[%s2 + $0x160] sm:$0xff]
    %v80 = vld [vmem:[%s2 + $0x168] sm:$0xff]
    %v81 = vld [vmem:[%s2 + $0x170] sm:$0xff]
    %v82 = vld [vmem:[%s2 + $0x178] sm:$0xff]
    %v83 = vld [vmem:[%s3] sm:$0xff]
    %v84 = vld [vmem:[%s3 + $0x8] sm:$0xff]
    %v85 = vld [vmem:[%s3 + $0x10] sm:$0xff]
    %v86 = vld [vmem:[%s3 + $0x18] sm:$0xff]
    %v87 = vld [vmem:[%s3 + $0x20] sm:$0xff]
    %v88 = vld [vmem:[%s3 + $0x28] sm:$0xff]
    %v89 = vld [vmem:[%s3 + $0x30] sm:$0xff]
    %v90 = vld [vmem:[%s3 + $0x38] sm:$0xff]
    %v91 = vld [vmem:[%s3 + $0x40] sm:$0xff]
    %v92 = vld [vmem:[%s3 + $0x48] sm:$0xff]
    %v93 = vld [vmem:[%s3 + $0x50] sm:$0xff]
    %v94 = vld [vmem:[%s3 + $0x58] sm:$0xff]
    %v95 = vld [vmem:[%s3 + $0x60] sm:$0xff]
    %v96 = vld [vmem:[%s3 + $0x68] sm:$0xff]
    %v97 = vld [vmem:[%s3 + $0x70] sm:$0xff]
    %v98 = vld [vmem:[%s3 + $0x78] sm:$0xff]
    %v99 = vld [vmem:[%s3 + $0x80] sm:$0xff]
    %v100 = vld [vmem:[%s3 + $0x88] sm:$0xff]
    %v101 = vld [vmem:[%s3 + $0x90] sm:$0xff]
    %v102 = vld [vmem:[%s3 + $0x98] sm:$0xff]
    %v103 = vld [vmem:[%s3 + $0xa0] sm:$0xff]
    %v104 = vld [vmem:[%s3 + $0xa8] sm:$0xff]
    %v105 = vld [vmem:[%s3 + $0xb0] sm:$0xff]
    %v106 = vld [vmem:[%s3 + $0xb8] sm:$0xff]
    %v107 = vld [vmem:[%s3 + $0xc0] sm:$0xff]
    %v108 = vld [vmem:[%s3 + $0xc8] sm:$0xff]
    %v109 = vld [vmem:[%s3 + $0xd0] sm:$0xff]
    %v110 = vld [vmem:[%s3 + $0xd8] sm:$0xff]
    %v111 = vld [vmem:[%s3 + $0xe0] sm:$0xff]
    %v112 = vld [vmem:[%s3 + $0xe8] sm:$0xff]
    %v113 = vld [vmem:[%s3 + $0xf0] sm:$0xff]
    %v114 = vld [vmem:[%s3 + $0xf8] sm:$0xff]
    %v115 = vld [vmem:[%s3 + $0x100] sm:$0xff]
    %v116 = vld [vmem:[%s3 + $0x108] sm:$0xff]
    %v117 = vld [vmem:[%s3 + $0x110] sm:$0xff]
    %v118 = vld [vmem:[%s3 + $0x118] sm:$0xff]
    %v119 = vld [vmem:[%s3 + $0x120] sm:$0xff]
    %v120 = vld [vmem:[%s3 + $0x128] sm:$0xff]
    %v121 = vld [vmem:[%s3 + $0x130] sm:$0xff]
    %v122 = vld [vmem:[%s3 + $0x138] sm:$0xff]
    %v123 = vld [vmem:[%s3 + $0x140] sm:$0xff]
    %v124 = vld [vmem:[%s3 + $0x148] sm:$0xff]
    %v125 = vld [vmem:[%s3 + $0x150] sm:$0xff]
    %v126 = vld [vmem:[%s3 + $0x158] sm:$0xff]
    %v127 = vld [vmem:[%s3 + $0x160] sm:$0xff]
    %v128 = vld [vmem:[%s3 + $0x168] sm:$0xff]
    %v129 = vld [vmem:[%s3 + $0x170] sm:$0xff]
    %v130 = vld [vmem:[%s3 + $0x178] sm:$0xff]
    %v131 = vld [vmem:[%s3 + $0x180] sm:$0xff]
    %v132 = vld [vmem:[%s3 + $0x188] sm:$0xff]
    %v133 = vld [vmem:[%s3 + $0x190] sm:$0xff]
    %v134 = vld [vmem:[%s3 + $0x198] sm:$0xff]
    %v135 = vld [vmem:[%s3 + $0x1a0] sm:$0xff]
    %v136 = vld [vmem:[%s3 + $0x1a8] sm:$0xff]
    %v137 = vld [vmem:[%s3 + $0x1b0] sm:$0xff]
    %v138 = vld [vmem:[%s3 + $0x1b8] sm:$0xff]
    %v139 = vld [vmem:[%s3 + $0x1c0] sm:$0xff]
    %v140 = vld [vmem:[%s3 + $0x1c8] sm:$0xff]
    %v141 = vld [vmem:[%s3 + $0x1d0] sm:$0xff]
    %v142 = vld [vmem:[%s3 + $0x1d8] sm:$0xff]
    %v143 = vld [vmem:[%s3 + $0x1e0] sm:$0xff]
    %v144 = vld [vmem:[%s3 + $0x1e8] sm:$0xff]
    %v145 = vld [vmem:[%s3 + $0x1f0] sm:$0xff]
    %v146 = vld [vmem:[%s3 + $0x1f8] sm:$0xff]
    %v147 = vld [vmem:[%s3 + $0x200] sm:$0xff]
    %v148 = vld [vmem:[%s3 + $0x208] sm:$0xff]
    %v149 = vld [vmem:[%s3 + $0x210] sm:$0xff]
    %v150 = vld [vmem:[%s3 + $0x218] sm:$0xff]
    %v151 = vld [vmem:[%s3 + $0x220] sm:$0xff]
    %v152 = vld [vmem:[%s3 + $0x228] sm:$0xff]
    %v153 = vld [vmem:[%s3 + $0x230] sm:$0xff]
    %v154 = vld [vmem:[%s3 + $0x238] sm:$0xff]
    %v155 = vld [vmem:[%s3 + $0x240] sm:$0xff]
    %v156 = vld [vmem:[%s3 + $0x248] sm:$0xff]
    %v157 = vld [vmem:[%s3 + $0x250] sm:$0xff]
    %v158 = vld [vmem:[%s3 + $0x258] sm:$0xff]
    %v159 = vld [vmem:[%s3 + $0x260] sm:$0xff]
    %v160 = vld [vmem:[%s3 + $0x268] sm:$0xff]
    %v161 = vld [vmem:[%s3 + $0x270] sm:$0xff]
    %v162 = vld [vmem:[%s3 + $0x278] sm:$0xff]
    %v163 = vld [vmem:[%s3 + $0x280] sm:$0xff]
    %v164 = vld [vmem:[%s3 + $0x288] sm:$0xff]
    %v165 = vld [vmem:[%s3 + $0x290] sm:$0xff]
    %v166 = vld [vmem:[%s3 + $0x298] sm:$0xff]
    %v167 = vld [vmem:[%s3 + $0x2a0] sm:$0xff]
    %v168 = vld [vmem:[%s3 + $0x2a8] sm:$0xff]
    %v169 = vld [vmem:[%s3 + $0x2b0] sm:$0xff]
    %v170 = vld [vmem:[%s3 + $0x2b8] sm:$0xff]
    %v171 = vld [vmem:[%s3 + $0x2c0] sm:$0xff]
    %v172 = vld [vmem:[%s3 + $0x2c8] sm:$0xff]
    %v173 = vld [vmem:[%s3 + $0x2d0] sm:$0xff]
    %v174 = vld [vmem:[%s3 + $0x2d8] sm:$0xff]
    %v175 = vld [vmem:[%s3 + $0x2e0] sm:$0xff]
    %v176 = vld [vmem:[%s3 + $0x2e8] sm:$0xff]
    %v177 = vld [vmem:[%s3 + $0x2f0] sm:$0xff]
    %v178 = vld [vmem:[%s3 + $0x2f8] sm:$0xff]
    %v179 = vld [vmem:[%s4] sm:$0x1]
    %v181 = vlaneseq
    %v182 = vshrl.u32 %v181, 7
    %v183 = vsub.s32 0, %v182
    %v184 = vrot.slane %v179, %v183
    %v185 = vld [vmem:[%s5] sm:$0x3]
    %v187 = vlaneseq
    %v188 = vshrl.u32 %v187, 7
    %v189 = vsub.s32 0, %v188
    %v190 = vrot.slane %v185, %v189
    %v191 = vlaneseq
    %v192 = vshrl.u32 %v191, 7
    %v193 = vsub.s32 1, %v192
    %v194 = vrot.slane %v185, %v193
    %v197 = vld [vmem:[%s6] sm:$0x3]
    %v199 = vlaneseq
    %v200 = vshrl.u32 %v199, 7
    %v201 = vsub.s32 0, %v200
    %v202 = vrot.slane %v197, %v201
    %v203 = vlaneseq
    %v204 = vshrl.u32 %v203, 7
    %v205 = vsub.s32 1, %v204
    %v206 = vrot.slane %v197, %v205
    %v209 = vld [vmem:[#allocation2] sm:$0xff]
    %v210 = vld [vmem:[#allocation2 + $0x8] sm:$0xff]
    %v211 = vld [vmem:[%s0] sm:$0xf]
    %v213 = vcombine.high %v209, %v209
    %215 = vmatprep.subr.mxu0 %v84
    %216 = vmatpush1.msra.mxu0 %v83
    %217 = vmatprep.subr.mxu0 %v87
    %218 = vmatpush1.msra.mxu0 %v86
    %219 = vmatprep.subr.mxu0 %v90
    %220 = vmatpush1.msra.mxu0 %v89
    %221 = vmatprep.subr.mxu0 %v93
    %222 = vmatpush1.msra.mxu0 %v92
    %223 = vmatprep.subr.mxu0 %v96
    %224 = vmatpush1.msra.mxu0 %v95
    %225 = vmatprep.subr.mxu0 %v99
    %226 = vmatpush1.msra.mxu0 %v98
    %227 = vmatprep.subr.mxu0 %v102
    %228 = vmatpush1.msra.mxu0 %v101
    %229 = vmatprep.subr.mxu0 %v105
    %230 = vmatpush1.msra.mxu0 %v104
    %231 = vmatprep.subr.mxu0 %v108
    %232 = vmatpush1.msra.mxu0 %v107
    %233 = vmatprep.subr.mxu0 %v111
    %234 = vmatpush1.msra.mxu0 %v110
    %235 = vmatprep.subr.mxu0 %v114
    %236 = vmatpush1.msra.mxu0 %v113
    %237 = vmatprep.subr.mxu0 %v117
    %238 = vmatpush1.msra.mxu0 %v116
    %239 = vmatprep.subr.mxu0 %v120
    %240 = vmatpush1.msra.mxu0 %v119
    %241 = vmatprep.subr.mxu0 %v123
    %242 = vmatpush1.msra.mxu0 %v122
    %243 = vmatprep.subr.mxu0 %v126
    %244 = vmatpush1.msra.mxu0 %v125
    %245 = vmatprep.subr.mxu0 %v129
    %246 = vmatpush1.msra.mxu0 %v128
    %247 = vmatprep.subr.mxu0 %v132
    %248 = vmatpush1.msra.mxu0 %v131
    %249 = vmatprep.subr.mxu0 %v135
    %250 = vmatpush1.msra.mxu0 %v134
    %251 = vmatprep.subr.mxu0 %v138
    %252 = vmatpush1.msra.mxu0 %v137
    %253 = vmatprep.subr.mxu0 %v141
    %254 = vmatpush1.msra.mxu0 %v140
    %255 = vmatprep.subr.mxu0 %v144
    %256 = vmatpush1.msra.mxu0 %v143
    %257 = vmatprep.subr.mxu0 %v147
    %258 = vmatpush1.msra.mxu0 %v146
    %259 = vmatprep.subr.mxu0 %v150
    %260 = vmatpush1.msra.mxu0 %v149
    %261 = vmatprep.subr.mxu0 %v153
    %262 = vmatpush1.msra.mxu0 %v152
    %263 = vmatprep.subr.mxu0 %v156
    %264 = vmatpush1.msra.mxu0 %v155
    %265 = vmatprep.subr.mxu0 %v159
    %266 = vmatpush1.msra.mxu0 %v158
    %267 = vmatprep.subr.mxu0 %v162
    %268 = vmatpush1.msra.mxu0 %v161
    %269 = vmatprep.subr.mxu0 %v165
    %270 = vmatpush1.msra.mxu0 %v164
    %271 = vmatprep.subr.mxu0 %v168
    %272 = vmatpush1.msra.mxu0 %v167
    %273 = vmatprep.subr.mxu0 %v171
    %274 = vmatpush1.msra.mxu0 %v170
    %275 = vmatprep.subr.mxu0 %v174
    %276 = vmatpush1.msra.mxu0 %v173
    %277 = vmatprep.subr.mxu0 %v177
    %278 = vmatpush1.msra.mxu0 %v176
    %279 = vmatprep.mubr.f32.mxu0 %v213
    %280 = vmatmul.mubr.f32.gmra.mrb[0].mxu0 %v209
    %v281 = vpop.f32.mrb[0].mxu0
    %v282 = vadd.f32 0.0, %v281
    %v283 = vpop.f32.mrb[0].mxu0
    %v284 = vadd.f32 0.0, %v283
    %285 = vdwg.mxu0
    %286 = vmatprep.subr.mxu0 0.0
    %287 = vmatpush1.msra.mxu0 %v85
    %288 = vmatprep.subr.mxu0 0.0
    %289 = vmatpush1.msra.mxu0 %v88
    %290 = vmatprep.subr.mxu0 0.0
    %291 = vmatpush1.msra.mxu0 %v91
    %292 = vmatprep.subr.mxu0 0.0
    %293 = vmatpush1.msra.mxu0 %v94
    %294 = vmatprep.subr.mxu0 0.0
    %295 = vmatpush1.msra.mxu0 %v97
    %296 = vmatprep.subr.mxu0 0.0
    %297 = vmatpush1.msra.mxu0 %v100
    %298 = vmatprep.subr.mxu0 0.0
    %299 = vmatpush1.msra.mxu0 %v103
    %300 = vmatprep.subr.mxu0 0.0
    %301 = vmatpush1.msra.mxu0 %v106
    %302 = vmatprep.subr.mxu0 0.0
    %303 = vmatpush1.msra.mxu0 %v109
    %304 = vmatprep.subr.mxu0 0.0
    %305 = vmatpush1.msra.mxu0 %v112
    %306 = vmatprep.subr.mxu0 0.0
    %307 = vmatpush1.msra.mxu0 %v115
    %308 = vmatprep.subr.mxu0 0.0
    %309 = vmatpush1.msra.mxu0 %v118
    %310 = vmatprep.subr.mxu0 0.0
    %311 = vmatpush1.msra.mxu0 %v121
    %312 = vmatprep.subr.mxu0 0.0
    %313 = vmatpush1.msra.mxu0 %v124
    %314 = vmatprep.subr.mxu0 0.0
    %315 = vmatpush1.msra.mxu0 %v127
    %316 = vmatprep.subr.mxu0 0.0
    %317 = vmatpush1.msra.mxu0 %v130
    %318 = vmatprep.subr.mxu0 0.0
    %319 = vmatpush1.msra.mxu0 %v133
    %320 = vmatprep.subr.mxu0 0.0
    %321 = vmatpush1.msra.mxu0 %v136
    %322 = vmatprep.subr.mxu0 0.0
    %323 = vmatpush1.msra.mxu0 %v139
    %324 = vmatprep.subr.mxu0 0.0
    %325 = vmatpush1.msra.mxu0 %v142
    %326 = vmatprep.subr.mxu0 0.0
    %327 = vmatpush1.msra.mxu0 %v145
    %328 = vmatprep.subr.mxu0 0.0
    %329 = vmatpush1.msra.mxu0 %v148
    %330 = vmatprep.subr.mxu0 0.0
    %331 = vmatpush1.msra.mxu0 %v151
    %332 = vmatprep.subr.mxu0 0.0
    %333 = vmatpush1.msra.mxu0 %v154
    %334 = vmatprep.subr.mxu0 0.0
    %335 = vmatpush1.msra.mxu0 %v157
    %336 = vmatprep.subr.mxu0 0.0
    %337 = vmatpush1.msra.mxu0 %v160
    %338 = vmatprep.subr.mxu0 0.0
    %339 = vmatpush1.msra.mxu0 %v163
    %340 = vmatprep.subr.mxu0 0.0
    %341 = vmatpush1.msra.mxu0 %v166
    %342 = vmatprep.subr.mxu0 0.0
    %343 = vmatpush1.msra.mxu0 %v169
    %344 = vmatprep.subr.mxu0 0.0
    %345 = vmatpush1.msra.mxu0 %v172
    %346 = vmatprep.subr.mxu0 0.0
    %347 = vmatpush1.msra.mxu0 %v175
    %348 = vmatprep.subr.mxu0 0.0
    %349 = vmatpush1.msra.mxu0 %v178
    %350 = vmatprep.mubr.f32.mxu0 %v213
    %351 = vmatmul.mubr.f32.gmra.mrb[0].mxu0 %v209
    %v352 = vpop.f32.mrb[0].mxu0
    %v353 = vadd.f32 0.0, %v352
    %v354 = vpop.f32.mrb[0].mxu0
    %355 = vdwg.mxu0
    %356 = vmatprep.subr.mxu0 %v36
    %357 = vmatpush1.msra.mxu0 %v35
    %358 = vmatprep.subr.mxu0 %v39
    %359 = vmatpush1.msra.mxu0 %v38
    %360 = vmatprep.subr.mxu0 %v42
    %361 = vmatpush1.msra.mxu0 %v41
    %362 = vmatprep.subr.mxu0 %v45
    %363 = vmatpush1.msra.mxu0 %v44
    %364 = vmatprep.subr.mxu0 %v48
    %365 = vmatpush1.msra.mxu0 %v47
    %366 = vmatprep.subr.mxu0 %v51
    %367 = vmatpush1.msra.mxu0 %v50
    %368 = vmatprep.subr.mxu0 %v54
    %369 = vmatpush1.msra.mxu0 %v53
    %370 = vmatprep.subr.mxu0 %v57
    %371 = vmatpush1.msra.mxu0 %v56
    %372 = vmatprep.subr.mxu0 %v60
    %373 = vmatpush1.msra.mxu0 %v59
    %374 = vmatprep.subr.mxu0 %v63
    %375 = vmatpush1.msra.mxu0 %v62
    %376 = vmatprep.subr.mxu0 %v66
    %377 = vmatpush1.msra.mxu0 %v65
    %378 = vmatprep.subr.mxu0 %v69
    %379 = vmatpush1.msra.mxu0 %v68
    %380 = vmatprep.subr.mxu0 %v72
    %381 = vmatpush1.msra.mxu0 %v71
    %382 = vmatprep.subr.mxu0 %v75
    %383 = vmatpush1.msra.mxu0 %v74
    %384 = vmatprep.subr.mxu0 %v78
    %385 = vmatpush1.msra.mxu0 %v77
    %386 = vmatprep.subr.mxu0 %v81
    %387 = vmatpush1.msra.mxu0 %v80
    %388 = vmatprep.subr.mxu0 0.0
    %389 = vmatpush1.msra.mxu0 0.0
    %390 = vmatprep.subr.mxu0 0.0
    %391 = vmatpush1.msra.mxu0 0.0
    %392 = vmatprep.subr.mxu0 0.0
    %393 = vmatpush1.msra.mxu0 0.0
    %394 = vmatprep.subr.mxu0 0.0
    %395 = vmatpush1.msra.mxu0 0.0
    %396 = vmatprep.subr.mxu0 0.0
    %397 = vmatpush1.msra.mxu0 0.0
    %398 = vmatprep.subr.mxu0 0.0
    %399 = vmatpush1.msra.mxu0 0.0
    %400 = vmatprep.subr.mxu0 0.0
    %401 = vmatpush1.msra.mxu0 0.0
    %402 = vmatprep.subr.mxu0 0.0
    %403 = vmatpush1.msra.mxu0 0.0
    %404 = vmatprep.subr.mxu0 0.0
    %405 = vmatpush1.msra.mxu0 0.0
    %406 = vmatprep.subr.mxu0 0.0
    %407 = vmatpush1.msra.mxu0 0.0
    %408 = vmatprep.subr.mxu0 0.0
    %409 = vmatpush1.msra.mxu0 0.0
    %410 = vmatprep.subr.mxu0 0.0
    %411 = vmatpush1.msra.mxu0 0.0
    %412 = vmatprep.subr.mxu0 0.0
    %413 = vmatpush1.msra.mxu0 0.0
    %414 = vmatprep.subr.mxu0 0.0
    %415 = vmatpush1.msra.mxu0 0.0
    %416 = vmatprep.subr.mxu0 0.0
    %417 = vmatpush1.msra.mxu0 0.0
    %418 = vmatprep.subr.mxu0 0.0
    %419 = vmatpush1.msra.mxu0 0.0
    %420 = vmatprep.mubr.f32.mxu0 0.0
    %421 = vmatmul.mubr.f32.gmra.mrb[0].mxu0 %v211
    %v422 = vpop.f32.mrb[0].mxu0
    %v423 = vadd.f32 %v282, %v422
    %v424 = vpop.f32.mrb[0].mxu0
    %v425 = vadd.f32 %v284, %v424
    %426 = vdwg.mxu0
    %427 = vmatprep.subr.mxu0 0.0
    %428 = vmatpush1.msra.mxu0 %v37
    %429 = vmatprep.subr.mxu0 0.0
    %430 = vmatpush1.msra.mxu0 %v40
    %431 = vmatprep.subr.mxu0 0.0
    %432 = vmatpush1.msra.mxu0 %v43
    %433 = vmatprep.subr.mxu0 0.0
    %434 = vmatpush1.msra.mxu0 %v46
    %435 = vmatprep.subr.mxu0 0.0
    %436 = vmatpush1.msra.mxu0 %v49
    %437 = vmatprep.subr.mxu0 0.0
    %438 = vmatpush1.msra.mxu0 %v52
    %439 = vmatprep.subr.mxu0 0.0
    %440 = vmatpush1.msra.mxu0 %v55
    %441 = vmatprep.subr.mxu0 0.0
    %442 = vmatpush1.msra.mxu0 %v58
    %443 = vmatprep.subr.mxu0 0.0
    %444 = vmatpush1.msra.mxu0 %v61
    %445 = vmatprep.subr.mxu0 0.0
    %446 = vmatpush1.msra.mxu0 %v64
    %447 = vmatprep.subr.mxu0 0.0
    %448 = vmatpush1.msra.mxu0 %v67
    %449 = vmatprep.subr.mxu0 0.0
    %450 = vmatpush1.msra.mxu0 %v70
    %451 = vmatprep.subr.mxu0 0.0
    %452 = vmatpush1.msra.mxu0 %v73
    %453 = vmatprep.subr.mxu0 0.0
    %454 = vmatpush1.msra.mxu0 %v76
    %455 = vmatprep.subr.mxu0 0.0
    %456 = vmatpush1.msra.mxu0 %v79
    %457 = vmatprep.subr.mxu0 0.0
    %458 = vmatpush1.msra.mxu0 %v82
    %459 = vmatprep.subr.mxu0 0.0
    %460 = vmatpush1.msra.mxu0 0.0
    %461 = vmatprep.subr.mxu0 0.0
    %462 = vmatpush1.msra.mxu0 0.0
    %463 = vmatprep.subr.mxu0 0.0
    %464 = vmatpush1.msra.mxu0 0.0
    %465 = vmatprep.subr.mxu0 0.0
    %466 = vmatpush1.msra.mxu0 0.0
    %467 = vmatprep.subr.mxu0 0.0
    %468 = vmatpush1.msra.mxu0 0.0
    %469 = vmatprep.subr.mxu0 0.0
    %470 = vmatpush1.msra.mxu0 0.0
    %471 = vmatprep.subr.mxu0 0.0
    %472 = vmatpush1.msra.mxu0 0.0
    %473 = vmatprep.subr.mxu0 0.0
    %474 = vmatpush1.msra.mxu0 0.0
    %475 = vmatprep.subr.mxu0 0.0
    %476 = vmatpush1.msra.mxu0 0.0
    %477 = vmatprep.subr.mxu0 0.0
    %478 = vmatpush1.msra.mxu0 0.0
    %479 = vmatprep.subr.mxu0 0.0
    %480 = vmatpush1.msra.mxu0 0.0
    %481 = vmatprep.subr.mxu0 0.0
    %482 = vmatpush1.msra.mxu0 0.0
    %483 = vmatprep.subr.mxu0 0.0
    %484 = vmatpush1.msra.mxu0 0.0
    %485 = vmatprep.subr.mxu0 0.0
    %486 = vmatpush1.msra.mxu0 0.0
    %487 = vmatprep.subr.mxu0 0.0
    %488 = vmatpush1.msra.mxu0 0.0
    %489 = vmatprep.subr.mxu0 0.0
    %490 = vmatpush1.msra.mxu0 0.0
    %491 = vmatprep.mubr.f32.mxu0 0.0
    %492 = vmatmul.mubr.f32.gmra.mrb[0].mxu0 %v211
    %v493 = vpop.f32.mrb[0].mxu0
    %v494 = vadd.f32 %v353, %v493
    %v495 = vpop.f32.mrb[0].mxu0
    %496 = vdwg.mxu0
    %497 = vrot.lane.b32.xlu0 %v184, 108
    %v498 = vpop.permute.xlu0 %497
    %v500 = vadd.f32 %v425, %v498
    %v501 = vxor.u32 %v500, 2147483648
    %v502 = vmul.f32 %v501, 1.442695
    %v503 = vpow.pop %v502
    %v504 = vadd.f32 %v503, 1.0
    %v505 = vrcp.pop %v504
    %v506 = vmul.f32 1.0, %v505
    %508 = vrot.lane.b32.xlu0 %v506, 127
    %v509 = vpop.permute.xlu0 %508
    %v511 = vadd.f32 %v506, %v509
    %v512 = vadd.f32 %v511, 1e-07
    %v513 = vrcp.pop %v512
    %v514 = vmul.f32 1.0, %v513
    %v515 = vmul.f32 %v506, %v514
    %517 = vset.pattern.permute.xlu0 108
    %518 = vperm.xlu0 %517, %v515
    %v519 = vpop.permute.xlu0 %518
    %v521 = vmul.f32 %v519, %v425
    %523 = vrot.lane.b32.xlu0 %v521, 112
    %v524 = vpop.permute.xlu0 %523
    %v526 = vadd.f32 %v423, %v524
    %528 = vrot.lane.b32.xlu0 %v514, 1
    %v529 = vpop.permute.xlu0 %528
    %v531 = vmul.f32 %v506, %v529
    %533 = vset.pattern.permute.xlu0 109
    %534 = vperm.xlu0 %533, %v531
    %v535 = vpop.permute.xlu0 %534
    %v537 = vmul.f32 %v535, %v494
    %539 = vrot.lane.b32.xlu0 %v537, 96
    %v540 = vpop.permute.xlu0 %539
    %v542 = vadd.f32 %v526, %v540
    %543 = vset.pattern.permute.xlu0 110
    %544 = vperm.xlu0 %543, %v515
    %v545 = vpop.permute.xlu0 %544
    %v547 = vmul.f32 %v545, %v494
    %549 = vrot.lane.b32.xlu0 %v547, 64
    %v550 = vpop.permute.xlu0 %549
    %v552 = vadd.f32 %v425, %v550
    %553 = vset.pattern.permute.xlu0 111
    %554 = vperm.xlu0 %553, %v531
    %v555 = vpop.permute.xlu0 %554
    %v557 = vmul.f32 %v555, %v494
    %559 = vrot.lane.b32.xlu0 %v557, 48
    %v560 = vpop.permute.xlu0 %559
    %v562 = vadd.f32 %v552, %v560
    %vm563 = vcmask 785408
    %v564 = vsel %vm563, %v423, %v542
    %vm565 = vcmask 916480
    %v566 = vsel %vm565, %v564, %v423
    %vm567 = vcmask 654336
    %v568 = vsel %vm567, %v425, %v562
    %v569 = vsel %vm563, %v568, %v425
    %vm570 = vcmask 883712
    %v571 = vsel %vm570, %v569, 0.0
    %v573 = vcombine.high %v210, %v210
    %v575 = vmul.f32 %v190, %v210
    %v576 = vmul.f32 %v194, %v573
    %v577 = vmul.f32 %v202, %v566
    %v578 = vmul.f32 %v206, %v571
    %v579 = vadd.f32 %v575, %v577
    %v580 = vadd.f32 %v576, %v578
    %v581 = vtanh.pop %v579
    %v582 = vtanh.pop %v580
    %v587 = vcombine.low %v581, %v582
    %v588 = vcombine.low %v579, %v580
    %591 = vst [vmem:[#allocation3] sm:$0xff] %v587
    %592 = vst [vmem:[#allocation3 + $0x8] sm:$0xff] %v588
    %s593 = scalar_lea.vmem %s0, 4
    %v594 = vld [vmem:[%s593] sm:$0xf]
    %595 = vmatprep.subr.mxu0 %v84
    %596 = vmatpush1.msra.mxu0 %v83
    %597 = vmatprep.subr.mxu0 %v87
    %598 = vmatpush1.msra.mxu0 %v86
    %599 = vmatprep.subr.mxu0 %v90
    %600 = vmatpush1.msra.mxu0 %v89
    %601 = vmatprep.subr.mxu0 %v93
    %602 = vmatpush1.msra.mxu0 %v92
    %603 = vmatprep.subr.mxu0 %v96
    %604 = vmatpush1.msra.mxu0 %v95
    %605 = vmatprep.subr.mxu0 %v99
    %606 = vmatpush1.msra.mxu0 %v98
    %607 = vmatprep.subr.mxu0 %v102
    %608 = vmatpush1.msra.mxu0 %v101
    %609 = vmatprep.subr.mxu0 %v105
    %610 = vmatpush1.msra.mxu0 %v104
    %611 = vmatprep.subr.mxu0 %v108
    %612 = vmatpush1.msra.mxu0 %v107
    %613 = vmatprep.subr.mxu0 %v111
    %614 = vmatpush1.msra.mxu0 %v110
    %615 = vmatprep.subr.mxu0 %v114
    %616 = vmatpush1.msra.mxu0 %v113
    %617 = vmatprep.subr.mxu0 %v117
    %618 = vmatpush1.msra.mxu0 %v116
    %619 = vmatprep.subr.mxu0 %v120
    %620 = vmatpush1.msra.mxu0 %v119
    %621 = vmatprep.subr.mxu0 %v123
    %622 = vmatpush1.msra.mxu0 %v122
    %623 = vmatprep.subr.mxu0 %v126
    %624 = vmatpush1.msra.mxu0 %v125
    %625 = vmatprep.subr.mxu0 %v129
    %626 = vmatpush1.msra.mxu0 %v128
    %627 = vmatprep.subr.mxu0 %v132
    %628 = vmatpush1.msra.mxu0 %v131
    %629 = vmatprep.subr.mxu0 %v135
    %630 = vmatpush1.msra.mxu0 %v134
    %631 = vmatprep.subr.mxu0 %v138
    %632 = vmatpush1.msra.mxu0 %v137
    %633 = vmatprep.subr.mxu0 %v141
    %634 = vmatpush1.msra.mxu0 %v140
    %635 = vmatprep.subr.mxu0 %v144
    %636 = vmatpush1.msra.mxu0 %v143
    %637 = vmatprep.subr.mxu0 %v147
    %638 = vmatpush1.msra.mxu0 %v146
    %639 = vmatprep.subr.mxu0 %v150
    %640 = vmatpush1.msra.mxu0 %v149
    %641 = vmatprep.subr.mxu0 %v153
    %642 = vmatpush1.msra.mxu0 %v152
    %643 = vmatprep.subr.mxu0 %v156
    %644 = vmatpush1.msra.mxu0 %v155
    %645 = vmatprep.subr.mxu0 %v159
    %646 = vmatpush1.msra.mxu0 %v158
    %647 = vmatprep.subr.mxu0 %v162
    %648 = vmatpush1.msra.mxu0 %v161
    %649 = vmatprep.subr.mxu0 %v165
    %650 = vmatpush1.msra.mxu0 %v164
    %651 = vmatprep.subr.mxu0 %v168
    %652 = vmatpush1.msra.mxu0 %v167
    %653 = vmatprep.subr.mxu0 %v171
    %654 = vmatpush1.msra.mxu0 %v170
    %655 = vmatprep.subr.mxu0 %v174
    %656 = vmatpush1.msra.mxu0 %v173
    %657 = vmatprep.subr.mxu0 %v177
    %658 = vmatpush1.msra.mxu0 %v176
    %659 = vmatprep.mubr.f32.mxu0 %v582
    %660 = vmatmul.mubr.f32.gmra.mrb[0].mxu0 %v581
    %v661 = vpop.f32.mrb[0].mxu0
    %v662 = vadd.f32 0.0, %v661
    %v663 = vpop.f32.mrb[0].mxu0
    %v664 = vadd.f32 0.0, %v663
    %665 = vdwg.mxu0
    %666 = vmatprep.subr.mxu0 0.0
    %667 = vmatpush1.msra.mxu0 %v85
    %668 = vmatprep.subr.mxu0 0.0
    %669 = vmatpush1.msra.mxu0 %v88
    %670 = vmatprep.subr.mxu0 0.0
    %671 = vmatpush1.msra.mxu0 %v91
    %672 = vmatprep.subr.mxu0 0.0
    %673 = vmatpush1.msra.mxu0 %v94
    %674 = vmatprep.subr.mxu0 0.0
    %675 = vmatpush1.msra.mxu0 %v97
    %676 = vmatprep.subr.mxu0 0.0
    %677 = vmatpush1.msra.mxu0 %v100
    %678 = vmatprep.subr.mxu0 0.0
    %679 = vmatpush1.msra.mxu0 %v103
    %680 = vmatprep.subr.mxu0 0.0
    %681 = vmatpush1.msra.mxu0 %v106
    %682 = vmatprep.subr.mxu0 0.0
    %683 = vmatpush1.msra.mxu0 %v109
    %684 = vmatprep.subr.mxu0 0.0
    %685 = vmatpush1.msra.mxu0 %v112
    %686 = vmatprep.subr.mxu0 0.0
    %687 = vmatpush1.msra.mxu0 %v115
    %688 = vmatprep.subr.mxu0 0.0
    %689 = vmatpush1.msra.mxu0 %v118
    %690 = vmatprep.subr.mxu0 0.0
    %691 = vmatpush1.msra.mxu0 %v121
    %692 = vmatprep.subr.mxu0 0.0
    %693 = vmatpush1.msra.mxu0 %v124
    %694 = vmatprep.subr.mxu0 0.0
    %695 = vmatpush1.msra.mxu0 %v127
    %696 = vmatprep.subr.mxu0 0.0
    %697 = vmatpush1.msra.mxu0 %v130
    %698 = vmatprep.subr.mxu0 0.0
    %699 = vmatpush1.msra.mxu0 %v133
    %700 = vmatprep.subr.mxu0 0.0
    %701 = vmatpush1.msra.mxu0 %v136
    %702 = vmatprep.subr.mxu0 0.0
    %703 = vmatpush1.msra.mxu0 %v139
    %704 = vmatprep.subr.mxu0 0.0
    %705 = vmatpush1.msra.mxu0 %v142
    %706 = vmatprep.subr.mxu0 0.0
    %707 = vmatpush1.msra.mxu0 %v145
    %708 = vmatprep.subr.mxu0 0.0
    %709 = vmatpush1.msra.mxu0 %v148
    %710 = vmatprep.subr.mxu0 0.0
    %711 = vmatpush1.msra.mxu0 %v151
    %712 = vmatprep.subr.mxu0 0.0
    %713 = vmatpush1.msra.mxu0 %v154
    %714 = vmatprep.subr.mxu0 0.0
    %715 = vmatpush1.msra.mxu0 %v157
    %716 = vmatprep.subr.mxu0 0.0
    %717 = vmatpush1.msra.mxu0 %v160
    %718 = vmatprep.subr.mxu0 0.0
    %719 = vmatpush1.msra.mxu0 %v163
    %720 = vmatprep.subr.mxu0 0.0
    %721 = vmatpush1.msra.mxu0 %v166
    %722 = vmatprep.subr.mxu0 0.0
    %723 = vmatpush1.msra.mxu0 %v169
    %724 = vmatprep.subr.mxu0 0.0
    %725 = vmatpush1.msra.mxu0 %v172
    %726 = vmatprep.subr.mxu0 0.0
    %727 = vmatpush1.msra.mxu0 %v175
    %728 = vmatprep.subr.mxu0 0.0
    %729 = vmatpush1.msra.mxu0 %v178
    %730 = vmatprep.mubr.f32.mxu0 %v582
    %731 = vmatmul.mubr.f32.gmra.mrb[0].mxu0 %v581
    %v732 = vpop.f32.mrb[0].mxu0
    %v733 = vadd.f32 0.0, %v732
    %v734 = vpop.f32.mrb[0].mxu0
    %735 = vdwg.mxu0
    %736 = vmatprep.subr.mxu0 %v36
    %737 = vmatpush1.msra.mxu0 %v35
    %738 = vmatprep.subr.mxu0 %v39
    %739 = vmatpush1.msra.mxu0 %v38
    %740 = vmatprep.subr.mxu0 %v42
    %741 = vmatpush1.msra.mxu0 %v41
    %742 = vmatprep.subr.mxu0 %v45
    %743 = vmatpush1.msra.mxu0 %v44
    %744 = vmatprep.subr.mxu0 %v48
    %745 = vmatpush1.msra.mxu0 %v47
    %746 = vmatprep.subr.mxu0 %v51
    %747 = vmatpush1.msra.mxu0 %v50
    %748 = vmatprep.subr.mxu0 %v54
    %749 = vmatpush1.msra.mxu0 %v53
    %750 = vmatprep.subr.mxu0 %v57
    %751 = vmatpush1.msra.mxu0 %v56
    %752 = vmatprep.subr.mxu0 %v60
    %753 = vmatpush1.msra.mxu0 %v59
    %754 = vmatprep.subr.mxu0 %v63
    %755 = vmatpush1.msra.mxu0 %v62
    %756 = vmatprep.subr.mxu0 %v66
    %757 = vmatpush1.msra.mxu0 %v65
    %758 = vmatprep.subr.mxu0 %v69
    %759 = vmatpush1.msra.mxu0 %v68
    %760 = vmatprep.subr.mxu0 %v72
    %761 = vmatpush1.msra.mxu0 %v71
    %762 = vmatprep.subr.mxu0 %v75
    %763 = vmatpush1.msra.mxu0 %v74
    %764 = vmatprep.subr.mxu0 %v78
    %765 = vmatpush1.msra.mxu0 %v77
    %766 = vmatprep.subr.mxu0 %v81
    %767 = vmatpush1.msra.mxu0 %v80
    %768 = vmatprep.subr.mxu0 0.0
    %769 = vmatpush1.msra.mxu0 0.0
    %770 = vmatprep.subr.mxu0 0.0
    %771 = vmatpush1.msra.mxu0 0.0
    %772 = vmatprep.subr.mxu0 0.0
    %773 = vmatpush1.msra.mxu0 0.0
    %774 = vmatprep.subr.mxu0 0.0
    %775 = vmatpush1.msra.mxu0 0.0
    %776 = vmatprep.subr.mxu0 0.0
    %777 = vmatpush1.msra.mxu0 0.0
    %778 = vmatprep.subr.mxu0 0.0
    %779 = vmatpush1.msra.mxu0 0.0
    %780 = vmatprep.subr.mxu0 0.0
    %781 = vmatpush1.msra.mxu0 0.0
    %782 = vmatprep.subr.mxu0 0.0
    %783 = vmatpush1.msra.mxu0 0.0
    %784 = vmatprep.subr.mxu0 0.0
    %785 = vmatpush1.msra.mxu0 0.0
    %786 = vmatprep.subr.mxu0 0.0
    %787 = vmatpush1.msra.mxu0 0.0
    %788 = vmatprep.subr.mxu0 0.0
    %789 = vmatpush1.msra.mxu0 0.0
    %790 = vmatprep.subr.mxu0 0.0
    %791 = vmatpush1.msra.mxu0 0.0
    %792 = vmatprep.subr.mxu0 0.0
    %793 = vmatpush1.msra.mxu0 0.0
    %794 = vmatprep.subr.mxu0 0.0
    %795 = vmatpush1.msra.mxu0 0.0
    %796 = vmatprep.subr.mxu0 0.0
    %797 = vmatpush1.msra.mxu0 0.0
    %798 = vmatprep.subr.mxu0 0.0
    %799 = vmatpush1.msra.mxu0 0.0
    %800 = vmatprep.mubr.f32.mxu0 0.0
    %801 = vmatmul.mubr.f32.gmra.mrb[0].mxu0 %v594
    %v802 = vpop.f32.mrb[0].mxu0
    %v803 = vadd.f32 %v662, %v802
    %v804 = vpop.f32.mrb[0].mxu0
    %v805 = vadd.f32 %v664, %v804
    %806 = vdwg.mxu0
    %807 = vmatprep.subr.mxu0 0.0
    %808 = vmatpush1.msra.mxu0 %v37
    %809 = vmatprep.subr.mxu0 0.0
    %810 = vmatpush1.msra.mxu0 %v40
    %811 = vmatprep.subr.mxu0 0.0
    %812 = vmatpush1.msra.mxu0 %v43
    %813 = vmatprep.subr.mxu0 0.0
    %814 = vmatpush1.msra.mxu0 %v46
    %815 = vmatprep.subr.mxu0 0.0
    %816 = vmatpush1.msra.mxu0 %v49
    %817 = vmatprep.subr.mxu0 0.0
    %818 = vmatpush1.msra.mxu0 %v52
    %819 = vmatprep.subr.mxu0 0.0
    %820 = vmatpush1.msra.mxu0 %v55
    %821 = vmatprep.subr.mxu0 0.0
    %822 = vmatpush1.msra.mxu0 %v58
    %823 = vmatprep.subr.mxu0 0.0
    %824 = vmatpush1.msra.mxu0 %v61
    %825 = vmatprep.subr.mxu0 0.0
    %826 = vmatpush1.msra.mxu0 %v64
    %827 = vmatprep.subr.mxu0 0.0
    %828 = vmatpush1.msra.mxu0 %v67
    %829 = vmatprep.subr.mxu0 0.0
    %830 = vmatpush1.msra.mxu0 %v70
    %831 = vmatprep.subr.mxu0 0.0
    %832 = vmatpush1.msra.mxu0 %v73
    %833 = vmatprep.subr.mxu0 0.0
    %834 = vmatpush1.msra.mxu0 %v76
    %835 = vmatprep.subr.mxu0 0.0
    %836 = vmatpush1.msra.mxu0 %v79
    %837 = vmatprep.subr.mxu0 0.0
    %838 = vmatpush1.msra.mxu0 %v82
    %839 = vmatprep.subr.mxu0 0.0
    %840 = vmatpush1.msra.mxu0 0.0
    %841 = vmatprep.subr.mxu0 0.0
    %842 = vmatpush1.msra.mxu0 0.0
    %843 = vmatprep.subr.mxu0 0.0
    %844 = vmatpush1.msra.mxu0 0.0
    %845 = vmatprep.subr.mxu0 0.0
    %846 = vmatpush1.msra.mxu0 0.0
    %847 = vmatprep.subr.mxu0 0.0
    %848 = vmatpush1.msra.mxu0 0.0
    %849 = vmatprep.subr.mxu0 0.0
    %850 = vmatpush1.msra.mxu0 0.0
    %851 = vmatprep.subr.mxu0 0.0
    %852 = vmatpush1.msra.mxu0 0.0
    %853 = vmatprep.subr.mxu0 0.0
    %854 = vmatpush1.msra.mxu0 0.0
    %855 = vmatprep.subr.mxu0 0.0
    %856 = vmatpush1.msra.mxu0 0.0
    %857 = vmatprep.subr.mxu0 0.0
    %858 = vmatpush1.msra.mxu0 0.0
    %859 = vmatprep.subr.mxu0 0.0
    %860 = vmatpush1.msra.mxu0 0.0
    %861 = vmatprep.subr.mxu0 0.0
    %862 = vmatpush1.msra.mxu0 0.0
    %863 = vmatprep.subr.mxu0 0.0
    %864 = vmatpush1.msra.mxu0 0.0
    %865 = vmatprep.subr.mxu0 0.0
    %866 = vmatpush1.msra.mxu0 0.0
    %867 = vmatprep.subr.mxu0 0.0
    %868 = vmatpush1.msra.mxu0 0.0
    %869 = vmatprep.subr.mxu0 0.0
    %870 = vmatpush1.msra.mxu0 0.0
    %871 = vmatprep.mubr.f32.mxu0 0.0
    %872 = vmatmul.mubr.f32.gmra.mrb[0].mxu0 %v594
    %v873 = vpop.f32.mrb[0].mxu0
    %v874 = vadd.f32 %v733, %v873
    %v875 = vpop.f32.mrb[0].mxu0
    %876 = vdwg.mxu0
    %v877 = vadd.f32 %v805, %v498
    %v878 = vxor.u32 %v877, 2147483648
    %v879 = vmul.f32 %v878, 1.442695
    %v880 = vpow.pop %v879
    %v881 = vadd.f32 %v880, 1.0
    %v882 = vrcp.pop %v881
    %v883 = vmul.f32 1.0, %v882
    %885 = vrot.lane.b32.xlu0 %v883, 127
    %v886 = vpop.permute.xlu0 %885
    %v888 = vadd.f32 %v883, %v886
    %v889 = vadd.f32 %v888, 1e-07
    %v890 = vrcp.pop %v889
    %v891 = vmul.f32 1.0, %v890
    %v892 = vmul.f32 %v883, %v891
    %894 = vset.pattern.permute.xlu0 108
    %895 = vperm.xlu0 %894, %v892
    %v896 = vpop.permute.xlu0 %895
    %v898 = vmul.f32 %v896, %v805
    %900 = vrot.lane.b32.xlu0 %v898, 112
    %v901 = vpop.permute.xlu0 %900
    %v903 = vadd.f32 %v803, %v901
    %905 = vrot.lane.b32.xlu0 %v891, 1
    %v906 = vpop.permute.xlu0 %905
    %v908 = vmul.f32 %v883, %v906
    %910 = vset.pattern.permute.xlu0 109
    %911 = vperm.xlu0 %910, %v908
    %v912 = vpop.permute.xlu0 %911
    %v914 = vmul.f32 %v912, %v874
    %916 = vrot.lane.b32.xlu0 %v914, 96
    %v917 = vpop.permute.xlu0 %916
    %v919 = vadd.f32 %v903, %v917
    %920 = vset.pattern.permute.xlu0 110
    %921 = vperm.xlu0 %920, %v892
    %v922 = vpop.permute.xlu0 %921
    %v924 = vmul.f32 %v922, %v874
    %926 = vrot.lane.b32.xlu0 %v924, 64
    %v927 = vpop.permute.xlu0 %926
    %v929 = vadd.f32 %v805, %v927
    %930 = vset.pattern.permute.xlu0 111
    %931 = vperm.xlu0 %930, %v908
    %v932 = vpop.permute.xlu0 %931
    %v934 = vmul.f32 %v932, %v874
    %936 = vrot.lane.b32.xlu0 %v934, 48
    %v937 = vpop.permute.xlu0 %936
    %v939 = vadd.f32 %v929, %v937
    %v940 = vsel %vm563, %v803, %v919
    %v941 = vsel %vm565, %v940, %v803
    %v942 = vsel %vm567, %v805, %v939
    %v943 = vsel %vm563, %v942, %v805
    %v944 = vsel %vm570, %v943, 0.0
    %v945 = vmul.f32 %v190, %v579
    %v946 = vmul.f32 %v194, %v580
    %v947 = vmul.f32 %v202, %v941
    %v948 = vmul.f32 %v206, %v944
    %v949 = vadd.f32 %v945, %v947
    %v950 = vadd.f32 %v946, %v948
    %v951 = vtanh.pop %v949
    %v952 = vtanh.pop %v950
    %v957 = vcombine.low %v951, %v952
    %v958 = vcombine.low %v949, %v950
    %s961 = scalar_lea.vmem [#allocation3], 16
    %962 = vst [vmem:[%s961] sm:$0xff] %v957
    %963 = vst [vmem:[%s961 + $0x8] sm:$0xff] %v958
    %s964 = scalar_lea.vmem %s0, 8
    %v965 = vld [vmem:[%s964] sm:$0xf]
    %966 = vmatprep.subr.mxu0 %v84
    %967 = vmatpush1.msra.mxu0 %v83
    %968 = vmatprep.subr.mxu0 %v87
    %969 = vmatpush1.msra.mxu0 %v86
    %970 = vmatprep.subr.mxu0 %v90
    %971 = vmatpush1.msra.mxu0 %v89
    %972 = vmatprep.subr.mxu0 %v93
    %973 = vmatpush1.msra.mxu0 %v92
    %974 = vmatprep.subr.mxu0 %v96
    %975 = vmatpush1.msra.mxu0 %v95
    %976 = vmatprep.subr.mxu0 %v99
    %977 = vmatpush1.msra.mxu0 %v98
    %978 = vmatprep.subr.mxu0 %v102
    %979 = vmatpush1.msra.mxu0 %v101
    %980 = vmatprep.subr.mxu0 %v105
    %981 = vmatpush1.msra.mxu0 %v104
    %982 = vmatprep.subr.mxu0 %v108
    %983 = vmatpush1.msra.mxu0 %v107
    %984 = vmatprep.subr.mxu0 %v111
    %985 = vmatpush1.msra.mxu0 %v110
    %986 = vmatprep.subr.mxu0 %v114
    %987 = vmatpush1.msra.mxu0 %v113
    %988 = vmatprep.subr.mxu0 %v117
    %989 = vmatpush1.msra.mxu0 %v116
    %990 = vmatprep.subr.mxu0 %v120
    %991 = vmatpush1.msra.mxu0 %v119
    %992 = vmatprep.subr.mxu0 %v123
    %993 = vmatpush1.msra.mxu0 %v122
    %994 = vmatprep.subr.mxu0 %v126
    %995 = vmatpush1.msra.mxu0 %v125
    %996 = vmatprep.subr.mxu0 %v129
    %997 = vmatpush1.msra.mxu0 %v128
    %998 = vmatprep.subr.mxu0 %v132
    %999 = vmatpush1.msra.mxu0 %v131
    %1000 = vmatprep.subr.mxu0 %v135
    %1001 = vmatpush1.msra.mxu0 %v134
    %1002 = vmatprep.subr.mxu0 %v138
    %1003 = vmatpush1.msra.mxu0 %v137
    %1004 = vmatprep.subr.mxu0 %v141
    %1005 = vmatpush1.msra.mxu0 %v140
    %1006 = vmatprep.subr.mxu0 %v144
    %1007 = vmatpush1.msra.mxu0 %v143
    %1008 = vmatprep.subr.mxu0 %v147
    %1009 = vmatpush1.msra.mxu0 %v146
    %1010 = vmatprep.subr.mxu0 %v150
    %1011 = vmatpush1.msra.mxu0 %v149
    %1012 = vmatprep.subr.mxu0 %v153
    %1013 = vmatpush1.msra.mxu0 %v152
    %1014 = vmatprep.subr.mxu0 %v156
    %1015 = vmatpush1.msra.mxu0 %v155
    %1016 = vmatprep.subr.mxu0 %v159
    %1017 = vmatpush1.msra.mxu0 %v158
    %1018 = vmatprep.subr.mxu0 %v162
    %1019 = vmatpush1.msra.mxu0 %v161
    %1020 = vmatprep.subr.mxu0 %v165
    %1021 = vmatpush1.msra.mxu0 %v164
    %1022 = vmatprep.subr.mxu0 %v168
    %1023 = vmatpush1.msra.mxu0 %v167
    %1024 = vmatprep.subr.mxu0 %v171
    %1025 = vmatpush1.msra.mxu0 %v170
    %1026 = vmatprep.subr.mxu0 %v174
    %1027 = vmatpush1.msra.mxu0 %v173
    %1028 = vmatprep.subr.mxu0 %v177
    %1029 = vmatpush1.msra.mxu0 %v176
    %1030 = vmatprep.mubr.f32.mxu0 %v952
    %1031 = vmatmul.mubr.f32.gmra.mrb[0].mxu0 %v951
    %v1032 = vpop.f32.mrb[0].mxu0
    %v1033 = vadd.f32 0.0, %v1032
    %v1034 = vpop.f32.mrb[0].mxu0
    %v1035 = vadd.f32 0.0, %v1034
    %1036 = vdwg.mxu0
    %1037 = vmatprep.subr.mxu0 0.0
    %1038 = vmatpush1.msra.mxu0 %v85
    %1039 = vmatprep.subr.mxu0 0.0
    %1040 = vmatpush1.msra.mxu0 %v88
    %1041 = vmatprep.subr.mxu0 0.0
    %1042 = vmatpush1.msra.mxu0 %v91
    %1043 = vmatprep.subr.mxu0 0.0
    %1044 = vmatpush1.msra.mxu0 %v94
    %1045 = vmatprep.subr.mxu0 0.0
    %1046 = vmatpush1.msra.mxu0 %v97
    %1047 = vmatprep.subr.mxu0 0.0
    %1048 = vmatpush1.msra.mxu0 %v100
    %1049 = vmatprep.subr.mxu0 0.0
    %1050 = vmatpush1.msra.mxu0 %v103
    %1051 = vmatprep.subr.mxu0 0.0
    %1052 = vmatpush1.msra.mxu0 %v106
    %1053 = vmatprep.subr.mxu0 0.0
    %1054 = vmatpush1.msra.mxu0 %v109
    %1055 = vmatprep.subr.mxu0 0.0
    %1056 = vmatpush1.msra.mxu0 %v112
    %1057 = vmatprep.subr.mxu0 0.0
    %1058 = vmatpush1.msra.mxu0 %v115
    %1059 = vmatprep.subr.mxu0 0.0
    %1060 = vmatpush1.msra.mxu0 %v118
    %1061 = vmatprep.subr.mxu0 0.0
    %1062 = vmatpush1.msra.mxu0 %v121
    %1063 = vmatprep.subr.mxu0 0.0
    %1064 = vmatpush1.msra.mxu0 %v124
    %1065 = vmatprep.subr.mxu0 0.0
    %1066 = vmatpush1.msra.mxu0 %v127
    %1067 = vmatprep.subr.mxu0 0.0
    %1068 = vmatpush1.msra.mxu0 %v130
    %1069 = vmatprep.subr.mxu0 0.0
    %1070 = vmatpush1.msra.mxu0 %v133
    %1071 = vmatprep.subr.mxu0 0.0
    %1072 = vmatpush1.msra.mxu0 %v136
    %1073 = vmatprep.subr.mxu0 0.0
    %1074 = vmatpush1.msra.mxu0 %v139
    %1075 = vmatprep.subr.mxu0 0.0
    %1076 = vmatpush1.msra.mxu0 %v142
    %1077 = vmatprep.subr.mxu0 0.0
    %1078 = vmatpush1.msra.mxu0 %v145
    %1079 = vmatprep.subr.mxu0 0.0
    %1080 = vmatpush1.msra.mxu0 %v148
    %1081 = vmatprep.subr.mxu0 0.0
    %1082 = vmatpush1.msra.mxu0 %v151
    %1083 = vmatprep.subr.mxu0 0.0
    %1084 = vmatpush1.msra.mxu0 %v154
    %1085 = vmatprep.subr.mxu0 0.0
    %1086 = vmatpush1.msra.mxu0 %v157
    %1087 = vmatprep.subr.mxu0 0.0
    %1088 = vmatpush1.msra.mxu0 %v160
    %1089 = vmatprep.subr.mxu0 0.0
    %1090 = vmatpush1.msra.mxu0 %v163
    %1091 = vmatprep.subr.mxu0 0.0
    %1092 = vmatpush1.msra.mxu0 %v166
    %1093 = vmatprep.subr.mxu0 0.0
    %1094 = vmatpush1.msra.mxu0 %v169
    %1095 = vmatprep.subr.mxu0 0.0
    %1096 = vmatpush1.msra.mxu0 %v172
    %1097 = vmatprep.subr.mxu0 0.0
    %1098 = vmatpush1.msra.mxu0 %v175
    %1099 = vmatprep.subr.mxu0 0.0
    %1100 = vmatpush1.msra.mxu0 %v178
    %1101 = vmatprep.mubr.f32.mxu0 %v952
    %1102 = vmatmul.mubr.f32.gmra.mrb[0].mxu0 %v951
    %v1103 = vpop.f32.mrb[0].mxu0
    %v1104 = vadd.f32 0.0, %v1103
    %v1105 = vpop.f32.mrb[0].mxu0
    %1106 = vdwg.mxu0
    %1107 = vmatprep.subr.mxu0 %v36
    %1108 = vmatpush1.msra.mxu0 %v35
    %1109 = vmatprep.subr.mxu0 %v39
    %1110 = vmatpush1.msra.mxu0 %v38
    %1111 = vmatprep.subr.mxu0 %v42
    %1112 = vmatpush1.msra.mxu0 %v41
    %1113 = vmatprep.subr.mxu0 %v45
    %1114 = vmatpush1.msra.mxu0 %v44
    %1115 = vmatprep.subr.mxu0 %v48
    %1116 = vmatpush1.msra.mxu0 %v47
    %1117 = vmatprep.subr.mxu0 %v51
    %1118 = vmatpush1.msra.mxu0 %v50
    %1119 = vmatprep.subr.mxu0 %v54
    %1120 = vmatpush1.msra.mxu0 %v53
    %1121 = vmatprep.subr.mxu0 %v57
    %1122 = vmatpush1.msra.mxu0 %v56
    %1123 = vmatprep.subr.mxu0 %v60
    %1124 = vmatpush1.msra.mxu0 %v59
    %1125 = vmatprep.subr.mxu0 %v63
    %1126 = vmatpush1.msra.mxu0 %v62
    %1127 = vmatprep.subr.mxu0 %v66
    %1128 = vmatpush1.msra.mxu0 %v65
    %1129 = vmatprep.subr.mxu0 %v69
    %1130 = vmatpush1.msra.mxu0 %v68
    %1131 = vmatprep.subr.mxu0 %v72
    %1132 = vmatpush1.msra.mxu0 %v71
    %1133 = vmatprep.subr.mxu0 %v75
    %1134 = vmatpush1.msra.mxu0 %v74
    %1135 = vmatprep.subr.mxu0 %v78
    %1136 = vmatpush1.msra.mxu0 %v77
    %1137 = vmatprep.subr.mxu0 %v81
    %1138 = vmatpush1.msra.mxu0 %v80
    %1139 = vmatprep.subr.mxu0 0.0
    %1140 = vmatpush1.msra.mxu0 0.0
    %1141 = vmatprep.subr.mxu0 0.0
    %1142 = vmatpush1.msra.mxu0 0.0
    %1143 = vmatprep.subr.mxu0 0.0
    %1144 = vmatpush1.msra.mxu0 0.0
    %1145 = vmatprep.subr.mxu0 0.0
    %1146 = vmatpush1.msra.mxu0 0.0
    %1147 = vmatprep.subr.mxu0 0.0
    %1148 = vmatpush1.msra.mxu0 0.0
    %1149 = vmatprep.subr.mxu0 0.0
    %1150 = vmatpush1.msra.mxu0 0.0
    %1151 = vmatprep.subr.mxu0 0.0
    %1152 = vmatpush1.msra.mxu0 0.0
    %1153 = vmatprep.subr.mxu0 0.0
    %1154 = vmatpush1.msra.mxu0 0.0
    %1155 = vmatprep.subr.mxu0 0.0
    %1156 = vmatpush1.msra.mxu0 0.0
    %1157 = vmatprep.subr.mxu0 0.0
    %1158 = vmatpush1.msra.mxu0 0.0
    %1159 = vmatprep.subr.mxu0 0.0
    %1160 = vmatpush1.msra.mxu0 0.0
    %1161 = vmatprep.subr.mxu0 0.0
    %1162 = vmatpush1.msra.mxu0 0.0
    %1163 = vmatprep.subr.mxu0 0.0
    %1164 = vmatpush1.msra.mxu0 0.0
    %1165 = vmatprep.subr.mxu0 0.0
    %1166 = vmatpush1.msra.mxu0 0.0
    %1167 = vmatprep.subr.mxu0 0.0
    %1168 = vmatpush1.msra.mxu0 0.0
    %1169 = vmatprep.subr.mxu0 0.0
    %1170 = vmatpush1.msra.mxu0 0.0
    %1171 = vmatprep.mubr.f32.mxu0 0.0
    %1172 = vmatmul.mubr.f32.gmra.mrb[0].mxu0 %v965
    %v1173 = vpop.f32.mrb[0].mxu0
    %v1174 = vadd.f32 %v1033, %v1173
    %v1175 = vpop.f32.mrb[0].mxu0
    %v1176 = vadd.f32 %v1035, %v1175
    %1177 = vdwg.mxu0
    %1178 = vmatprep.subr.mxu0 0.0
    %1179 = vmatpush1.msra.mxu0 %v37
    %1180 = vmatprep.subr.mxu0 0.0
    %1181 = vmatpush1.msra.mxu0 %v40
    %1182 = vmatprep.subr.mxu0 0.0
    %1183 = vmatpush1.msra.mxu0 %v43
    %1184 = vmatprep.subr.mxu0 0.0
    %1185 = vmatpush1.msra.mxu0 %v46
    %1186 = vmatprep.subr.mxu0 0.0
    %1187 = vmatpush1.msra.mxu0 %v49
    %1188 = vmatprep.subr.mxu0 0.0
    %1189 = vmatpush1.msra.mxu0 %v52
    %1190 = vmatprep.subr.mxu0 0.0
    %1191 = vmatpush1.msra.mxu0 %v55
    %1192 = vmatprep.subr.mxu0 0.0
    %1193 = vmatpush1.msra.mxu0 %v58
    %1194 = vmatprep.subr.mxu0 0.0
    %1195 = vmatpush1.msra.mxu0 %v61
    %1196 = vmatprep.subr.mxu0 0.0
    %1197 = vmatpush1.msra.mxu0 %v64
    %1198 = vmatprep.subr.mxu0 0.0
    %1199 = vmatpush1.msra.mxu0 %v67
    %1200 = vmatprep.subr.mxu0 0.0
    %1201 = vmatpush1.msra.mxu0 %v70
    %1202 = vmatprep.subr.mxu0 0.0
    %1203 = vmatpush1.msra.mxu0 %v73
    %1204 = vmatprep.subr.mxu0 0.0
    %1205 = vmatpush1.msra.mxu0 %v76
    %1206 = vmatprep.subr.mxu0 0.0
    %1207 = vmatpush1.msra.mxu0 %v79
    %1208 = vmatprep.subr.mxu0 0.0
    %1209 = vmatpush1.msra.mxu0 %v82
    %1210 = vmatprep.subr.mxu0 0.0
    %1211 = vmatpush1.msra.mxu0 0.0
    %1212 = vmatprep.subr.mxu0 0.0
    %1213 = vmatpush1.msra.mxu0 0.0
    %1214 = vmatprep.subr.mxu0 0.0
    %1215 = vmatpush1.msra.mxu0 0.0
    %1216 = vmatprep.subr.mxu0 0.0
    %1217 = vmatpush1.msra.mxu0 0.0
    %1218 = vmatprep.subr.mxu0 0.0
    %1219 = vmatpush1.msra.mxu0 0.0
    %1220 = vmatprep.subr.mxu0 0.0
    %1221 = vmatpush1.msra.mxu0 0.0
    %1222 = vmatprep.subr.mxu0 0.0
    %1223 = vmatpush1.msra.mxu0 0.0
    %1224 = vmatprep.subr.mxu0 0.0
    %1225 = vmatpush1.msra.mxu0 0.0
    %1226 = vmatprep.subr.mxu0 0.0
    %1227 = vmatpush1.msra.mxu0 0.0
    %1228 = vmatprep.subr.mxu0 0.0
    %1229 = vmatpush1.msra.mxu0 0.0
    %1230 = vmatprep.subr.mxu0 0.0
    %1231 = vmatpush1.msra.mxu0 0.0
    %1232 = vmatprep.subr.mxu0 0.0
    %1233 = vmatpush1.msra.mxu0 0.0
    %1234 = vmatprep.subr.mxu0 0.0
    %1235 = vmatpush1.msra.mxu0 0.0
    %1236 = vmatprep.subr.mxu0 0.0
    %1237 = vmatpush1.msra.mxu0 0.0
    %1238 = vmatprep.subr.mxu0 0.0
    %1239 = vmatpush1.msra.mxu0 0.0
    %1240 = vmatprep.subr.mxu0 0.0
    %1241 = vmatpush1.msra.mxu0 0.0
    %1242 = vmatprep.mubr.f32.mxu0 0.0
    %1243 = vmatmul.mubr.f32.gmra.mrb[0].mxu0 %v965
    %v1244 = vpop.f32.mrb[0].mxu0
    %v1245 = vadd.f32 %v1104, %v1244
    %v1246 = vpop.f32.mrb[0].mxu0
    %1247 = vdwg.mxu0
    %v1248 = vadd.f32 %v1176, %v498
    %v1249 = vxor.u32 %v1248, 2147483648
    %v1250 = vmul.f32 %v1249, 1.442695
    %v1251 = vpow.pop %v1250
    %v1252 = vadd.f32 %v1251, 1.0
    %v1253 = vrcp.pop %v1252
    %v1254 = vmul.f32 1.0, %v1253
    %1256 = vrot.lane.b32.xlu0 %v1254, 127
    %v1257 = vpop.permute.xlu0 %1256
    %v1259 = vadd.f32 %v1254, %v1257
    %v1260 = vadd.f32 %v1259, 1e-07
    %v1261 = vrcp.pop %v1260
    %v1262 = vmul.f32 1.0, %v1261
    %v1263 = vmul.f32 %v1254, %v1262
    %1265 = vset.pattern.permute.xlu0 108
    %1266 = vperm.xlu0 %1265, %v1263
    %v1267 = vpop.permute.xlu0 %1266
    %v1269 = vmul.f32 %v1267, %v1176
    %1271 = vrot.lane.b32.xlu0 %v1269, 112
    %v1272 = vpop.permute.xlu0 %1271
    %v1274 = vadd.f32 %v1174, %v1272
    %1276 = vrot.lane.b32.xlu0 %v1262, 1
    %v1277 = vpop.permute.xlu0 %1276
    %v1279 = vmul.f32 %v1254, %v1277
    %1281 = vset.pattern.permute.xlu0 109
    %1282 = vperm.xlu0 %1281, %v1279
    %v1283 = vpop.permute.xlu0 %1282
    %v1285 = vmul.f32 %v1283, %v1245
    %1287 = vrot.lane.b32.xlu0 %v1285, 96
    %v1288 = vpop.permute.xlu0 %1287
    %v1290 = vadd.f32 %v1274, %v1288
    %1291 = vset.pattern.permute.xlu0 110
    %1292 = vperm.xlu0 %1291, %v1263
    %v1293 = vpop.permute.xlu0 %1292
    %v1295 = vmul.f32 %v1293, %v1245
    %1297 = vrot.lane.b32.xlu0 %v1295, 64
    %v1298 = vpop.permute.xlu0 %1297
    %v1300 = vadd.f32 %v1176, %v1298
    %1301 = vset.pattern.permute.xlu0 111
    %1302 = vperm.xlu0 %1301, %v1279
    %v1303 = vpop.permute.xlu0 %1302
    %v1305 = vmul.f32 %v1303, %v1245
    %1307 = vrot.lane.b32.xlu0 %v1305, 48
    %v1308 = vpop.permute.xlu0 %1307
    %v1310 = vadd.f32 %v1300, %v1308
    %v1311 = vsel %vm563, %v1174, %v1290
    %v1312 = vsel %vm565, %v1311, %v1174
    %v1313 = vsel %vm567, %v1176, %v1310
    %v1314 = vsel %vm563, %v1313, %v1176
    %v1315 = vsel %vm570, %v1314, 0.0
    %v1316 = vmul.f32 %v190, %v949
    %v1317 = vmul.f32 %v194, %v950
    %v1318 = vmul.f32 %v202, %v1312
    %v1319 = vmul.f32 %v206, %v1315
    %v1320 = vadd.f32 %v1316, %v1318
    %v1321 = vadd.f32 %v1317, %v1319
    %v1322 = vtanh.pop %v1320
    %v1323 = vtanh.pop %v1321
    %v1328 = vcombine.low %v1322, %v1323
    %v1329 = vcombine.low %v1320, %v1321
    %s1332 = scalar_lea.vmem [#allocation3], 32
    %1333 = vst [vmem:[%s1332] sm:$0xff] %v1328
    %1334 = vst [vmem:[%s1332 + $0x8] sm:$0xff] %v1329
    %s1335 = scalar_lea.vmem %s0, 12
    %v1336 = vld [vmem:[%s1335] sm:$0xf]
    %1337 = vmatprep.subr.mxu0 %v84
    %1338 = vmatpush1.msra.mxu0 %v83
    %1339 = vmatprep.subr.mxu0 %v87
    %1340 = vmatpush1.msra.mxu0 %v86
    %1341 = vmatprep.subr.mxu0 %v90
    %1342 = vmatpush1.msra.mxu0 %v89
    %1343 = vmatprep.subr.mxu0 %v93
    %1344 = vmatpush1.msra.mxu0 %v92
    %1345 = vmatprep.subr.mxu0 %v96
    %1346 = vmatpush1.msra.mxu0 %v95
    %1347 = vmatprep.subr.mxu0 %v99
    %1348 = vmatpush1.msra.mxu0 %v98
    %1349 = vmatprep.subr.mxu0 %v102
    %1350 = vmatpush1.msra.mxu0 %v101
    %1351 = vmatprep.subr.mxu0 %v105
    %1352 = vmatpush1.msra.mxu0 %v104
    %1353 = vmatprep.subr.mxu0 %v108
    %1354 = vmatpush1.msra.mxu0 %v107
    %1355 = vmatprep.subr.mxu0 %v111
    %1356 = vmatpush1.msra.mxu0 %v110
    %1357 = vmatprep.subr.mxu0 %v114
    %1358 = vmatpush1.msra.mxu0 %v113
    %1359 = vmatprep.subr.mxu0 %v117
    %1360 = vmatpush1.msra.mxu0 %v116
    %1361 = vmatprep.subr.mxu0 %v120
    %1362 = vmatpush1.msra.mxu0 %v119
    %1363 = vmatprep.subr.mxu0 %v123
    %1364 = vmatpush1.msra.mxu0 %v122
    %1365 = vmatprep.subr.mxu0 %v126
    %1366 = vmatpush1.msra.mxu0 %v125
    %1367 = vmatprep.subr.mxu0 %v129
    %1368 = vmatpush1.msra.mxu0 %v128
    %1369 = vmatprep.subr.mxu0 %v132
    %1370 = vmatpush1.msra.mxu0 %v131
    %1371 = vmatprep.subr.mxu0 %v135
    %1372 = vmatpush1.msra.mxu0 %v134
    %1373 = vmatprep.subr.mxu0 %v138
    %1374 = vmatpush1.msra.mxu0 %v137
    %1375 = vmatprep.subr.mxu0 %v141
    %1376 = vmatpush1.msra.mxu0 %v140
    %1377 = vmatprep.subr.mxu0 %v144
    %1378 = vmatpush1.msra.mxu0 %v143
    %1379 = vmatprep.subr.mxu0 %v147
    %1380 = vmatpush1.msra.mxu0 %v146
    %1381 = vmatprep.subr.mxu0 %v150
    %1382 = vmatpush1.msra.mxu0 %v149
    %1383 = vmatprep.subr.mxu0 %v153
    %1384 = vmatpush1.msra.mxu0 %v152
    %1385 = vmatprep.subr.mxu0 %v156
    %1386 = vmatpush1.msra.mxu0 %v155
    %1387 = vmatprep.subr.mxu0 %v159
    %1388 = vmatpush1.msra.mxu0 %v158
    %1389 = vmatprep.subr.mxu0 %v162
    %1390 = vmatpush1.msra.mxu0 %v161
    %1391 = vmatprep.subr.mxu0 %v165
    %1392 = vmatpush1.msra.mxu0 %v164
    %1393 = vmatprep.subr.mxu0 %v168
    %1394 = vmatpush1.msra.mxu0 %v167
    %1395 = vmatprep.subr.mxu0 %v171
    %1396 = vmatpush1.msra.mxu0 %v170
    %1397 = vmatprep.subr.mxu0 %v174
    %1398 = vmatpush1.msra.mxu0 %v173
    %1399 = vmatprep.subr.mxu0 %v177
    %1400 = vmatpush1.msra.mxu0 %v176
    %1401 = vmatprep.mubr.f32.mxu0 %v1323
    %1402 = vmatmul.mubr.f32.gmra.mrb[0].mxu0 %v1322
    %v1403 = vpop.f32.mrb[0].mxu0
    %v1404 = vadd.f32 0.0, %v1403
    %v1405 = vpop.f32.mrb[0].mxu0
    %v1406 = vadd.f32 0.0, %v1405
    %1407 = vdwg.mxu0
    %1408 = vmatprep.subr.mxu0 0.0
    %1409 = vmatpush1.msra.mxu0 %v85
    %1410 = vmatprep.subr.mxu0 0.0
    %1411 = vmatpush1.msra.mxu0 %v88
    %1412 = vmatprep.subr.mxu0 0.0
    %1413 = vmatpush1.msra.mxu0 %v91
    %1414 = vmatprep.subr.mxu0 0.0
    %1415 = vmatpush1.msra.mxu0 %v94
    %1416 = vmatprep.subr.mxu0 0.0
    %1417 = vmatpush1.msra.mxu0 %v97
    %1418 = vmatprep.subr.mxu0 0.0
    %1419 = vmatpush1.msra.mxu0 %v100
    %1420 = vmatprep.subr.mxu0 0.0
    %1421 = vmatpush1.msra.mxu0 %v103
    %1422 = vmatprep.subr.mxu0 0.0
    %1423 = vmatpush1.msra.mxu0 %v106
    %1424 = vmatprep.subr.mxu0 0.0
    %1425 = vmatpush1.msra.mxu0 %v109
    %1426 = vmatprep.subr.mxu0 0.0
    %1427 = vmatpush1.msra.mxu0 %v112
    %1428 = vmatprep.subr.mxu0 0.0
    %1429 = vmatpush1.msra.mxu0 %v115
    %1430 = vmatprep.subr.mxu0 0.0
    %1431 = vmatpush1.msra.mxu0 %v118
    %1432 = vmatprep.subr.mxu0 0.0
    %1433 = vmatpush1.msra.mxu0 %v121
    %1434 = vmatprep.subr.mxu0 0.0
    %1435 = vmatpush1.msra.mxu0 %v124
    %1436 = vmatprep.subr.mxu0 0.0
    %1437 = vmatpush1.msra.mxu0 %v127
    %1438 = vmatprep.subr.mxu0 0.0
    %1439 = vmatpush1.msra.mxu0 %v130
    %1440 = vmatprep.subr.mxu0 0.0
    %1441 = vmatpush1.msra.mxu0 %v133
    %1442 = vmatprep.subr.mxu0 0.0
    %1443 = vmatpush1.msra.mxu0 %v136
    %1444 = vmatprep.subr.mxu0 0.0
    %1445 = vmatpush1.msra.mxu0 %v139
    %1446 = vmatprep.subr.mxu0 0.0
    %1447 = vmatpush1.msra.mxu0 %v142
    %1448 = vmatprep.subr.mxu0 0.0
    %1449 = vmatpush1.msra.mxu0 %v145
    %1450 = vmatprep.subr.mxu0 0.0
    %1451 = vmatpush1.msra.mxu0 %v148
    %1452 = vmatprep.subr.mxu0 0.0
    %1453 = vmatpush1.msra.mxu0 %v151
    %1454 = vmatprep.subr.mxu0 0.0
    %1455 = vmatpush1.msra.mxu0 %v154
    %1456 = vmatprep.subr.mxu0 0.0
    %1457 = vmatpush1.msra.mxu0 %v157
    %1458 = vmatprep.subr.mxu0 0.0
    %1459 = vmatpush1.msra.mxu0 %v160
    %1460 = vmatprep.subr.mxu0 0.0
    %1461 = vmatpush1.msra.mxu0 %v163
    %1462 = vmatprep.subr.mxu0 0.0
    %1463 = vmatpush1.msra.mxu0 %v166
    %1464 = vmatprep.subr.mxu0 0.0
    %1465 = vmatpush1.msra.mxu0 %v169
    %1466 = vmatprep.subr.mxu0 0.0
    %1467 = vmatpush1.msra.mxu0 %v172
    %1468 = vmatprep.subr.mxu0 0.0
    %1469 = vmatpush1.msra.mxu0 %v175
    %1470 = vmatprep.subr.mxu0 0.0
    %1471 = vmatpush1.msra.mxu0 %v178
    %1472 = vmatprep.mubr.f32.mxu0 %v1323
    %1473 = vmatmul.mubr.f32.gmra.mrb[0].mxu0 %v1322
    %v1474 = vpop.f32.mrb[0].mxu0
    %v1475 = vadd.f32 0.0, %v1474
    %v1476 = vpop.f32.mrb[0].mxu0
    %1477 = vdwg.mxu0
    %1478 = vmatprep.subr.mxu0 %v36
    %1479 = vmatpush1.msra.mxu0 %v35
    %1480 = vmatprep.subr.mxu0 %v39
    %1481 = vmatpush1.msra.mxu0 %v38
    %1482 = vmatprep.subr.mxu0 %v42
    %1483 = vmatpush1.msra.mxu0 %v41
    %1484 = vmatprep.subr.mxu0 %v45
    %1485 = vmatpush1.msra.mxu0 %v44
    %1486 = vmatprep.subr.mxu0 %v48
    %1487 = vmatpush1.msra.mxu0 %v47
    %1488 = vmatprep.subr.mxu0 %v51
    %1489 = vmatpush1.msra.mxu0 %v50
    %1490 = vmatprep.subr.mxu0 %v54
    %1491 = vmatpush1.msra.mxu0 %v53
    %1492 = vmatprep.subr.mxu0 %v57
    %1493 = vmatpush1.msra.mxu0 %v56
    %1494 = vmatprep.subr.mxu0 %v60
    %1495 = vmatpush1.msra.mxu0 %v59
    %1496 = vmatprep.subr.mxu0 %v63
    %1497 = vmatpush1.msra.mxu0 %v62
    %1498 = vmatprep.subr.mxu0 %v66
    %1499 = vmatpush1.msra.mxu0 %v65
    %1500 = vmatprep.subr.mxu0 %v69
    %1501 = vmatpush1.msra.mxu0 %v68
    %1502 = vmatprep.subr.mxu0 %v72
    %1503 = vmatpush1.msra.mxu0 %v71
    %1504 = vmatprep.subr.mxu0 %v75
    %1505 = vmatpush1.msra.mxu0 %v74
    %1506 = vmatprep.subr.mxu0 %v78
    %1507 = vmatpush1.msra.mxu0 %v77
    %1508 = vmatprep.subr.mxu0 %v81
    %1509 = vmatpush1.msra.mxu0 %v80
    %1510 = vmatprep.subr.mxu0 0.0
    %1511 = vmatpush1.msra.mxu0 0.0
    %1512 = vmatprep.subr.mxu0 0.0
    %1513 = vmatpush1.msra.mxu0 0.0
    %1514 = vmatprep.subr.mxu0 0.0
    %1515 = vmatpush1.msra.mxu0 0.0
    %1516 = vmatprep.subr.mxu0 0.0
    %1517 = vmatpush1.msra.mxu0 0.0
    %1518 = vmatprep.subr.mxu0 0.0
    %1519 = vmatpush1.msra.mxu0 0.0
    %1520 = vmatprep.subr.mxu0 0.0
    %1521 = vmatpush1.msra.mxu0 0.0
    %1522 = vmatprep.subr.mxu0 0.0
    %1523 = vmatpush1.msra.mxu0 0.0
    %1524 = vmatprep.subr.mxu0 0.0
    %1525 = vmatpush1.msra.mxu0 0.0
    %1526 = vmatprep.subr.mxu0 0.0
    %1527 = vmatpush1.msra.mxu0 0.0
    %1528 = vmatprep.subr.mxu0 0.0
    %1529 = vmatpush1.msra.mxu0 0.0
    %1530 = vmatprep.subr.mxu0 0.0
    %1531 = vmatpush1.msra.mxu0 0.0
    %1532 = vmatprep.subr.mxu0 0.0
    %1533 = vmatpush1.msra.mxu0 0.0
    %1534 = vmatprep.subr.mxu0 0.0
    %1535 = vmatpush1.msra.mxu0 0.0
    %1536 = vmatprep.subr.mxu0 0.0
    %1537 = vmatpush1.msra.mxu0 0.0
    %1538 = vmatprep.subr.mxu0 0.0
    %1539 = vmatpush1.msra.mxu0 0.0
    %1540 = vmatprep.subr.mxu0 0.0
    %1541 = vmatpush1.msra.mxu0 0.0
    %1542 = vmatprep.mubr.f32.mxu0 0.0
    %1543 = vmatmul.mubr.f32.gmra.mrb[0].mxu0 %v1336
    %v1544 = vpop.f32.mrb[0].mxu0
    %v1545 = vadd.f32 %v1404, %v1544
    %v1546 = vpop.f32.mrb[0].mxu0
    %v1547 = vadd.f32 %v1406, %v1546
    %1548 = vdwg.mxu0
    %1549 = vmatprep.subr.mxu0 0.0
    %1550 = vmatpush1.msra.mxu0 %v37
    %1551 = vmatprep.subr.mxu0 0.0
    %1552 = vmatpush1.msra.mxu0 %v40
    %1553 = vmatprep.subr.mxu0 0.0
    %1554 = vmatpush1.msra.mxu0 %v43
    %1555 = vmatprep.subr.mxu0 0.0
    %1556 = vmatpush1.msra.mxu0 %v46
    %1557 = vmatprep.subr.mxu0 0.0
    %1558 = vmatpush1.msra.mxu0 %v49
    %1559 = vmatprep.subr.mxu0 0.0
    %1560 = vmatpush1.msra.mxu0 %v52
    %1561 = vmatprep.subr.mxu0 0.0
    %1562 = vmatpush1.msra.mxu0 %v55
    %1563 = vmatprep.subr.mxu0 0.0
    %1564 = vmatpush1.msra.mxu0 %v58
    %1565 = vmatprep.subr.mxu0 0.0
    %1566 = vmatpush1.msra.mxu0 %v61
    %1567 = vmatprep.subr.mxu0 0.0
    %1568 = vmatpush1.msra.mxu0 %v64
    %1569 = vmatprep.subr.mxu0 0.0
    %1570 = vmatpush1.msra.mxu0 %v67
    %1571 = vmatprep.subr.mxu0 0.0
    %1572 = vmatpush1.msra.mxu0 %v70
    %1573 = vmatprep.subr.mxu0 0.0
    %1574 = vmatpush1.msra.mxu0 %v73
    %1575 = vmatprep.subr.mxu0 0.0
    %1576 = vmatpush1.msra.mxu0 %v76
    %1577 = vmatprep.subr.mxu0 0.0
    %1578 = vmatpush1.msra.mxu0 %v79
    %1579 = vmatprep.subr.mxu0 0.0
    %1580 = vmatpush1.msra.mxu0 %v82
    %1581 = vmatprep.subr.mxu0 0.0
    %1582 = vmatpush1.msra.mxu0 0.0
    %1583 = vmatprep.subr.mxu0 0.0
    %1584 = vmatpush1.msra.mxu0 0.0
    %1585 = vmatprep.subr.mxu0 0.0
    %1586 = vmatpush1.msra.mxu0 0.0
    %1587 = vmatprep.subr.mxu0 0.0
    %1588 = vmatpush1.msra.mxu0 0.0
    %1589 = vmatprep.subr.mxu0 0.0
    %1590 = vmatpush1.msra.mxu0 0.0
    %1591 = vmatprep.subr.mxu0 0.0
    %1592 = vmatpush1.msra.mxu0 0.0
    %1593 = vmatprep.subr.mxu0 0.0
    %1594 = vmatpush1.msra.mxu0 0.0
    %1595 = vmatprep.subr.mxu0 0.0
    %1596 = vmatpush1.msra.mxu0 0.0
    %1597 = vmatprep.subr.mxu0 0.0
    %1598 = vmatpush1.msra.mxu0 0.0
    %1599 = vmatprep.subr.mxu0 0.0
    %1600 = vmatpush1.msra.mxu0 0.0
    %1601 = vmatprep.subr.mxu0 0.0
    %1602 = vmatpush1.msra.mxu0 0.0
    %1603 = vmatprep.subr.mxu0 0.0
    %1604 = vmatpush1.msra.mxu0 0.0
    %1605 = vmatprep.subr.mxu0 0.0
    %1606 = vmatpush1.msra.mxu0 0.0
    %1607 = vmatprep.subr.mxu0 0.0
    %1608 = vmatpush1.msra.mxu0 0.0
    %1609 = vmatprep.subr.mxu0 0.0
    %1610 = vmatpush1.msra.mxu0 0.0
    %1611 = vmatprep.subr.mxu0 0.0
    %1612 = vmatpush1.msra.mxu0 0.0
    %1613 = vmatprep.mubr.f32.mxu0 0.0
    %1614 = vmatmul.mubr.f32.gmra.mrb[0].mxu0 %v1336
    %v1615 = vpop.f32.mrb[0].mxu0
    %v1616 = vadd.f32 %v1475, %v1615
    %v1617 = vpop.f32.mrb[0].mxu0
    %1618 = vdwg.mxu0
    %v1619 = vadd.f32 %v1547, %v498
    %v1620 = vxor.u32 %v1619, 2147483648
    %v1621 = vmul.f32 %v1620, 1.442695
    %v1622 = vpow.pop %v1621
    %v1623 = vadd.f32 %v1622, 1.0
    %v1624 = vrcp.pop %v1623
    %v1625 = vmul.f32 1.0, %v1624
    %1627 = vrot.lane.b32.xlu0 %v1625, 127
    %v1628 = vpop.permute.xlu0 %1627
    %v1630 = vadd.f32 %v1625, %v1628
    %v1631 = vadd.f32 %v1630, 1e-07
    %v1632 = vrcp.pop %v1631
    %v1633 = vmul.f32 1.0, %v1632
    %v1634 = vmul.f32 %v1625, %v1633
    %1636 = vset.pattern.permute.xlu0 108
    %1637 = vperm.xlu0 %1636, %v1634
    %v1638 = vpop.permute.xlu0 %1637
    %v1640 = vmul.f32 %v1638, %v1547
    %1642 = vrot.lane.b32.xlu0 %v1640, 112
    %v1643 = vpop.permute.xlu0 %1642
    %v1645 = vadd.f32 %v1545, %v1643
    %1647 = vrot.lane.b32.xlu0 %v1633, 1
    %v1648 = vpop.permute.xlu0 %1647
    %v1650 = vmul.f32 %v1625, %v1648
    %1652 = vset.pattern.permute.xlu0 109
    %1653 = vperm.xlu0 %1652, %v1650
    %v1654 = vpop.permute.xlu0 %1653
    %v1656 = vmul.f32 %v1654, %v1616
    %1658 = vrot.lane.b32.xlu0 %v1656, 96
    %v1659 = vpop.permute.xlu0 %1658
    %v1661 = vadd.f32 %v1645, %v1659
    %1662 = vset.pattern.permute.xlu0 110
    %1663 = vperm.xlu0 %1662, %v1634
    %v1664 = vpop.permute.xlu0 %1663
    %v1666 = vmul.f32 %v1664, %v1616
    %1668 = vrot.lane.b32.xlu0 %v1666, 64
    %v1669 = vpop.permute.xlu0 %1668
    %v1671 = vadd.f32 %v1547, %v1669
    %1672 = vset.pattern.permute.xlu0 111
    %1673 = vperm.xlu0 %1672, %v1650
    %v1674 = vpop.permute.xlu0 %1673
    %v1676 = vmul.f32 %v1674, %v1616
    %1678 = vrot.lane.b32.xlu0 %v1676, 48
    %v1679 = vpop.permute.xlu0 %1678
    %v1681 = vadd.f32 %v1671, %v1679
    %v1682 = vsel %vm563, %v1545, %v1661
    %v1683 = vsel %vm565, %v1682, %v1545
    %v1684 = vsel %vm567, %v1547, %v1681
    %v1685 = vsel %vm563, %v1684, %v1547
    %v1686 = vsel %vm570, %v1685, 0.0
    %v1687 = vmul.f32 %v190, %v1320
    %v1688 = vmul.f32 %v194, %v1321
    %v1689 = vmul.f32 %v202, %v1683
    %v1690 = vmul.f32 %v206, %v1686
    %v1691 = vadd.f32 %v1687, %v1689
    %v1692 = vadd.f32 %v1688, %v1690
    %v1693 = vtanh.pop %v1691
    %v1694 = vtanh.pop %v1692
    %v1699 = vcombine.low %v1693, %v1694
    %v1700 = vcombine.low %v1691, %v1692
    %s1703 = scalar_lea.vmem [#allocation3], 48
    %1704 = vst [vmem:[%s1703] sm:$0xff] %v1699
    %1705 = vst [vmem:[%s1703 + $0x8] sm:$0xff] %v1700
    %s1706 = scalar_lea.vmem %s0, 16
    %v1707 = vld [vmem:[%s1706] sm:$0xf]
    %1708 = vmatprep.subr.mxu0 %v84
    %1709 = vmatpush1.msra.mxu0 %v83
    %1710 = vmatprep.subr.mxu0 %v87
    %1711 = vmatpush1.msra.mxu0 %v86
    %1712 = vmatprep.subr.mxu0 %v90
    %1713 = vmatpush1.msra.mxu0 %v89
    %1714 = vmatprep.subr.mxu0 %v93
    %1715 = vmatpush1.msra.mxu0 %v92
    %1716 = vmatprep.subr.mxu0 %v96
    %1717 = vmatpush1.msra.mxu0 %v95
    %1718 = vmatprep.subr.mxu0 %v99
    %1719 = vmatpush1.msra.mxu0 %v98
    %1720 = vmatprep.subr.mxu0 %v102
    %1721 = vmatpush1.msra.mxu0 %v101
    %1722 = vmatprep.subr.mxu0 %v105
    %1723 = vmatpush1.msra.mxu0 %v104
    %1724 = vmatprep.subr.mxu0 %v108
    %1725 = vmatpush1.msra.mxu0 %v107
    %1726 = vmatprep.subr.mxu0 %v111
    %1727 = vmatpush1.msra.mxu0 %v110
    %1728 = vmatprep.subr.mxu0 %v114
    %1729 = vmatpush1.msra.mxu0 %v113
    %1730 = vmatprep.subr.mxu0 %v117
    %1731 = vmatpush1.msra.mxu0 %v116
    %1732 = vmatprep.subr.mxu0 %v120
    %1733 = vmatpush1.msra.mxu0 %v119
    %1734 = vmatprep.subr.mxu0 %v123
    %1735 = vmatpush1.msra.mxu0 %v122
    %1736 = vmatprep.subr.mxu0 %v126
    %1737 = vmatpush1.msra.mxu0 %v125
    %1738 = vmatprep.subr.mxu0 %v129
    %1739 = vmatpush1.msra.mxu0 %v128
    %1740 = vmatprep.subr.mxu0 %v132
    %1741 = vmatpush1.msra.mxu0 %v131
    %1742 = vmatprep.subr.mxu0 %v135
    %1743 = vmatpush1.msra.mxu0 %v134
    %1744 = vmatprep.subr.mxu0 %v138
    %1745 = vmatpush1.msra.mxu0 %v137
    %1746 = vmatprep.subr.mxu0 %v141
    %1747 = vmatpush1.msra.mxu0 %v140
    %1748 = vmatprep.subr.mxu0 %v144
    %1749 = vmatpush1.msra.mxu0 %v143
    %1750 = vmatprep.subr.mxu0 %v147
    %1751 = vmatpush1.msra.mxu0 %v146
    %1752 = vmatprep.subr.mxu0 %v150
    %1753 = vmatpush1.msra.mxu0 %v149
    %1754 = vmatprep.subr.mxu0 %v153
    %1755 = vmatpush1.msra.mxu0 %v152
    %1756 = vmatprep.subr.mxu0 %v156
    %1757 = vmatpush1.msra.mxu0 %v155
    %1758 = vmatprep.subr.mxu0 %v159
    %1759 = vmatpush1.msra.mxu0 %v158
    %1760 = vmatprep.subr.mxu0 %v162
    %1761 = vmatpush1.msra.mxu0 %v161
    %1762 = vmatprep.subr.mxu0 %v165
    %1763 = vmatpush1.msra.mxu0 %v164
    %1764 = vmatprep.subr.mxu0 %v168
    %1765 = vmatpush1.msra.mxu0 %v167
    %1766 = vmatprep.subr.mxu0 %v171
    %1767 = vmatpush1.msra.mxu0 %v170
    %1768 = vmatprep.subr.mxu0 %v174
    %1769 = vmatpush1.msra.mxu0 %v173
    %1770 = vmatprep.subr.mxu0 %v177
    %1771 = vmatpush1.msra.mxu0 %v176
    %1772 = vmatprep.mubr.f32.mxu0 %v1694
    %1773 = vmatmul.mubr.f32.gmra.mrb[0].mxu0 %v1693
    %v1774 = vpop.f32.mrb[0].mxu0
    %v1775 = vadd.f32 0.0, %v1774
    %v1776 = vpop.f32.mrb[0].mxu0
    %v1777 = vadd.f32 0.0, %v1776
    %1778 = vdwg.mxu0
    %1779 = vmatprep.subr.mxu0 0.0
    %1780 = vmatpush1.msra.mxu0 %v85
    %1781 = vmatprep.subr.mxu0 0.0
    %1782 = vmatpush1.msra.mxu0 %v88
    %1783 = vmatprep.subr.mxu0 0.0
    %1784 = vmatpush1.msra.mxu0 %v91
    %1785 = vmatprep.subr.mxu0 0.0
    %1786 = vmatpush1.msra.mxu0 %v94
    %1787 = vmatprep.subr.mxu0 0.0
    %1788 = vmatpush1.msra.mxu0 %v97
    %1789 = vmatprep.subr.mxu0 0.0
    %1790 = vmatpush1.msra.mxu0 %v100
    %1791 = vmatprep.subr.mxu0 0.0
    %1792 = vmatpush1.msra.mxu0 %v103
    %1793 = vmatprep.subr.mxu0 0.0
    %1794 = vmatpush1.msra.mxu0 %v106
    %1795 = vmatprep.subr.mxu0 0.0
    %1796 = vmatpush1.msra.mxu0 %v109
    %1797 = vmatprep.subr.mxu0 0.0
    %1798 = vmatpush1.msra.mxu0 %v112
    %1799 = vmatprep.subr.mxu0 0.0
    %1800 = vmatpush1.msra.mxu0 %v115
    %1801 = vmatprep.subr.mxu0 0.0
    %1802 = vmatpush1.msra.mxu0 %v118
    %1803 = vmatprep.subr.mxu0 0.0
    %1804 = vmatpush1.msra.mxu0 %v121
    %1805 = vmatprep.subr.mxu0 0.0
    %1806 = vmatpush1.msra.mxu0 %v124
    %1807 = vmatprep.subr.mxu0 0.0
    %1808 = vmatpush1.msra.mxu0 %v127
    %1809 = vmatprep.subr.mxu0 0.0
    %1810 = vmatpush1.msra.mxu0 %v130
    %1811 = vmatprep.subr.mxu0 0.0
    %1812 = vmatpush1.msra.mxu0 %v133
    %1813 = vmatprep.subr.mxu0 0.0
    %1814 = vmatpush1.msra.mxu0 %v136
    %1815 = vmatprep.subr.mxu0 0.0
    %1816 = vmatpush1.msra.mxu0 %v139
    %1817 = vmatprep.subr.mxu0 0.0
    %1818 = vmatpush1.msra.mxu0 %v142
    %1819 = vmatprep.subr.mxu0 0.0
    %1820 = vmatpush1.msra.mxu0 %v145
    %1821 = vmatprep.subr.mxu0 0.0
    %1822 = vmatpush1.msra.mxu0 %v148
    %1823 = vmatprep.subr.mxu0 0.0
    %1824 = vmatpush1.msra.mxu0 %v151
    %1825 = vmatprep.subr.mxu0 0.0
    %1826 = vmatpush1.msra.mxu0 %v154
    %1827 = vmatprep.subr.mxu0 0.0
    %1828 = vmatpush1.msra.mxu0 %v157
    %1829 = vmatprep.subr.mxu0 0.0
    %1830 = vmatpush1.msra.mxu0 %v160
    %1831 = vmatprep.subr.mxu0 0.0
    %1832 = vmatpush1.msra.mxu0 %v163
    %1833 = vmatprep.subr.mxu0 0.0
    %1834 = vmatpush1.msra.mxu0 %v166
    %1835 = vmatprep.subr.mxu0 0.0
    %1836 = vmatpush1.msra.mxu0 %v169
    %1837 = vmatprep.subr.mxu0 0.0
    %1838 = vmatpush1.msra.mxu0 %v172
    %1839 = vmatprep.subr.mxu0 0.0
    %1840 = vmatpush1.msra.mxu0 %v175
    %1841 = vmatprep.subr.mxu0 0.0
    %1842 = vmatpush1.msra.mxu0 %v178
    %1843 = vmatprep.mubr.f32.mxu0 %v1694
    %1844 = vmatmul.mubr.f32.gmra.mrb[0].mxu0 %v1693
    %v1845 = vpop.f32.mrb[0].mxu0
    %v1846 = vadd.f32 0.0, %v1845
    %v1847 = vpop.f32.mrb[0].mxu0
    %1848 = vdwg.mxu0
    %1849 = vmatprep.subr.mxu0 %v36
    %1850 = vmatpush1.msra.mxu0 %v35
    %1851 = vmatprep.subr.mxu0 %v39
    %1852 = vmatpush1.msra.mxu0 %v38
    %1853 = vmatprep.subr.mxu0 %v42
    %1854 = vmatpush1.msra.mxu0 %v41
    %1855 = vmatprep.subr.mxu0 %v45
    %1856 = vmatpush1.msra.mxu0 %v44
    %1857 = vmatprep.subr.mxu0 %v48
    %1858 = vmatpush1.msra.mxu0 %v47
    %1859 = vmatprep.subr.mxu0 %v51
    %1860 = vmatpush1.msra.mxu0 %v50
    %1861 = vmatprep.subr.mxu0 %v54
    %1862 = vmatpush1.msra.mxu0 %v53
    %1863 = vmatprep.subr.mxu0 %v57
    %1864 = vmatpush1.msra.mxu0 %v56
    %1865 = vmatprep.subr.mxu0 %v60
    %1866 = vmatpush1.msra.mxu0 %v59
    %1867 = vmatprep.subr.mxu0 %v63
    %1868 = vmatpush1.msra.mxu0 %v62
    %1869 = vmatprep.subr.mxu0 %v66
    %1870 = vmatpush1.msra.mxu0 %v65
    %1871 = vmatprep.subr.mxu0 %v69
    %1872 = vmatpush1.msra.mxu0 %v68
    %1873 = vmatprep.subr.mxu0 %v72
    %1874 = vmatpush1.msra.mxu0 %v71
    %1875 = vmatprep.subr.mxu0 %v75
    %1876 = vmatpush1.msra.mxu0 %v74
    %1877 = vmatprep.subr.mxu0 %v78
    %1878 = vmatpush1.msra.mxu0 %v77
    %1879 = vmatprep.subr.mxu0 %v81
    %1880 = vmatpush1.msra.mxu0 %v80
    %1881 = vmatprep.subr.mxu0 0.0
    %1882 = vmatpush1.msra.mxu0 0.0
    %1883 = vmatprep.subr.mxu0 0.0
    %1884 = vmatpush1.msra.mxu0 0.0
    %1885 = vmatprep.subr.mxu0 0.0
    %1886 = vmatpush1.msra.mxu0 0.0
    %1887 = vmatprep.subr.mxu0 0.0
    %1888 = vmatpush1.msra.mxu0 0.0
    %1889 = vmatprep.subr.mxu0 0.0
    %1890 = vmatpush1.msra.mxu0 0.0
    %1891 = vmatprep.subr.mxu0 0.0
    %1892 = vmatpush1.msra.mxu0 0.0
    %1893 = vmatprep.subr.mxu0 0.0
    %1894 = vmatpush1.msra.mxu0 0.0
    %1895 = vmatprep.subr.mxu0 0.0
    %1896 = vmatpush1.msra.mxu0 0.0
    %1897 = vmatprep.subr.mxu0 0.0
    %1898 = vmatpush1.msra.mxu0 0.0
    %1899 = vmatprep.subr.mxu0 0.0
    %1900 = vmatpush1.msra.mxu0 0.0
    %1901 = vmatprep.subr.mxu0 0.0
    %1902 = vmatpush1.msra.mxu0 0.0
    %1903 = vmatprep.subr.mxu0 0.0
    %1904 = vmatpush1.msra.mxu0 0.0
    %1905 = vmatprep.subr.mxu0 0.0
    %1906 = vmatpush1.msra.mxu0 0.0
    %1907 = vmatprep.subr.mxu0 0.0
    %1908 = vmatpush1.msra.mxu0 0.0
    %1909 = vmatprep.subr.mxu0 0.0
    %1910 = vmatpush1.msra.mxu0 0.0
    %1911 = vmatprep.subr.mxu0 0.0
    %1912 = vmatpush1.msra.mxu0 0.0
    %1913 = vmatprep.mubr.f32.mxu0 0.0
    %1914 = vmatmul.mubr.f32.gmra.mrb[0].mxu0 %v1707
    %v1915 = vpop.f32.mrb[0].mxu0
    %v1916 = vadd.f32 %v1775, %v1915
    %v1917 = vpop.f32.mrb[0].mxu0
    %v1918 = vadd.f32 %v1777, %v1917
    %1919 = vdwg.mxu0
    %1920 = vmatprep.subr.mxu0 0.0
    %1921 = vmatpush1.msra.mxu0 %v37
    %1922 = vmatprep.subr.mxu0 0.0
    %1923 = vmatpush1.msra.mxu0 %v40
    %1924 = vmatprep.subr.mxu0 0.0
    %1925 = vmatpush1.msra.mxu0 %v43
    %1926 = vmatprep.subr.mxu0 0.0
    %1927 = vmatpush1.msra.mxu0 %v46
    %1928 = vmatprep.subr.mxu0 0.0
    %1929 = vmatpush1.msra.mxu0 %v49
    %1930 = vmatprep.subr.mxu0 0.0
    %1931 = vmatpush1.msra.mxu0 %v52
    %1932 = vmatprep.subr.mxu0 0.0
    %1933 = vmatpush1.msra.mxu0 %v55
    %1934 = vmatprep.subr.mxu0 0.0
    %1935 = vmatpush1.msra.mxu0 %v58
    %1936 = vmatprep.subr.mxu0 0.0
    %1937 = vmatpush1.msra.mxu0 %v61
    %1938 = vmatprep.subr.mxu0 0.0
    %1939 = vmatpush1.msra.mxu0 %v64
    %1940 = vmatprep.subr.mxu0 0.0
    %1941 = vmatpush1.msra.mxu0 %v67
    %1942 = vmatprep.subr.mxu0 0.0
    %1943 = vmatpush1.msra.mxu0 %v70
    %1944 = vmatprep.subr.mxu0 0.0
    %1945 = vmatpush1.msra.mxu0 %v73
    %1946 = vmatprep.subr.mxu0 0.0
    %1947 = vmatpush1.msra.mxu0 %v76
    %1948 = vmatprep.subr.mxu0 0.0
    %1949 = vmatpush1.msra.mxu0 %v79
    %1950 = vmatprep.subr.mxu0 0.0
    %1951 = vmatpush1.msra.mxu0 %v82
    %1952 = vmatprep.subr.mxu0 0.0
    %1953 = vmatpush1.msra.mxu0 0.0
    %1954 = vmatprep.subr.mxu0 0.0
    %1955 = vmatpush1.msra.mxu0 0.0
    %1956 = vmatprep.subr.mxu0 0.0
    %1957 = vmatpush1.msra.mxu0 0.0
    %1958 = vmatprep.subr.mxu0 0.0
    %1959 = vmatpush1.msra.mxu0 0.0
    %1960 = vmatprep.subr.mxu0 0.0
    %1961 = vmatpush1.msra.mxu0 0.0
    %1962 = vmatprep.subr.mxu0 0.0
    %1963 = vmatpush1.msra.mxu0 0.0
    %1964 = vmatprep.subr.mxu0 0.0
    %1965 = vmatpush1.msra.mxu0 0.0
    %1966 = vmatprep.subr.mxu0 0.0
    %1967 = vmatpush1.msra.mxu0 0.0
    %1968 = vmatprep.subr.mxu0 0.0
    %1969 = vmatpush1.msra.mxu0 0.0
    %1970 = vmatprep.subr.mxu0 0.0
    %1971 = vmatpush1.msra.mxu0 0.0
    %1972 = vmatprep.subr.mxu0 0.0
    %1973 = vmatpush1.msra.mxu0 0.0
    %1974 = vmatprep.subr.mxu0 0.0
    %1975 = vmatpush1.msra.mxu0 0.0
    %1976 = vmatprep.subr.mxu0 0.0
    %1977 = vmatpush1.msra.mxu0 0.0
    %1978 = vmatprep.subr.mxu0 0.0
    %1979 = vmatpush1.msra.mxu0 0.0
    %1980 = vmatprep.subr.mxu0 0.0
    %1981 = vmatpush1.msra.mxu0 0.0
    %1982 = vmatprep.subr.mxu0 0.0
    %1983 = vmatpush1.msra.mxu0 0.0
    %1984 = vmatprep.mubr.f32.mxu0 0.0
    %1985 = vmatmul.mubr.f32.gmra.mrb[0].mxu0 %v1707
    %v1986 = vpop.f32.mrb[0].mxu0
    %v1987 = vadd.f32 %v1846, %v1986
    %v1988 = vpop.f32.mrb[0].mxu0
    %1989 = vdwg.mxu0
    %v1990 = vadd.f32 %v1918, %v498
    %v1991 = vxor.u32 %v1990, 2147483648
    %v1992 = vmul.f32 %v1991, 1.442695
    %v1993 = vpow.pop %v1992
    %v1994 = vadd.f32 %v1993, 1.0
    %v1995 = vrcp.pop %v1994
    %v1996 = vmul.f32 1.0, %v1995
    %1998 = vrot.lane.b32.xlu0 %v1996, 127
    %v1999 = vpop.permute.xlu0 %1998
    %v2001 = vadd.f32 %v1996, %v1999
    %v2002 = vadd.f32 %v2001, 1e-07
    %v2003 = vrcp.pop %v2002
    %v2004 = vmul.f32 1.0, %v2003
    %v2005 = vmul.f32 %v1996, %v2004
    %2007 = vset.pattern.permute.xlu0 108
    %2008 = vperm.xlu0 %2007, %v2005
    %v2009 = vpop.permute.xlu0 %2008
    %v2011 = vmul.f32 %v2009, %v1918
    %2013 = vrot.lane.b32.xlu0 %v2011, 112
    %v2014 = vpop.permute.xlu0 %2013
    %v2016 = vadd.f32 %v1916, %v2014
    %2018 = vrot.lane.b32.xlu0 %v2004, 1
    %v2019 = vpop.permute.xlu0 %2018
    %v2021 = vmul.f32 %v1996, %v2019
    %2023 = vset.pattern.permute.xlu0 109
    %2024 = vperm.xlu0 %2023, %v2021
    %v2025 = vpop.permute.xlu0 %2024
    %v2027 = vmul.f32 %v2025, %v1987
    %2029 = vrot.lane.b32.xlu0 %v2027, 96
    %v2030 = vpop.permute.xlu0 %2029
    %v2032 = vadd.f32 %v2016, %v2030
    %2033 = vset.pattern.permute.xlu0 110
    %2034 = vperm.xlu0 %2033, %v2005
    %v2035 = vpop.permute.xlu0 %2034
    %v2037 = vmul.f32 %v2035, %v1987
    %2039 = vrot.lane.b32.xlu0 %v2037, 64
    %v2040 = vpop.permute.xlu0 %2039
    %v2042 = vadd.f32 %v1918, %v2040
    %2043 = vset.pattern.permute.xlu0 111
    %2044 = vperm.xlu0 %2043, %v2021
    %v2045 = vpop.permute.xlu0 %2044
    %v2047 = vmul.f32 %v2045, %v1987
    %2049 = vrot.lane.b32.xlu0 %v2047, 48
    %v2050 = vpop.permute.xlu0 %2049
    %v2052 = vadd.f32 %v2042, %v2050
    %v2053 = vsel %vm563, %v1916, %v2032
    %v2054 = vsel %vm565, %v2053, %v1916
    %v2055 = vsel %vm567, %v1918, %v2052
    %v2056 = vsel %vm563, %v2055, %v1918
    %v2057 = vsel %vm570, %v2056, 0.0
    %v2058 = vmul.f32 %v190, %v1691
    %v2059 = vmul.f32 %v194, %v1692
    %v2060 = vmul.f32 %v202, %v2054
    %v2061 = vmul.f32 %v206, %v2057
    %v2062 = vadd.f32 %v2058, %v2060
    %v2063 = vadd.f32 %v2059, %v2061
    %v2064 = vtanh.pop %v2062
    %v2065 = vtanh.pop %v2063
    %v2070 = vcombine.low %v2064, %v2065
    %v2071 = vcombine.low %v2062, %v2063
    %s2074 = scalar_lea.vmem [#allocation3], 64
    %2075 = vst [vmem:[%s2074] sm:$0xff] %v2070
    %2076 = vst [vmem:[%s2074 + $0x8] sm:$0xff] %v2071
    %s2077 = scalar_lea.vmem %s0, 20
    %v2078 = vld [vmem:[%s2077] sm:$0xf]
    %2079 = vmatprep.subr.mxu0 %v84
    %2080 = vmatpush1.msra.mxu0 %v83
    %2081 = vmatprep.subr.mxu0 %v87
    %2082 = vmatpush1.msra.mxu0 %v86
    %2083 = vmatprep.subr.mxu0 %v90
    %2084 = vmatpush1.msra.mxu0 %v89
    %2085 = vmatprep.subr.mxu0 %v93
    %2086 = vmatpush1.msra.mxu0 %v92
    %2087 = vmatprep.subr.mxu0 %v96
    %2088 = vmatpush1.msra.mxu0 %v95
    %2089 = vmatprep.subr.mxu0 %v99
    %2090 = vmatpush1.msra.mxu0 %v98
    %2091 = vmatprep.subr.mxu0 %v102
    %2092 = vmatpush1.msra.mxu0 %v101
    %2093 = vmatprep.subr.mxu0 %v105
    %2094 = vmatpush1.msra.mxu0 %v104
    %2095 = vmatprep.subr.mxu0 %v108
    %2096 = vmatpush1.msra.mxu0 %v107
    %2097 = vmatprep.subr.mxu0 %v111
    %2098 = vmatpush1.msra.mxu0 %v110
    %2099 = vmatprep.subr.mxu0 %v114
    %2100 = vmatpush1.msra.mxu0 %v113
    %2101 = vmatprep.subr.mxu0 %v117
    %2102 = vmatpush1.msra.mxu0 %v116
    %2103 = vmatprep.subr.mxu0 %v120
    %2104 = vmatpush1.msra.mxu0 %v119
    %2105 = vmatprep.subr.mxu0 %v123
    %2106 = vmatpush1.msra.mxu0 %v122
    %2107 = vmatprep.subr.mxu0 %v126
    %2108 = vmatpush1.msra.mxu0 %v125
    %2109 = vmatprep.subr.mxu0 %v129
    %2110 = vmatpush1.msra.mxu0 %v128
    %2111 = vmatprep.subr.mxu0 %v132
    %2112 = vmatpush1.msra.mxu0 %v131
    %2113 = vmatprep.subr.mxu0 %v135
    %2114 = vmatpush1.msra.mxu0 %v134
    %2115 = vmatprep.subr.mxu0 %v138
    %2116 = vmatpush1.msra.mxu0 %v137
    %2117 = vmatprep.subr.mxu0 %v141
    %2118 = vmatpush1.msra.mxu0 %v140
    %2119 = vmatprep.subr.mxu0 %v144
    %2120 = vmatpush1.msra.mxu0 %v143
    %2121 = vmatprep.subr.mxu0 %v147
    %2122 = vmatpush1.msra.mxu0 %v146
    %2123 = vmatprep.subr.mxu0 %v150
    %2124 = vmatpush1.msra.mxu0 %v149
    %2125 = vmatprep.subr.mxu0 %v153
    %2126 = vmatpush1.msra.mxu0 %v152
    %2127 = vmatprep.subr.mxu0 %v156
    %2128 = vmatpush1.msra.mxu0 %v155
    %2129 = vmatprep.subr.mxu0 %v159
    %2130 = vmatpush1.msra.mxu0 %v158
    %2131 = vmatprep.subr.mxu0 %v162
    %2132 = vmatpush1.msra.mxu0 %v161
    %2133 = vmatprep.subr.mxu0 %v165
    %2134 = vmatpush1.msra.mxu0 %v164
    %2135 = vmatprep.subr.mxu0 %v168
    %2136 = vmatpush1.msra.mxu0 %v167
    %2137 = vmatprep.subr.mxu0 %v171
    %2138 = vmatpush1.msra.mxu0 %v170
    %2139 = vmatprep.subr.mxu0 %v174
    %2140 = vmatpush1.msra.mxu0 %v173
    %2141 = vmatprep.subr.mxu0 %v177
    %2142 = vmatpush1.msra.mxu0 %v176
    %2143 = vmatprep.mubr.f32.mxu0 %v2065
    %2144 = vmatmul.mubr.f32.gmra.mrb[0].mxu0 %v2064
    %v2145 = vpop.f32.mrb[0].mxu0
    %v2146 = vadd.f32 0.0, %v2145
    %v2147 = vpop.f32.mrb[0].mxu0
    %v2148 = vadd.f32 0.0, %v2147
    %2149 = vdwg.mxu0
    %2150 = vmatprep.subr.mxu0 0.0
    %2151 = vmatpush1.msra.mxu0 %v85
    %2152 = vmatprep.subr.mxu0 0.0
    %2153 = vmatpush1.msra.mxu0 %v88
    %2154 = vmatprep.subr.mxu0 0.0
    %2155 = vmatpush1.msra.mxu0 %v91
    %2156 = vmatprep.subr.mxu0 0.0
    %2157 = vmatpush1.msra.mxu0 %v94
    %2158 = vmatprep.subr.mxu0 0.0
    %2159 = vmatpush1.msra.mxu0 %v97
    %2160 = vmatprep.subr.mxu0 0.0
    %2161 = vmatpush1.msra.mxu0 %v100
    %2162 = vmatprep.subr.mxu0 0.0
    %2163 = vmatpush1.msra.mxu0 %v103
    %2164 = vmatprep.subr.mxu0 0.0
    %2165 = vmatpush1.msra.mxu0 %v106
    %2166 = vmatprep.subr.mxu0 0.0
    %2167 = vmatpush1.msra.mxu0 %v109
    %2168 = vmatprep.subr.mxu0 0.0
    %2169 = vmatpush1.msra.mxu0 %v112
    %2170 = vmatprep.subr.mxu0 0.0
    %2171 = vmatpush1.msra.mxu0 %v115
    %2172 = vmatprep.subr.mxu0 0.0
    %2173 = vmatpush1.msra.mxu0 %v118
    %2174 = vmatprep.subr.mxu0 0.0
    %2175 = vmatpush1.msra.mxu0 %v121
    %2176 = vmatprep.subr.mxu0 0.0
    %2177 = vmatpush1.msra.mxu0 %v124
    %2178 = vmatprep.subr.mxu0 0.0
    %2179 = vmatpush1.msra.mxu0 %v127
    %2180 = vmatprep.subr.mxu0 0.0
    %2181 = vmatpush1.msra.mxu0 %v130
    %2182 = vmatprep.subr.mxu0 0.0
    %2183 = vmatpush1.msra.mxu0 %v133
    %2184 = vmatprep.subr.mxu0 0.0
    %2185 = vmatpush1.msra.mxu0 %v136
    %2186 = vmatprep.subr.mxu0 0.0
    %2187 = vmatpush1.msra.mxu0 %v139
    %2188 = vmatprep.subr.mxu0 0.0
    %2189 = vmatpush1.msra.mxu0 %v142
    %2190 = vmatprep.subr.mxu0 0.0
    %2191 = vmatpush1.msra.mxu0 %v145
    %2192 = vmatprep.subr.mxu0 0.0
    %2193 = vmatpush1.msra.mxu0 %v148
    %2194 = vmatprep.subr.mxu0 0.0
    %2195 = vmatpush1.msra.mxu0 %v151
    %2196 = vmatprep.subr.mxu0 0.0
    %2197 = vmatpush1.msra.mxu0 %v154
    %2198 = vmatprep.subr.mxu0 0.0
    %2199 = vmatpush1.msra.mxu0 %v157
    %2200 = vmatprep.subr.mxu0 0.0
    %2201 = vmatpush1.msra.mxu0 %v160
    %2202 = vmatprep.subr.mxu0 0.0
    %2203 = vmatpush1.msra.mxu0 %v163
    %2204 = vmatprep.subr.mxu0 0.0
    %2205 = vmatpush1.msra.mxu0 %v166
    %2206 = vmatprep.subr.mxu0 0.0
    %2207 = vmatpush1.msra.mxu0 %v169
    %2208 = vmatprep.subr.mxu0 0.0
    %2209 = vmatpush1.msra.mxu0 %v172
    %2210 = vmatprep.subr.mxu0 0.0
    %2211 = vmatpush1.msra.mxu0 %v175
    %2212 = vmatprep.subr.mxu0 0.0
    %2213 = vmatpush1.msra.mxu0 %v178
    %2214 = vmatprep.mubr.f32.mxu0 %v2065
    %2215 = vmatmul.mubr.f32.gmra.mrb[0].mxu0 %v2064
    %v2216 = vpop.f32.mrb[0].mxu0
    %v2217 = vadd.f32 0.0, %v2216
    %v2218 = vpop.f32.mrb[0].mxu0
    %2219 = vdwg.mxu0
    %2220 = vmatprep.subr.mxu0 %v36
    %2221 = vmatpush1.msra.mxu0 %v35
    %2222 = vmatprep.subr.mxu0 %v39
    %2223 = vmatpush1.msra.mxu0 %v38
    %2224 = vmatprep.subr.mxu0 %v42
    %2225 = vmatpush1.msra.mxu0 %v41
    %2226 = vmatprep.subr.mxu0 %v45
    %2227 = vmatpush1.msra.mxu0 %v44
    %2228 = vmatprep.subr.mxu0 %v48
    %2229 = vmatpush1.msra.mxu0 %v47
    %2230 = vmatprep.subr.mxu0 %v51
    %2231 = vmatpush1.msra.mxu0 %v50
    %2232 = vmatprep.subr.mxu0 %v54
    %2233 = vmatpush1.msra.mxu0 %v53
    %2234 = vmatprep.subr.mxu0 %v57
    %2235 = vmatpush1.msra.mxu0 %v56
    %2236 = vmatprep.subr.mxu0 %v60
    %2237 = vmatpush1.msra.mxu0 %v59
    %2238 = vmatprep.subr.mxu0 %v63
    %2239 = vmatpush1.msra.mxu0 %v62
    %2240 = vmatprep.subr.mxu0 %v66
    %2241 = vmatpush1.msra.mxu0 %v65
    %2242 = vmatprep.subr.mxu0 %v69
    %2243 = vmatpush1.msra.mxu0 %v68
    %2244 = vmatprep.subr.mxu0 %v72
    %2245 = vmatpush1.msra.mxu0 %v71
    %2246 = vmatprep.subr.mxu0 %v75
    %2247 = vmatpush1.msra.mxu0 %v74
    %2248 = vmatprep.subr.mxu0 %v78
    %2249 = vmatpush1.msra.mxu0 %v77
    %2250 = vmatprep.subr.mxu0 %v81
    %2251 = vmatpush1.msra.mxu0 %v80
    %2252 = vmatprep.subr.mxu0 0.0
    %2253 = vmatpush1.msra.mxu0 0.0
    %2254 = vmatprep.subr.mxu0 0.0
    %2255 = vmatpush1.msra.mxu0 0.0
    %2256 = vmatprep.subr.mxu0 0.0
    %2257 = vmatpush1.msra.mxu0 0.0
    %2258 = vmatprep.subr.mxu0 0.0
    %2259 = vmatpush1.msra.mxu0 0.0
    %2260 = vmatprep.subr.mxu0 0.0
    %2261 = vmatpush1.msra.mxu0 0.0
    %2262 = vmatprep.subr.mxu0 0.0
    %2263 = vmatpush1.msra.mxu0 0.0
    %2264 = vmatprep.subr.mxu0 0.0
    %2265 = vmatpush1.msra.mxu0 0.0
    %2266 = vmatprep.subr.mxu0 0.0
    %2267 = vmatpush1.msra.mxu0 0.0
    %2268 = vmatprep.subr.mxu0 0.0
    %2269 = vmatpush1.msra.mxu0 0.0
    %2270 = vmatprep.subr.mxu0 0.0
    %2271 = vmatpush1.msra.mxu0 0.0
    %2272 = vmatprep.subr.mxu0 0.0
    %2273 = vmatpush1.msra.mxu0 0.0
    %2274 = vmatprep.subr.mxu0 0.0
    %2275 = vmatpush1.msra.mxu0 0.0
    %2276 = vmatprep.subr.mxu0 0.0
    %2277 = vmatpush1.msra.mxu0 0.0
    %2278 = vmatprep.subr.mxu0 0.0
    %2279 = vmatpush1.msra.mxu0 0.0
    %2280 = vmatprep.subr.mxu0 0.0
    %2281 = vmatpush1.msra.mxu0 0.0
    %2282 = vmatprep.subr.mxu0 0.0
    %2283 = vmatpush1.msra.mxu0 0.0
    %2284 = vmatprep.mubr.f32.mxu0 0.0
    %2285 = vmatmul.mubr.f32.gmra.mrb[0].mxu0 %v2078
    %v2286 = vpop.f32.mrb[0].mxu0
    %v2287 = vadd.f32 %v2146, %v2286
    %v2288 = vpop.f32.mrb[0].mxu0
    %v2289 = vadd.f32 %v2148, %v2288
    %2290 = vdwg.mxu0
    %2291 = vmatprep.subr.mxu0 0.0
    %2292 = vmatpush1.msra.mxu0 %v37
    %2293 = vmatprep.subr.mxu0 0.0
    %2294 = vmatpush1.msra.mxu0 %v40
    %2295 = vmatprep.subr.mxu0 0.0
    %2296 = vmatpush1.msra.mxu0 %v43
    %2297 = vmatprep.subr.mxu0 0.0
    %2298 = vmatpush1.msra.mxu0 %v46
    %2299 = vmatprep.subr.mxu0 0.0
    %2300 = vmatpush1.msra.mxu0 %v49
    %2301 = vmatprep.subr.mxu0 0.0
    %2302 = vmatpush1.msra.mxu0 %v52
    %2303 = vmatprep.subr.mxu0 0.0
    %2304 = vmatpush1.msra.mxu0 %v55
    %2305 = vmatprep.subr.mxu0 0.0
    %2306 = vmatpush1.msra.mxu0 %v58
    %2307 = vmatprep.subr.mxu0 0.0
    %2308 = vmatpush1.msra.mxu0 %v61
    %2309 = vmatprep.subr.mxu0 0.0
    %2310 = vmatpush1.msra.mxu0 %v64
    %2311 = vmatprep.subr.mxu0 0.0
    %2312 = vmatpush1.msra.mxu0 %v67
    %2313 = vmatprep.subr.mxu0 0.0
    %2314 = vmatpush1.msra.mxu0 %v70
    %2315 = vmatprep.subr.mxu0 0.0
    %2316 = vmatpush1.msra.mxu0 %v73
    %2317 = vmatprep.subr.mxu0 0.0
    %2318 = vmatpush1.msra.mxu0 %v76
    %2319 = vmatprep.subr.mxu0 0.0
    %2320 = vmatpush1.msra.mxu0 %v79
    %2321 = vmatprep.subr.mxu0 0.0
    %2322 = vmatpush1.msra.mxu0 %v82
    %2323 = vmatprep.subr.mxu0 0.0
    %2324 = vmatpush1.msra.mxu0 0.0
    %2325 = vmatprep.subr.mxu0 0.0
    %2326 = vmatpush1.msra.mxu0 0.0
    %2327 = vmatprep.subr.mxu0 0.0
    %2328 = vmatpush1.msra.mxu0 0.0
    %2329 = vmatprep.subr.mxu0 0.0
    %2330 = vmatpush1.msra.mxu0 0.0
    %2331 = vmatprep.subr.mxu0 0.0
    %2332 = vmatpush1.msra.mxu0 0.0
    %2333 = vmatprep.subr.mxu0 0.0
    %2334 = vmatpush1.msra.mxu0 0.0
    %2335 = vmatprep.subr.mxu0 0.0
    %2336 = vmatpush1.msra.mxu0 0.0
    %2337 = vmatprep.subr.mxu0 0.0
    %2338 = vmatpush1.msra.mxu0 0.0
    %2339 = vmatprep.subr.mxu0 0.0
    %2340 = vmatpush1.msra.mxu0 0.0
    %2341 = vmatprep.subr.mxu0 0.0
    %2342 = vmatpush1.msra.mxu0 0.0
    %2343 = vmatprep.subr.mxu0 0.0
    %2344 = vmatpush1.msra.mxu0 0.0
    %2345 = vmatprep.subr.mxu0 0.0
    %2346 = vmatpush1.msra.mxu0 0.0
    %2347 = vmatprep.subr.mxu0 0.0
    %2348 = vmatpush1.msra.mxu0 0.0
    %2349 = vmatprep.subr.mxu0 0.0
    %2350 = vmatpush1.msra.mxu0 0.0
    %2351 = vmatprep.subr.mxu0 0.0
    %2352 = vmatpush1.msra.mxu0 0.0
    %2353 = vmatprep.subr.mxu0 0.0
    %2354 = vmatpush1.msra.mxu0 0.0
    %2355 = vmatprep.mubr.f32.mxu0 0.0
    %2356 = vmatmul.mubr.f32.gmra.mrb[0].mxu0 %v2078
    %v2357 = vpop.f32.mrb[0].mxu0
    %v2358 = vadd.f32 %v2217, %v2357
    %v2359 = vpop.f32.mrb[0].mxu0
    %2360 = vdwg.mxu0
    %v2361 = vadd.f32 %v2289, %v498
    %v2362 = vxor.u32 %v2361, 2147483648
    %v2363 = vmul.f32 %v2362, 1.442695
    %v2364 = vpow.pop %v2363
    %v2365 = vadd.f32 %v2364, 1.0
    %v2366 = vrcp.pop %v2365
    %v2367 = vmul.f32 1.0, %v2366
    %2369 = vrot.lane.b32.xlu0 %v2367, 127
    %v2370 = vpop.permute.xlu0 %2369
    %v2372 = vadd.f32 %v2367, %v2370
    %v2373 = vadd.f32 %v2372, 1e-07
    %v2374 = vrcp.pop %v2373
    %v2375 = vmul.f32 1.0, %v2374
    %v2376 = vmul.f32 %v2367, %v2375
    %2378 = vset.pattern.permute.xlu0 108
    %2379 = vperm.xlu0 %2378, %v2376
    %v2380 = vpop.permute.xlu0 %2379
    %v2382 = vmul.f32 %v2380, %v2289
    %2384 = vrot.lane.b32.xlu0 %v2382, 112
    %v2385 = vpop.permute.xlu0 %2384
    %v2387 = vadd.f32 %v2287, %v2385
    %2389 = vrot.lane.b32.xlu0 %v2375, 1
    %v2390 = vpop.permute.xlu0 %2389
    %v2392 = vmul.f32 %v2367, %v2390
    %2394 = vset.pattern.permute.xlu0 109
    %2395 = vperm.xlu0 %2394, %v2392
    %v2396 = vpop.permute.xlu0 %2395
    %v2398 = vmul.f32 %v2396, %v2358
    %2400 = vrot.lane.b32.xlu0 %v2398, 96
    %v2401 = vpop.permute.xlu0 %2400
    %v2403 = vadd.f32 %v2387, %v2401
    %2404 = vset.pattern.permute.xlu0 110
    %2405 = vperm.xlu0 %2404, %v2376
    %v2406 = vpop.permute.xlu0 %2405
    %v2408 = vmul.f32 %v2406, %v2358
    %2410 = vrot.lane.b32.xlu0 %v2408, 64
    %v2411 = vpop.permute.xlu0 %2410
    %v2413 = vadd.f32 %v2289, %v2411
    %2414 = vset.pattern.permute.xlu0 111
    %2415 = vperm.xlu0 %2414, %v2392
    %v2416 = vpop.permute.xlu0 %2415
    %v2418 = vmul.f32 %v2416, %v2358
    %2420 = vrot.lane.b32.xlu0 %v2418, 48
    %v2421 = vpop.permute.xlu0 %2420
    %v2423 = vadd.f32 %v2413, %v2421
    %v2424 = vsel %vm563, %v2287, %v2403
    %v2425 = vsel %vm565, %v2424, %v2287
    %v2426 = vsel %vm567, %v2289, %v2423
    %v2427 = vsel %vm563, %v2426, %v2289
    %v2428 = vsel %vm570, %v2427, 0.0
    %v2429 = vmul.f32 %v190, %v2062
    %v2430 = vmul.f32 %v194, %v2063
    %v2431 = vmul.f32 %v202, %v2425
    %v2432 = vmul.f32 %v206, %v2428
    %v2433 = vadd.f32 %v2429, %v2431
    %v2434 = vadd.f32 %v2430, %v2432
    %v2435 = vtanh.pop %v2433
    %v2436 = vtanh.pop %v2434
    %v2441 = vcombine.low %v2435, %v2436
    %v2442 = vcombine.low %v2433, %v2434
    %s2445 = scalar_lea.vmem [#allocation3], 80
    %2446 = vst [vmem:[%s2445] sm:$0xff] %v2441
    %2447 = vst [vmem:[%s2445 + $0x8] sm:$0xff] %v2442
    %s2448 = scalar_lea.vmem %s0, 24
    %v2449 = vld [vmem:[%s2448] sm:$0xf]
    %2450 = vmatprep.subr.mxu0 %v84
    %2451 = vmatpush1.msra.mxu0 %v83
    %2452 = vmatprep.subr.mxu0 %v87
    %2453 = vmatpush1.msra.mxu0 %v86
    %2454 = vmatprep.subr.mxu0 %v90
    %2455 = vmatpush1.msra.mxu0 %v89
    %2456 = vmatprep.subr.mxu0 %v93
    %2457 = vmatpush1.msra.mxu0 %v92
    %2458 = vmatprep.subr.mxu0 %v96
    %2459 = vmatpush1.msra.mxu0 %v95
    %2460 = vmatprep.subr.mxu0 %v99
    %2461 = vmatpush1.msra.mxu0 %v98
    %2462 = vmatprep.subr.mxu0 %v102
    %2463 = vmatpush1.msra.mxu0 %v101
    %2464 = vmatprep.subr.mxu0 %v105
    %2465 = vmatpush1.msra.mxu0 %v104
    %2466 = vmatprep.subr.mxu0 %v108
    %2467 = vmatpush1.msra.mxu0 %v107
    %2468 = vmatprep.subr.mxu0 %v111
    %2469 = vmatpush1.msra.mxu0 %v110
    %2470 = vmatprep.subr.mxu0 %v114
    %2471 = vmatpush1.msra.mxu0 %v113
    %2472 = vmatprep.subr.mxu0 %v117
    %2473 = vmatpush1.msra.mxu0 %v116
    %2474 = vmatprep.subr.mxu0 %v120
    %2475 = vmatpush1.msra.mxu0 %v119
    %2476 = vmatprep.subr.mxu0 %v123
    %2477 = vmatpush1.msra.mxu0 %v122
    %2478 = vmatprep.subr.mxu0 %v126
    %2479 = vmatpush1.msra.mxu0 %v125
    %2480 = vmatprep.subr.mxu0 %v129
    %2481 = vmatpush1.msra.mxu0 %v128
    %2482 = vmatprep.subr.mxu0 %v132
    %2483 = vmatpush1.msra.mxu0 %v131
    %2484 = vmatprep.subr.mxu0 %v135
    %2485 = vmatpush1.msra.mxu0 %v134
    %2486 = vmatprep.subr.mxu0 %v138
    %2487 = vmatpush1.msra.mxu0 %v137
    %2488 = vmatprep.subr.mxu0 %v141
    %2489 = vmatpush1.msra.mxu0 %v140
    %2490 = vmatprep.subr.mxu0 %v144
    %2491 = vmatpush1.msra.mxu0 %v143
    %2492 = vmatprep.subr.mxu0 %v147
    %2493 = vmatpush1.msra.mxu0 %v146
    %2494 = vmatprep.subr.mxu0 %v150
    %2495 = vmatpush1.msra.mxu0 %v149
    %2496 = vmatprep.subr.mxu0 %v153
    %2497 = vmatpush1.msra.mxu0 %v152
    %2498 = vmatprep.subr.mxu0 %v156
    %2499 = vmatpush1.msra.mxu0 %v155
    %2500 = vmatprep.subr.mxu0 %v159
    %2501 = vmatpush1.msra.mxu0 %v158
    %2502 = vmatprep.subr.mxu0 %v162
    %2503 = vmatpush1.msra.mxu0 %v161
    %2504 = vmatprep.subr.mxu0 %v165
    %2505 = vmatpush1.msra.mxu0 %v164
    %2506 = vmatprep.subr.mxu0 %v168
    %2507 = vmatpush1.msra.mxu0 %v167
    %2508 = vmatprep.subr.mxu0 %v171
    %2509 = vmatpush1.msra.mxu0 %v170
    %2510 = vmatprep.subr.mxu0 %v174
    %2511 = vmatpush1.msra.mxu0 %v173
    %2512 = vmatprep.subr.mxu0 %v177
    %2513 = vmatpush1.msra.mxu0 %v176
    %2514 = vmatprep.mubr.f32.mxu0 %v2436
    %2515 = vmatmul.mubr.f32.gmra.mrb[0].mxu0 %v2435
    %v2516 = vpop.f32.mrb[0].mxu0
    %v2517 = vadd.f32 0.0, %v2516
    %v2518 = vpop.f32.mrb[0].mxu0
    %v2519 = vadd.f32 0.0, %v2518
    %2520 = vdwg.mxu0
    %2521 = vmatprep.subr.mxu0 0.0
    %2522 = vmatpush1.msra.mxu0 %v85
    %2523 = vmatprep.subr.mxu0 0.0
    %2524 = vmatpush1.msra.mxu0 %v88
    %2525 = vmatprep.subr.mxu0 0.0
    %2526 = vmatpush1.msra.mxu0 %v91
    %2527 = vmatprep.subr.mxu0 0.0
    %2528 = vmatpush1.msra.mxu0 %v94
    %2529 = vmatprep.subr.mxu0 0.0
    %2530 = vmatpush1.msra.mxu0 %v97
    %2531 = vmatprep.subr.mxu0 0.0
    %2532 = vmatpush1.msra.mxu0 %v100
    %2533 = vmatprep.subr.mxu0 0.0
    %2534 = vmatpush1.msra.mxu0 %v103
    %2535 = vmatprep.subr.mxu0 0.0
    %2536 = vmatpush1.msra.mxu0 %v106
    %2537 = vmatprep.subr.mxu0 0.0
    %2538 = vmatpush1.msra.mxu0 %v109
    %2539 = vmatprep.subr.mxu0 0.0
    %2540 = vmatpush1.msra.mxu0 %v112
    %2541 = vmatprep.subr.mxu0 0.0
    %2542 = vmatpush1.msra.mxu0 %v115
    %2543 = vmatprep.subr.mxu0 0.0
    %2544 = vmatpush1.msra.mxu0 %v118
    %2545 = vmatprep.subr.mxu0 0.0
    %2546 = vmatpush1.msra.mxu0 %v121
    %2547 = vmatprep.subr.mxu0 0.0
    %2548 = vmatpush1.msra.mxu0 %v124
    %2549 = vmatprep.subr.mxu0 0.0
    %2550 = vmatpush1.msra.mxu0 %v127
    %2551 = vmatprep.subr.mxu0 0.0
    %2552 = vmatpush1.msra.mxu0 %v130
    %2553 = vmatprep.subr.mxu0 0.0
    %2554 = vmatpush1.msra.mxu0 %v133
    %2555 = vmatprep.subr.mxu0 0.0
    %2556 = vmatpush1.msra.mxu0 %v136
    %2557 = vmatprep.subr.mxu0 0.0
    %2558 = vmatpush1.msra.mxu0 %v139
    %2559 = vmatprep.subr.mxu0 0.0
    %2560 = vmatpush1.msra.mxu0 %v142
    %2561 = vmatprep.subr.mxu0 0.0
    %2562 = vmatpush1.msra.mxu0 %v145
    %2563 = vmatprep.subr.mxu0 0.0
    %2564 = vmatpush1.msra.mxu0 %v148
    %2565 = vmatprep.subr.mxu0 0.0
    %2566 = vmatpush1.msra.mxu0 %v151
    %2567 = vmatprep.subr.mxu0 0.0
    %2568 = vmatpush1.msra.mxu0 %v154
    %2569 = vmatprep.subr.mxu0 0.0
    %2570 = vmatpush1.msra.mxu0 %v157
    %2571 = vmatprep.subr.mxu0 0.0
    %2572 = vmatpush1.msra.mxu0 %v160
    %2573 = vmatprep.subr.mxu0 0.0
    %2574 = vmatpush1.msra.mxu0 %v163
    %2575 = vmatprep.subr.mxu0 0.0
    %2576 = vmatpush1.msra.mxu0 %v166
    %2577 = vmatprep.subr.mxu0 0.0
    %2578 = vmatpush1.msra.mxu0 %v169
    %2579 = vmatprep.subr.mxu0 0.0
    %2580 = vmatpush1.msra.mxu0 %v172
    %2581 = vmatprep.subr.mxu0 0.0
    %2582 = vmatpush1.msra.mxu0 %v175
    %2583 = vmatprep.subr.mxu0 0.0
    %2584 = vmatpush1.msra.mxu0 %v178
    %2585 = vmatprep.mubr.f32.mxu0 %v2436
    %2586 = vmatmul.mubr.f32.gmra.mrb[0].mxu0 %v2435
    %v2587 = vpop.f32.mrb[0].mxu0
    %v2588 = vadd.f32 0.0, %v2587
    %v2589 = vpop.f32.mrb[0].mxu0
    %2590 = vdwg.mxu0
    %2591 = vmatprep.subr.mxu0 %v36
    %2592 = vmatpush1.msra.mxu0 %v35
    %2593 = vmatprep.subr.mxu0 %v39
    %2594 = vmatpush1.msra.mxu0 %v38
    %2595 = vmatprep.subr.mxu0 %v42
    %2596 = vmatpush1.msra.mxu0 %v41
    %2597 = vmatprep.subr.mxu0 %v45
    %2598 = vmatpush1.msra.mxu0 %v44
    %2599 = vmatprep.subr.mxu0 %v48
    %2600 = vmatpush1.msra.mxu0 %v47
    %2601 = vmatprep.subr.mxu0 %v51
    %2602 = vmatpush1.msra.mxu0 %v50
    %2603 = vmatprep.subr.mxu0 %v54
    %2604 = vmatpush1.msra.mxu0 %v53
    %2605 = vmatprep.subr.mxu0 %v57
    %2606 = vmatpush1.msra.mxu0 %v56
    %2607 = vmatprep.subr.mxu0 %v60
    %2608 = vmatpush1.msra.mxu0 %v59
    %2609 = vmatprep.subr.mxu0 %v63
    %2610 = vmatpush1.msra.mxu0 %v62
    %2611 = vmatprep.subr.mxu0 %v66
    %2612 = vmatpush1.msra.mxu0 %v65
    %2613 = vmatprep.subr.mxu0 %v69
    %2614 = vmatpush1.msra.mxu0 %v68
    %2615 = vmatprep.subr.mxu0 %v72
    %2616 = vmatpush1.msra.mxu0 %v71
    %2617 = vmatprep.subr.mxu0 %v75
    %2618 = vmatpush1.msra.mxu0 %v74
    %2619 = vmatprep.subr.mxu0 %v78
    %2620 = vmatpush1.msra.mxu0 %v77
    %2621 = vmatprep.subr.mxu0 %v81
    %2622 = vmatpush1.msra.mxu0 %v80
    %2623 = vmatprep.subr.mxu0 0.0
    %2624 = vmatpush1.msra.mxu0 0.0
    %2625 = vmatprep.subr.mxu0 0.0
    %2626 = vmatpush1.msra.mxu0 0.0
    %2627 = vmatprep.subr.mxu0 0.0
    %2628 = vmatpush1.msra.mxu0 0.0
    %2629 = vmatprep.subr.mxu0 0.0
    %2630 = vmatpush1.msra.mxu0 0.0
    %2631 = vmatprep.subr.mxu0 0.0
    %2632 = vmatpush1.msra.mxu0 0.0
    %2633 = vmatprep.subr.mxu0 0.0
    %2634 = vmatpush1.msra.mxu0 0.0
    %2635 = vmatprep.subr.mxu0 0.0
    %2636 = vmatpush1.msra.mxu0 0.0
    %2637 = vmatprep.subr.mxu0 0.0
    %2638 = vmatpush1.msra.mxu0 0.0
    %2639 = vmatprep.subr.mxu0 0.0
    %2640 = vmatpush1.msra.mxu0 0.0
    %2641 = vmatprep.subr.mxu0 0.0
    %2642 = vmatpush1.msra.mxu0 0.0
    %2643 = vmatprep.subr.mxu0 0.0
    %2644 = vmatpush1.msra.mxu0 0.0
    %2645 = vmatprep.subr.mxu0 0.0
    %2646 = vmatpush1.msra.mxu0 0.0
    %2647 = vmatprep.subr.mxu0 0.0
    %2648 = vmatpush1.msra.mxu0 0.0
    %2649 = vmatprep.subr.mxu0 0.0
    %2650 = vmatpush1.msra.mxu0 0.0
    %2651 = vmatprep.subr.mxu0 0.0
    %2652 = vmatpush1.msra.mxu0 0.0
    %2653 = vmatprep.subr.mxu0 0.0
    %2654 = vmatpush1.msra.mxu0 0.0
    %2655 = vmatprep.mubr.f32.mxu0 0.0
    %2656 = vmatmul.mubr.f32.gmra.mrb[0].mxu0 %v2449
    %v2657 = vpop.f32.mrb[0].mxu0
    %v2658 = vadd.f32 %v2517, %v2657
    %v2659 = vpop.f32.mrb[0].mxu0
    %v2660 = vadd.f32 %v2519, %v2659
    %2661 = vdwg.mxu0
    %2662 = vmatprep.subr.mxu0 0.0
    %2663 = vmatpush1.msra.mxu0 %v37
    %2664 = vmatprep.subr.mxu0 0.0
    %2665 = vmatpush1.msra.mxu0 %v40
    %2666 = vmatprep.subr.mxu0 0.0
    %2667 = vmatpush1.msra.mxu0 %v43
    %2668 = vmatprep.subr.mxu0 0.0
    %2669 = vmatpush1.msra.mxu0 %v46
    %2670 = vmatprep.subr.mxu0 0.0
    %2671 = vmatpush1.msra.mxu0 %v49
    %2672 = vmatprep.subr.mxu0 0.0
    %2673 = vmatpush1.msra.mxu0 %v52
    %2674 = vmatprep.subr.mxu0 0.0
    %2675 = vmatpush1.msra.mxu0 %v55
    %2676 = vmatprep.subr.mxu0 0.0
    %2677 = vmatpush1.msra.mxu0 %v58
    %2678 = vmatprep.subr.mxu0 0.0
    %2679 = vmatpush1.msra.mxu0 %v61
    %2680 = vmatprep.subr.mxu0 0.0
    %2681 = vmatpush1.msra.mxu0 %v64
    %2682 = vmatprep.subr.mxu0 0.0
    %2683 = vmatpush1.msra.mxu0 %v67
    %2684 = vmatprep.subr.mxu0 0.0
    %2685 = vmatpush1.msra.mxu0 %v70
    %2686 = vmatprep.subr.mxu0 0.0
    %2687 = vmatpush1.msra.mxu0 %v73
    %2688 = vmatprep.subr.mxu0 0.0
    %2689 = vmatpush1.msra.mxu0 %v76
    %2690 = vmatprep.subr.mxu0 0.0
    %2691 = vmatpush1.msra.mxu0 %v79
    %2692 = vmatprep.subr.mxu0 0.0
    %2693 = vmatpush1.msra.mxu0 %v82
    %2694 = vmatprep.subr.mxu0 0.0
    %2695 = vmatpush1.msra.mxu0 0.0
    %2696 = vmatprep.subr.mxu0 0.0
    %2697 = vmatpush1.msra.mxu0 0.0
    %2698 = vmatprep.subr.mxu0 0.0
    %2699 = vmatpush1.msra.mxu0 0.0
    %2700 = vmatprep.subr.mxu0 0.0
    %2701 = vmatpush1.msra.mxu0 0.0
    %2702 = vmatprep.subr.mxu0 0.0
    %2703 = vmatpush1.msra.mxu0 0.0
    %2704 = vmatprep.subr.mxu0 0.0
    %2705 = vmatpush1.msra.mxu0 0.0
    %2706 = vmatprep.subr.mxu0 0.0
    %2707 = vmatpush1.msra.mxu0 0.0
    %2708 = vmatprep.subr.mxu0 0.0
    %2709 = vmatpush1.msra.mxu0 0.0
    %2710 = vmatprep.subr.mxu0 0.0
    %2711 = vmatpush1.msra.mxu0 0.0
    %2712 = vmatprep.subr.mxu0 0.0
    %2713 = vmatpush1.msra.mxu0 0.0
    %2714 = vmatprep.subr.mxu0 0.0
    %2715 = vmatpush1.msra.mxu0 0.0
    %2716 = vmatprep.subr.mxu0 0.0
    %2717 = vmatpush1.msra.mxu0 0.0
    %2718 = vmatprep.subr.mxu0 0.0
    %2719 = vmatpush1.msra.mxu0 0.0
    %2720 = vmatprep.subr.mxu0 0.0
    %2721 = vmatpush1.msra.mxu0 0.0
    %2722 = vmatprep.subr.mxu0 0.0
    %2723 = vmatpush1.msra.mxu0 0.0
    %2724 = vmatprep.subr.mxu0 0.0
    %2725 = vmatpush1.msra.mxu0 0.0
    %2726 = vmatprep.mubr.f32.mxu0 0.0
    %2727 = vmatmul.mubr.f32.gmra.mrb[0].mxu0 %v2449
    %v2728 = vpop.f32.mrb[0].mxu0
    %v2729 = vadd.f32 %v2588, %v2728
    %v2730 = vpop.f32.mrb[0].mxu0
    %2731 = vdwg.mxu0
    %v2732 = vadd.f32 %v2660, %v498
    %v2733 = vxor.u32 %v2732, 2147483648
    %v2734 = vmul.f32 %v2733, 1.442695
    %v2735 = vpow.pop %v2734
    %v2736 = vadd.f32 %v2735, 1.0
    %v2737 = vrcp.pop %v2736
    %v2738 = vmul.f32 1.0, %v2737
    %2740 = vrot.lane.b32.xlu0 %v2738, 127
    %v2741 = vpop.permute.xlu0 %2740
    %v2743 = vadd.f32 %v2738, %v2741
    %v2744 = vadd.f32 %v2743, 1e-07
    %v2745 = vrcp.pop %v2744
    %v2746 = vmul.f32 1.0, %v2745
    %v2747 = vmul.f32 %v2738, %v2746
    %2749 = vset.pattern.permute.xlu0 108
    %2750 = vperm.xlu0 %2749, %v2747
    %v2751 = vpop.permute.xlu0 %2750
    %v2753 = vmul.f32 %v2751, %v2660
    %2755 = vrot.lane.b32.xlu0 %v2753, 112
    %v2756 = vpop.permute.xlu0 %2755
    %v2758 = vadd.f32 %v2658, %v2756
    %2760 = vrot.lane.b32.xlu0 %v2746, 1
    %v2761 = vpop.permute.xlu0 %2760
    %v2763 = vmul.f32 %v2738, %v2761
    %2765 = vset.pattern.permute.xlu0 109
    %2766 = vperm.xlu0 %2765, %v2763
    %v2767 = vpop.permute.xlu0 %2766
    %v2769 = vmul.f32 %v2767, %v2729
    %2771 = vrot.lane.b32.xlu0 %v2769, 96
    %v2772 = vpop.permute.xlu0 %2771
    %v2774 = vadd.f32 %v2758, %v2772
    %2775 = vset.pattern.permute.xlu0 110
    %2776 = vperm.xlu0 %2775, %v2747
    %v2777 = vpop.permute.xlu0 %2776
    %v2779 = vmul.f32 %v2777, %v2729
    %2781 = vrot.lane.b32.xlu0 %v2779, 64
    %v2782 = vpop.permute.xlu0 %2781
    %v2784 = vadd.f32 %v2660, %v2782
    %2785 = vset.pattern.permute.xlu0 111
    %2786 = vperm.xlu0 %2785, %v2763
    %v2787 = vpop.permute.xlu0 %2786
    %v2789 = vmul.f32 %v2787, %v2729
    %2791 = vrot.lane.b32.xlu0 %v2789, 48
    %v2792 = vpop.permute.xlu0 %2791
    %v2794 = vadd.f32 %v2784, %v2792
    %v2795 = vsel %vm563, %v2658, %v2774
    %v2796 = vsel %vm565, %v2795, %v2658
    %v2797 = vsel %vm567, %v2660, %v2794
    %v2798 = vsel %vm563, %v2797, %v2660
    %v2799 = vsel %vm570, %v2798, 0.0
    %v2800 = vmul.f32 %v190, %v2433
    %v2801 = vmul.f32 %v194, %v2434
    %v2802 = vmul.f32 %v202, %v2796
    %v2803 = vmul.f32 %v206, %v2799
    %v2804 = vadd.f32 %v2800, %v2802
    %v2805 = vadd.f32 %v2801, %v2803
    %v2806 = vtanh.pop %v2804
    %v2807 = vtanh.pop %v2805
    %v2812 = vcombine.low %v2806, %v2807
    %v2813 = vcombine.low %v2804, %v2805
    %s2816 = scalar_lea.vmem [#allocation3], 96
    %2817 = vst [vmem:[%s2816] sm:$0xff] %v2812
    %2818 = vst [vmem:[%s2816 + $0x8] sm:$0xff] %v2813
    %s2819 = scalar_lea.vmem %s0, 28
    %v2820 = vld [vmem:[%s2819] sm:$0xf]
    %2821 = vmatprep.subr.mxu0 %v84
    %2822 = vmatpush1.msra.mxu0 %v83
    %2823 = vmatprep.subr.mxu0 %v87
    %2824 = vmatpush1.msra.mxu0 %v86
    %2825 = vmatprep.subr.mxu0 %v90
    %2826 = vmatpush1.msra.mxu0 %v89
    %2827 = vmatprep.subr.mxu0 %v93
    %2828 = vmatpush1.msra.mxu0 %v92
    %2829 = vmatprep.subr.mxu0 %v96
    %2830 = vmatpush1.msra.mxu0 %v95
    %2831 = vmatprep.subr.mxu0 %v99
    %2832 = vmatpush1.msra.mxu0 %v98
    %2833 = vmatprep.subr.mxu0 %v102
    %2834 = vmatpush1.msra.mxu0 %v101
    %2835 = vmatprep.subr.mxu0 %v105
    %2836 = vmatpush1.msra.mxu0 %v104
    %2837 = vmatprep.subr.mxu0 %v108
    %2838 = vmatpush1.msra.mxu0 %v107
    %2839 = vmatprep.subr.mxu0 %v111
    %2840 = vmatpush1.msra.mxu0 %v110
    %2841 = vmatprep.subr.mxu0 %v114
    %2842 = vmatpush1.msra.mxu0 %v113
    %2843 = vmatprep.subr.mxu0 %v117
    %2844 = vmatpush1.msra.mxu0 %v116
    %2845 = vmatprep.subr.mxu0 %v120
    %2846 = vmatpush1.msra.mxu0 %v119
    %2847 = vmatprep.subr.mxu0 %v123
    %2848 = vmatpush1.msra.mxu0 %v122
    %2849 = vmatprep.subr.mxu0 %v126
    %2850 = vmatpush1.msra.mxu0 %v125
    %2851 = vmatprep.subr.mxu0 %v129
    %2852 = vmatpush1.msra.mxu0 %v128
    %2853 = vmatprep.subr.mxu0 %v132
    %2854 = vmatpush1.msra.mxu0 %v131
    %2855 = vmatprep.subr.mxu0 %v135
    %2856 = vmatpush1.msra.mxu0 %v134
    %2857 = vmatprep.subr.mxu0 %v138
    %2858 = vmatpush1.msra.mxu0 %v137
    %2859 = vmatprep.subr.mxu0 %v141
    %2860 = vmatpush1.msra.mxu0 %v140
    %2861 = vmatprep.subr.mxu0 %v144
    %2862 = vmatpush1.msra.mxu0 %v143
    %2863 = vmatprep.subr.mxu0 %v147
    %2864 = vmatpush1.msra.mxu0 %v146
    %2865 = vmatprep.subr.mxu0 %v150
    %2866 = vmatpush1.msra.mxu0 %v149
    %2867 = vmatprep.subr.mxu0 %v153
    %2868 = vmatpush1.msra.mxu0 %v152
    %2869 = vmatprep.subr.mxu0 %v156
    %2870 = vmatpush1.msra.mxu0 %v155
    %2871 = vmatprep.subr.mxu0 %v159
    %2872 = vmatpush1.msra.mxu0 %v158
    %2873 = vmatprep.subr.mxu0 %v162
    %2874 = vmatpush1.msra.mxu0 %v161
    %2875 = vmatprep.subr.mxu0 %v165
    %2876 = vmatpush1.msra.mxu0 %v164
    %2877 = vmatprep.subr.mxu0 %v168
    %2878 = vmatpush1.msra.mxu0 %v167
    %2879 = vmatprep.subr.mxu0 %v171
    %2880 = vmatpush1.msra.mxu0 %v170
    %2881 = vmatprep.subr.mxu0 %v174
    %2882 = vmatpush1.msra.mxu0 %v173
    %2883 = vmatprep.subr.mxu0 %v177
    %2884 = vmatpush1.msra.mxu0 %v176
    %2885 = vmatprep.mubr.f32.mxu0 %v2807
    %2886 = vmatmul.mubr.f32.gmra.mrb[0].mxu0 %v2806
    %v2887 = vpop.f32.mrb[0].mxu0
    %v2888 = vadd.f32 0.0, %v2887
    %v2889 = vpop.f32.mrb[0].mxu0
    %v2890 = vadd.f32 0.0, %v2889
    %2891 = vdwg.mxu0
    %2892 = vmatprep.subr.mxu0 0.0
    %2893 = vmatpush1.msra.mxu0 %v85
    %2894 = vmatprep.subr.mxu0 0.0
    %2895 = vmatpush1.msra.mxu0 %v88
    %2896 = vmatprep.subr.mxu0 0.0
    %2897 = vmatpush1.msra.mxu0 %v91
    %2898 = vmatprep.subr.mxu0 0.0
    %2899 = vmatpush1.msra.mxu0 %v94
    %2900 = vmatprep.subr.mxu0 0.0
    %2901 = vmatpush1.msra.mxu0 %v97
    %2902 = vmatprep.subr.mxu0 0.0
    %2903 = vmatpush1.msra.mxu0 %v100
    %2904 = vmatprep.subr.mxu0 0.0
    %2905 = vmatpush1.msra.mxu0 %v103
    %2906 = vmatprep.subr.mxu0 0.0
    %2907 = vmatpush1.msra.mxu0 %v106
    %2908 = vmatprep.subr.mxu0 0.0
    %2909 = vmatpush1.msra.mxu0 %v109
    %2910 = vmatprep.subr.mxu0 0.0
    %2911 = vmatpush1.msra.mxu0 %v112
    %2912 = vmatprep.subr.mxu0 0.0
    %2913 = vmatpush1.msra.mxu0 %v115
    %2914 = vmatprep.subr.mxu0 0.0
    %2915 = vmatpush1.msra.mxu0 %v118
    %2916 = vmatprep.subr.mxu0 0.0
    %2917 = vmatpush1.msra.mxu0 %v121
    %2918 = vmatprep.subr.mxu0 0.0
    %2919 = vmatpush1.msra.mxu0 %v124
    %2920 = vmatprep.subr.mxu0 0.0
    %2921 = vmatpush1.msra.mxu0 %v127
    %2922 = vmatprep.subr.mxu0 0.0
    %2923 = vmatpush1.msra.mxu0 %v130
    %2924 = vmatprep.subr.mxu0 0.0
    %2925 = vmatpush1.msra.mxu0 %v133
    %2926 = vmatprep.subr.mxu0 0.0
    %2927 = vmatpush1.msra.mxu0 %v136
    %2928 = vmatprep.subr.mxu0 0.0
    %2929 = vmatpush1.msra.mxu0 %v139
    %2930 = vmatprep.subr.mxu0 0.0
    %2931 = vmatpush1.msra.mxu0 %v142
    %2932 = vmatprep.subr.mxu0 0.0
    %2933 = vmatpush1.msra.mxu0 %v145
    %2934 = vmatprep.subr.mxu0 0.0
    %2935 = vmatpush1.msra.mxu0 %v148
    %2936 = vmatprep.subr.mxu0 0.0
    %2937 = vmatpush1.msra.mxu0 %v151
    %2938 = vmatprep.subr.mxu0 0.0
    %2939 = vmatpush1.msra.mxu0 %v154
    %2940 = vmatprep.subr.mxu0 0.0
    %2941 = vmatpush1.msra.mxu0 %v157
    %2942 = vmatprep.subr.mxu0 0.0
    %2943 = vmatpush1.msra.mxu0 %v160
    %2944 = vmatprep.subr.mxu0 0.0
    %2945 = vmatpush1.msra.mxu0 %v163
    %2946 = vmatprep.subr.mxu0 0.0
    %2947 = vmatpush1.msra.mxu0 %v166
    %2948 = vmatprep.subr.mxu0 0.0
    %2949 = vmatpush1.msra.mxu0 %v169
    %2950 = vmatprep.subr.mxu0 0.0
    %2951 = vmatpush1.msra.mxu0 %v172
    %2952 = vmatprep.subr.mxu0 0.0
    %2953 = vmatpush1.msra.mxu0 %v175
    %2954 = vmatprep.subr.mxu0 0.0
    %2955 = vmatpush1.msra.mxu0 %v178
    %2956 = vmatprep.mubr.f32.mxu0 %v2807
    %2957 = vmatmul.mubr.f32.gmra.mrb[0].mxu0 %v2806
    %v2958 = vpop.f32.mrb[0].mxu0
    %v2959 = vadd.f32 0.0, %v2958
    %v2960 = vpop.f32.mrb[0].mxu0
    %2961 = vdwg.mxu0
    %2962 = vmatprep.subr.mxu0 %v36
    %2963 = vmatpush1.msra.mxu0 %v35
    %2964 = vmatprep.subr.mxu0 %v39
    %2965 = vmatpush1.msra.mxu0 %v38
    %2966 = vmatprep.subr.mxu0 %v42
    %2967 = vmatpush1.msra.mxu0 %v41
    %2968 = vmatprep.subr.mxu0 %v45
    %2969 = vmatpush1.msra.mxu0 %v44
    %2970 = vmatprep.subr.mxu0 %v48
    %2971 = vmatpush1.msra.mxu0 %v47
    %2972 = vmatprep.subr.mxu0 %v51
    %2973 = vmatpush1.msra.mxu0 %v50
    %2974 = vmatprep.subr.mxu0 %v54
    %2975 = vmatpush1.msra.mxu0 %v53
    %2976 = vmatprep.subr.mxu0 %v57
    %2977 = vmatpush1.msra.mxu0 %v56
    %2978 = vmatprep.subr.mxu0 %v60
    %2979 = vmatpush1.msra.mxu0 %v59
    %2980 = vmatprep.subr.mxu0 %v63
    %2981 = vmatpush1.msra.mxu0 %v62
    %2982 = vmatprep.subr.mxu0 %v66
    %2983 = vmatpush1.msra.mxu0 %v65
    %2984 = vmatprep.subr.mxu0 %v69
    %2985 = vmatpush1.msra.mxu0 %v68
    %2986 = vmatprep.subr.mxu0 %v72
    %2987 = vmatpush1.msra.mxu0 %v71
    %2988 = vmatprep.subr.mxu0 %v75
    %2989 = vmatpush1.msra.mxu0 %v74
    %2990 = vmatprep.subr.mxu0 %v78
    %2991 = vmatpush1.msra.mxu0 %v77
    %2992 = vmatprep.subr.mxu0 %v81
    %2993 = vmatpush1.msra.mxu0 %v80
    %2994 = vmatprep.subr.mxu0 0.0
    %2995 = vmatpush1.msra.mxu0 0.0
    %2996 = vmatprep.subr.mxu0 0.0
    %2997 = vmatpush1.msra.mxu0 0.0
    %2998 = vmatprep.subr.mxu0 0.0
    %2999 = vmatpush1.msra.mxu0 0.0
    %3000 = vmatprep.subr.mxu0 0.0
    %3001 = vmatpush1.msra.mxu0 0.0
    %3002 = vmatprep.subr.mxu0 0.0
    %3003 = vmatpush1.msra.mxu0 0.0
    %3004 = vmatprep.subr.mxu0 0.0
    %3005 = vmatpush1.msra.mxu0 0.0
    %3006 = vmatprep.subr.mxu0 0.0
    %3007 = vmatpush1.msra.mxu0 0.0
    %3008 = vmatprep.subr.mxu0 0.0
    %3009 = vmatpush1.msra.mxu0 0.0
    %3010 = vmatprep.subr.mxu0 0.0
    %3011 = vmatpush1.msra.mxu0 0.0
    %3012 = vmatprep.subr.mxu0 0.0
    %3013 = vmatpush1.msra.mxu0 0.0
    %3014 = vmatprep.subr.mxu0 0.0
    %3015 = vmatpush1.msra.mxu0 0.0
    %3016 = vmatprep.subr.mxu0 0.0
    %3017 = vmatpush1.msra.mxu0 0.0
    %3018 = vmatprep.subr.mxu0 0.0
    %3019 = vmatpush1.msra.mxu0 0.0
    %3020 = vmatprep.subr.mxu0 0.0
    %3021 = vmatpush1.msra.mxu0 0.0
    %3022 = vmatprep.subr.mxu0 0.0
    %3023 = vmatpush1.msra.mxu0 0.0
    %3024 = vmatprep.subr.mxu0 0.0
    %3025 = vmatpush1.msra.mxu0 0.0
    %3026 = vmatprep.mubr.f32.mxu0 0.0
    %3027 = vmatmul.mubr.f32.gmra.mrb[0].mxu0 %v2820
    %v3028 = vpop.f32.mrb[0].mxu0
    %v3029 = vadd.f32 %v2888, %v3028
    %v3030 = vpop.f32.mrb[0].mxu0
    %v3031 = vadd.f32 %v2890, %v3030
    %3032 = vdwg.mxu0
    %3033 = vmatprep.subr.mxu0 0.0
    %3034 = vmatpush1.msra.mxu0 %v37
    %3035 = vmatprep.subr.mxu0 0.0
    %3036 = vmatpush1.msra.mxu0 %v40
    %3037 = vmatprep.subr.mxu0 0.0
    %3038 = vmatpush1.msra.mxu0 %v43
    %3039 = vmatprep.subr.mxu0 0.0
    %3040 = vmatpush1.msra.mxu0 %v46
    %3041 = vmatprep.subr.mxu0 0.0
    %3042 = vmatpush1.msra.mxu0 %v49
    %3043 = vmatprep.subr.mxu0 0.0
    %3044 = vmatpush1.msra.mxu0 %v52
    %3045 = vmatprep.subr.mxu0 0.0
    %3046 = vmatpush1.msra.mxu0 %v55
    %3047 = vmatprep.subr.mxu0 0.0
    %3048 = vmatpush1.msra.mxu0 %v58
    %3049 = vmatprep.subr.mxu0 0.0
    %3050 = vmatpush1.msra.mxu0 %v61
    %3051 = vmatprep.subr.mxu0 0.0
    %3052 = vmatpush1.msra.mxu0 %v64
    %3053 = vmatprep.subr.mxu0 0.0
    %3054 = vmatpush1.msra.mxu0 %v67
    %3055 = vmatprep.subr.mxu0 0.0
    %3056 = vmatpush1.msra.mxu0 %v70
    %3057 = vmatprep.subr.mxu0 0.0
    %3058 = vmatpush1.msra.mxu0 %v73
    %3059 = vmatprep.subr.mxu0 0.0
    %3060 = vmatpush1.msra.mxu0 %v76
    %3061 = vmatprep.subr.mxu0 0.0
    %3062 = vmatpush1.msra.mxu0 %v79
    %3063 = vmatprep.subr.mxu0 0.0
    %3064 = vmatpush1.msra.mxu0 %v82
    %3065 = vmatprep.subr.mxu0 0.0
    %3066 = vmatpush1.msra.mxu0 0.0
    %3067 = vmatprep.subr.mxu0 0.0
    %3068 = vmatpush1.msra.mxu0 0.0
    %3069 = vmatprep.subr.mxu0 0.0
    %3070 = vmatpush1.msra.mxu0 0.0
    %3071 = vmatprep.subr.mxu0 0.0
    %3072 = vmatpush1.msra.mxu0 0.0
    %3073 = vmatprep.subr.mxu0 0.0
    %3074 = vmatpush1.msra.mxu0 0.0
    %3075 = vmatprep.subr.mxu0 0.0
    %3076 = vmatpush1.msra.mxu0 0.0
    %3077 = vmatprep.subr.mxu0 0.0
    %3078 = vmatpush1.msra.mxu0 0.0
    %3079 = vmatprep.subr.mxu0 0.0
    %3080 = vmatpush1.msra.mxu0 0.0
    %3081 = vmatprep.subr.mxu0 0.0
    %3082 = vmatpush1.msra.mxu0 0.0
    %3083 = vmatprep.subr.mxu0 0.0
    %3084 = vmatpush1.msra.mxu0 0.0
    %3085 = vmatprep.subr.mxu0 0.0
    %3086 = vmatpush1.msra.mxu0 0.0
    %3087 = vmatprep.subr.mxu0 0.0
    %3088 = vmatpush1.msra.mxu0 0.0
    %3089 = vmatprep.subr.mxu0 0.0
    %3090 = vmatpush1.msra.mxu0 0.0
    %3091 = vmatprep.subr.mxu0 0.0
    %3092 = vmatpush1.msra.mxu0 0.0
    %3093 = vmatprep.subr.mxu0 0.0
    %3094 = vmatpush1.msra.mxu0 0.0
    %3095 = vmatprep.subr.mxu0 0.0
    %3096 = vmatpush1.msra.mxu0 0.0
    %3097 = vmatprep.mubr.f32.mxu0 0.0
    %3098 = vmatmul.mubr.f32.gmra.mrb[0].mxu0 %v2820
    %v3099 = vpop.f32.mrb[0].mxu0
    %v3100 = vadd.f32 %v2959, %v3099
    %v3101 = vpop.f32.mrb[0].mxu0
    %3102 = vdwg.mxu0
    %v3103 = vadd.f32 %v3031, %v498
    %v3104 = vxor.u32 %v3103, 2147483648
    %v3105 = vmul.f32 %v3104, 1.442695
    %v3106 = vpow.pop %v3105
    %v3107 = vadd.f32 %v3106, 1.0
    %v3108 = vrcp.pop %v3107
    %v3109 = vmul.f32 1.0, %v3108
    %3111 = vrot.lane.b32.xlu0 %v3109, 127
    %v3112 = vpop.permute.xlu0 %3111
    %v3114 = vadd.f32 %v3109, %v3112
    %v3115 = vadd.f32 %v3114, 1e-07
    %v3116 = vrcp.pop %v3115
    %v3117 = vmul.f32 1.0, %v3116
    %v3118 = vmul.f32 %v3109, %v3117
    %3120 = vset.pattern.permute.xlu0 108
    %3121 = vperm.xlu0 %3120, %v3118
    %v3122 = vpop.permute.xlu0 %3121
    %v3124 = vmul.f32 %v3122, %v3031
    %3126 = vrot.lane.b32.xlu0 %v3124, 112
    %v3127 = vpop.permute.xlu0 %3126
    %v3129 = vadd.f32 %v3029, %v3127
    %3131 = vrot.lane.b32.xlu0 %v3117, 1
    %v3132 = vpop.permute.xlu0 %3131
    %v3134 = vmul.f32 %v3109, %v3132
    %3136 = vset.pattern.permute.xlu0 109
    %3137 = vperm.xlu0 %3136, %v3134
    %v3138 = vpop.permute.xlu0 %3137
    %v3140 = vmul.f32 %v3138, %v3100
    %3142 = vrot.lane.b32.xlu0 %v3140, 96
    %v3143 = vpop.permute.xlu0 %3142
    %v3145 = vadd.f32 %v3129, %v3143
    %3146 = vset.pattern.permute.xlu0 110
    %3147 = vperm.xlu0 %3146, %v3118
    %v3148 = vpop.permute.xlu0 %3147
    %v3150 = vmul.f32 %v3148, %v3100
    %3152 = vrot.lane.b32.xlu0 %v3150, 64
    %v3153 = vpop.permute.xlu0 %3152
    %v3155 = vadd.f32 %v3031, %v3153
    %3156 = vset.pattern.permute.xlu0 111
    %3157 = vperm.xlu0 %3156, %v3134
    %v3158 = vpop.permute.xlu0 %3157
    %v3160 = vmul.f32 %v3158, %v3100
    %3162 = vrot.lane.b32.xlu0 %v3160, 48
    %v3163 = vpop.permute.xlu0 %3162
    %v3165 = vadd.f32 %v3155, %v3163
    %v3166 = vsel %vm563, %v3029, %v3145
    %v3167 = vsel %vm565, %v3166, %v3029
    %v3168 = vsel %vm567, %v3031, %v3165
    %v3169 = vsel %vm563, %v3168, %v3031
    %v3170 = vsel %vm570, %v3169, 0.0
    %v3171 = vmul.f32 %v190, %v2804
    %v3172 = vmul.f32 %v194, %v2805
    %v3173 = vmul.f32 %v202, %v3167
    %v3174 = vmul.f32 %v206, %v3170
    %v3175 = vadd.f32 %v3171, %v3173
    %v3176 = vadd.f32 %v3172, %v3174
    %v3177 = vtanh.pop %v3175
    %v3178 = vtanh.pop %v3176
    %v3183 = vcombine.low %v3177, %v3178
    %v3184 = vcombine.low %v3175, %v3176
    %s3187 = scalar_lea.vmem [#allocation3], 112
    %3188 = vst [vmem:[%s3187] sm:$0xff] %v3183
    %3189 = vst [vmem:[%s3187 + $0x8] sm:$0xff] %v3184
    %3190 = vst [vmem:[#allocation2] sm:$0xff] %v3183
    %3191 = vst [vmem:[#allocation2 + $0x8] sm:$0xff] %v3184
    // Predicated region
    $region34: #{tpu_custom_call.1} parent=1 // pred_check
      _
    $region35: #{tpu_custom_call.1} parent=1 // pred_check_branch
      %3193 = sbr.rel (0) target = $region37
    $region36: #{tpu_custom_call.1} parent=1 // pred_region
      %s3195 = ssub.s32 2048, 2048
      %3196 = vsyncadd [#allocation4], %s3195
      %s3197 = sshll.u32 [#allocation3], 4
      %s3198 = int_to_ptr.vmem [resolvable:$true] %s3197
      %3203 = dma.vmem_to_hbm [thread:$0]  %s3198, 2048, %s7, [#allocation4], 256, 256, 16
    $region37: #{tpu_custom_call.1} parent=1 // pred_fallthru
      _
    // Predicated region
    $region38: #{tpu_custom_call.1} parent=1 // pred_check
      _
    $region39: #{tpu_custom_call.1} parent=1 // pred_check_branch
      %3205 = sbr.rel (0) target = $region41
    $region40: #{tpu_custom_call.1} parent=1 // pred_region
      %3206 = dma.done [#allocation4], 2048
    $region41: #{tpu_custom_call.1} parent=1 // pred_fallthru
      _
    %3207 = vsyncpa [#allocation4], 1

</llo_original>
